<compile_context>
chip_gen: v7x
topology: tpu7x:2x2x1
jax: 0.10.0
libtpu: 0.0.40
codegen_flags: <defaults>
</compile_context>

<pallas_src>
import jax
import jax.numpy as jnp
import numpy as np
from jax.experimental import pallas as pl
from jax.experimental.pallas import tpu as pltpu


# --------------------------------------------------------------------------- #
# Fused Pallas kernel: conv1(s=1)+ReLU -> conv2(s=2)+ReLU -> conv3(s=2)+ReLU
# One batch element per grid step.
# --------------------------------------------------------------------------- #
def _fused_backbone_kernel(p1_ref, g2_ref, g3_ref,
                           w1_ref, w2_ref, w3_ref,
                           b1_ref, b2_ref, b3_ref,
                           y1_ref, y2_ref, y3_ref):
    """p1_ref : (9*C0, M1)        layer-1 im2col patches (taps folded into K, spatial on lanes)
    gK_ref    : (M_{k-1}, 9*M_k)  static 0/1 gather matrix, taps concatenated along lanes
    w1_ref    : (C1, 9*C0)        folded layer-1 weights
    wK_ref    : (9, C_k, C_{k-1}) per-tap weights for layers 2/3
    bK_ref    : (C_k, 1)          bias
    yK_ref    : (C_k, M_k)        outputs (channels on sublanes, spatial on lanes)
    """

    def folded_conv_relu(w, b, patches):
        # single folded-K MXU matmul + bias + fused ReLU, f32 accumulation
        y = jnp.dot(w, patches, preferred_element_type=jnp.float32)
        return jnp.maximum(y + b, 0.0)

    def gather_conv_relu(y_in, g_ref, w_ref, b_ref, m_out):
        # ONE long gather matmul (exact: G is 0/1 and y_in stays f32), then nine
        # small per-tap conv matmuls accumulated in vregs.
        q = jnp.dot(y_in, g_ref[...], preferred_element_type=jnp.float32)  # (C_in, 9*M_out)
        c_out = w_ref.shape[1]
        acc = jnp.zeros((c_out, m_out), jnp.float32)
        for t in range(9):  # static unroll over the 3x3 taps
            acc += jnp.dot(w_ref[t], q[:, t * m_out:(t + 1) * m_out],
                           preferred_element_type=jnp.float32)
        return jnp.maximum(acc + b_ref[...], 0.0)

    y1 = folded_conv_relu(w1_ref[...], b1_ref[...], p1_ref[...])           # (C1, M1)
    y1_ref[...] = y1.astype(y1_ref.dtype)
    y2 = gather_conv_relu(y1, g2_ref, w2_ref, b2_ref, y2_ref.shape[-1])    # (C2, M2)
    y2_ref[...] = y2.astype(y2_ref.dtype)
    y3 = gather_conv_relu(y2, g3_ref, w3_ref, b3_ref, y3_ref.shape[-1])    # (C3, M3)
    y3_ref[...] = y3.astype(y3_ref.dtype)


# --------------------------------------------------------------------------- #
# Host-side (trace-time) helpers: tiny layout glue + static gather matrices
# --------------------------------------------------------------------------- #
def _conv_out_hw(h, w, stride):
    return (h + 2 - 3) // stride + 1, (w + 2 - 3) // stride + 1


def _gather_matrix(h_in, w_in, stride):
    """Static per-image 0/1 matrix G (H_in*W_in, 9*H_out*W_out) such that
    (Y @ G)[c, t*M_out + m] = Y[c, src_t(m)]  (zero column where the tap hits padding)."""
    h_out, w_out = _conv_out_hw(h_in, w_in, stride)
    m_out = h_out * w_out
    g = np.zeros((h_in * w_in, 9 * m_out), np.float32)
    for kh in range(3):
        for kw in range(3):
            t = kh * 3 + kw
            for i in range(h_out):
                hi = stride * i + kh - 1
                if hi < 0 or hi >= h_in:
                    continue
                for j in range(w_out):
                    wi = stride * j + kw - 1
                    if wi < 0 or wi >= w_in:
                        continue
                    g[hi * w_in + wi, t * m_out + i * w_out + j] = 1.0
    return g, h_out, w_out


def _layer1_patches(x_nchw):
    """(N, 9*Cin, H*W) folded im2col for the stride-1 first layer (tiny input)."""
    n, cin, h, w = x_nchw.shape
    xp = jnp.pad(x_nchw, ((0, 0), (0, 0), (1, 1), (1, 1)))
    taps = [xp[:, :, kh:kh + h, kw:kw + w] for kh in range(3) for kw in range(3)]
    p = jnp.stack(taps, axis=1)                      # (N, 9, Cin, H, W)
    return p.reshape(n, 9 * cin, h * w)              # row index = t*Cin + c


def init_params(key, in_channels=3, out_channels=(16, 32, 64)):
    """Deterministic PyTorch-default-style (kaiming-uniform-ish) synthetic init (HWIO)."""
    params = []
    cin = in_channels
    for cout in out_channels:
        key, kw_, kb_ = jax.random.split(key, 3)
        bound = 1.0 / np.sqrt(cin * 9)
        w = jax.random.uniform(kw_, (3, 3, cin, cout), jnp.float32, -bound, bound)
        b = jax.random.uniform(kb_, (cout,), jnp.float32, -bound, bound)
        params.append((w, b))
        cin = cout
    return params


def tiny_backbone_forward(x_nchw, params):
    """Mirrors TinyBackbone.forward: returns a list of 3 ReLU'd feature maps (NCHW)."""
    (w1, b1), (w2, b2), (w3, b3) = params
    N, C0, H1, W1 = x_nchw.shape
    C1, C2, C3 = w1.shape[-1], w2.shape[-1], w3.shape[-1]

    # ---- layout glue (cheap, trace-time) ------------------------------------
    p1 = _layer1_patches(x_nchw)                                   # (N, 9*C0, M1)
    g2_np, H2, W2 = _gather_matrix(H1, W1, 2)
    g3_np, H3, W3 = _gather_matrix(H2, W2, 2)
    M1, M2, M3 = H1 * W1, H2 * W2, H3 * W3
    g2, g3 = jnp.asarray(g2_np), jnp.asarray(g3_np)

    w1f = w1.reshape(9 * C0, C1).T                                 # (C1, 9*C0)
    w2t = w2.reshape(9, C1, C2).transpose(0, 2, 1)                 # (9, C2, C1)
    w3t = w3.reshape(9, C2, C3).transpose(0, 2, 1)                 # (9, C3, C2)
    b1c, b2c, b3c = b1.reshape(C1, 1), b2.reshape(C2, 1), b3.reshape(C3, 1)

    def const(shape):        # DMA'd once (block index never changes)
        return pl.BlockSpec(shape, lambda n: (0,) * len(shape))

    def per_img(shape):      # one image per grid step, leading batch dim squeezed
        return pl.BlockSpec((None,) + shape, lambda n: (n,) + (0,) * len(shape))

    # ---- one fused pallas_call for the whole backbone -----------------------
    y1, y2, y3 = pl.pallas_call(
        _fused_backbone_kernel,
        grid=(N,),
        in_specs=[
            per_img((9 * C0, M1)),     # p1
            const((M1, 9 * M2)),       # g2
            const((M2, 9 * M3)),       # g3
            const((C1, 9 * C0)),       # w1f
            const((9, C2, C1)),        # w2t
            const((9, C3, C2)),        # w3t
            const((C1, 1)),            # b1
            const((C2, 1)),            # b2
            const((C3, 1)),            # b3
        ],
        out_specs=(
            per_img((C1, M1)),
            per_img((C2, M2)),
            per_img((C3, M3)),
        ),
        out_shape=(
            jax.ShapeDtypeStruct((N, C1, M1), x_nchw.dtype),
            jax.ShapeDtypeStruct((N, C2, M2), x_nchw.dtype),
            jax.ShapeDtypeStruct((N, C3, M3), x_nchw.dtype),
        ),
        compiler_params=pltpu.CompilerParams(
            dimension_semantics=("parallel",)),
    )(p1, g2, g3, w1f, w2t, w3t, b1c, b2c, b3c)

    # (N, C, H*W) -> NCHW to match PyTorch semantics (pure reshape, no transpose)
    return [
        y1.reshape(N, C1, H1, W1),
        y2.reshape(N, C2, H2, W2),
        y3.reshape(N, C3, H3, W3),
    ]


def _reference_forward(x_nchw, params):
    """Pure-JAX reference (lax.conv) for a correctness check."""
    x = x_nchw
    feats = []
    for (w, b), s in zip(params, (1, 2, 2)):
        y = jax.lax.conv_general_dilated(
            x, w, window_strides=(s, s), padding=((1, 1), (1, 1)),
            dimension_numbers=("NCHW", "HWIO", "NCHW"),
            precision=jax.lax.Precision.HIGHEST)
        y = jnp.maximum(y + b.reshape(1, -1, 1, 1), 0.0)
        feats.append(y)
        x = y
    return feats


if __name__ == "__main__":
    key = jax.random.PRNGKey(0)
    kx, kp = jax.random.split(key)
    x = jax.random.normal(kx, (2, 3, 16, 16), jnp.float32)   # NCHW, like PyTorch
    params = init_params(kp, in_channels=3, out_channels=(16, 32, 64))

    fwd = jax.jit(tiny_backbone_forward)
    feats = fwd(x, params)
    feats = [jax.block_until_ready(f) for f in feats]

    expected_shapes = [(2, 16, 16, 16), (2, 32, 8, 8), (2, 64, 4, 4)]
    assert [tuple(f.shape) for f in feats] == expected_shapes, \
        [tuple(f.shape) for f in feats]

    refs = _reference_forward(x, params)
    for f, r in zip(feats, refs):
        np.testing.assert_allclose(np.asarray(f), np.asarray(r), rtol=1e-3, atol=1e-3)

    print("KERNEL_OK")
</pallas_src>

<mosaic_0001>
module attributes {stable_mosaic.version = 11 : i64} {
  func.func @_fused_backbone_kernel(%arg0: i32, %arg1: memref<1x27x256xf32, #tpu.memory_space<vmem>>, %arg2: memref<256x576xf32, #tpu.memory_space<vmem>>, %arg3: memref<64x144xf32, #tpu.memory_space<vmem>>, %arg4: memref<16x27xf32, #tpu.memory_space<vmem>>, %arg5: memref<9x32x16xf32, #tpu.memory_space<vmem>>, %arg6: memref<9x64x32xf32, #tpu.memory_space<vmem>>, %arg7: memref<16x1xf32, #tpu.memory_space<vmem>>, %arg8: memref<32x1xf32, #tpu.memory_space<vmem>>, %arg9: memref<64x1xf32, #tpu.memory_space<vmem>>, %arg10: memref<1x16x256xf32, #tpu.memory_space<vmem>>, %arg11: memref<1x32x64xf32, #tpu.memory_space<vmem>>, %arg12: memref<1x64x16xf32, #tpu.memory_space<vmem>>) attributes {dimension_semantics = [#tpu.dimension_semantics<parallel>], iteration_bounds = array<i64: 2>, scalar_prefetch = 0 : i64, scratch_operands = 0 : i64, tpu.core_type = #tpu.core_type<tc>, window_params = [{transform_indices = @transform_0, window_bounds = array<i64: 1, 27, 256>}, {pipeline_mode = #tpu.pipeline_mode<synchronous>, transform_indices = @transform_1, window_bounds = array<i64: 256, 576>}, {pipeline_mode = #tpu.pipeline_mode<synchronous>, transform_indices = @transform_2, window_bounds = array<i64: 64, 144>}, {pipeline_mode = #tpu.pipeline_mode<synchronous>, transform_indices = @transform_3, window_bounds = array<i64: 16, 27>}, {pipeline_mode = #tpu.pipeline_mode<synchronous>, transform_indices = @transform_4, window_bounds = array<i64: 9, 32, 16>}, {pipeline_mode = #tpu.pipeline_mode<synchronous>, transform_indices = @transform_5, window_bounds = array<i64: 9, 64, 32>}, {pipeline_mode = #tpu.pipeline_mode<synchronous>, transform_indices = @transform_6, window_bounds = array<i64: 16, 1>}, {pipeline_mode = #tpu.pipeline_mode<synchronous>, transform_indices = @transform_7, window_bounds = array<i64: 32, 1>}, {pipeline_mode = #tpu.pipeline_mode<synchronous>, transform_indices = @transform_8, window_bounds = array<i64: 64, 1>}, {transform_indices = @transform_9, window_bounds = array<i64: 1, 16, 256>}, {transform_indices = @transform_10, window_bounds = array<i64: 1, 32, 64>}, {transform_indices = @transform_11, window_bounds = array<i64: 1, 64, 16>}]} {
    %c0 = arith.constant 0 : index
    %c0_0 = arith.constant 0 : index
    %0 = vector.load %arg4[%c0, %c0_0] : memref<16x27xf32, #tpu.memory_space<vmem>>, vector<16x27xf32>
    %c0_1 = arith.constant 0 : index
    %c0_2 = arith.constant 0 : index
    %1 = vector.load %arg7[%c0_1, %c0_2] : memref<16x1xf32, #tpu.memory_space<vmem>>, vector<16x1xf32>
    %c0_3 = arith.constant 0 : index
    %c0_4 = arith.constant 0 : index
    %c0_5 = arith.constant 0 : index
    %2 = vector.load %arg1[%c0_3, %c0_4, %c0_5] : memref<1x27x256xf32, #tpu.memory_space<vmem>>, vector<1x27x256xf32>
    %3 = vector.shape_cast %2 : vector<1x27x256xf32> to vector<27x256xf32>
    %cst = arith.constant dense<0.000000e+00> : vector<16x256xf32>
    %4 = tpu.matmul %0, %3, %cst {dimension_numbers = #tpu.dot_dimension_numbers<[1], [0], [0], [1], [0, 0, 1, 1], [], []>} : vector<16x27xf32>, vector<27x256xf32>, vector<16x256xf32> -> vector<16x256xf32>
    %5 = vector.broadcast %1 : vector<16x1xf32> to vector<16x256xf32>
    %6 = arith.addf %4, %5 : vector<16x256xf32>
    %cst_6 = arith.constant 0.000000e+00 : f32
    %7 = vector.broadcast %cst_6 : f32 to vector<16x256xf32>
    %8 = arith.maximumf %6, %7 : vector<16x256xf32>
    %c0_7 = arith.constant 0 : index
    %c0_8 = arith.constant 0 : index
    %c0_9 = arith.constant 0 : index
    %9 = vector.load %arg10[%c0_7, %c0_8, %c0_9] : memref<1x16x256xf32, #tpu.memory_space<vmem>>, vector<1x16x256xf32>
    %10 = vector.shape_cast %9 : vector<1x16x256xf32> to vector<16x256xf32>
    %11 = vector.shape_cast %8 : vector<16x256xf32> to vector<1x16x256xf32>
    tpu.vector_store %arg10[%c0_7, %c0_8, %c0_9], %11 {strides = array<i32>} : memref<1x16x256xf32, #tpu.memory_space<vmem>>, vector<1x16x256xf32>,
    %c0_10 = arith.constant 0 : index
    %c0_11 = arith.constant 0 : index
    %12 = vector.load %arg2[%c0_10, %c0_11] : memref<256x576xf32, #tpu.memory_space<vmem>>, vector<256x576xf32>
    %cst_12 = arith.constant dense<0.000000e+00> : vector<16x576xf32>
    %13 = tpu.matmul %8, %12, %cst_12 {dimension_numbers = #tpu.dot_dimension_numbers<[1], [0], [0], [1], [0, 0, 1, 1], [], []>} : vector<16x256xf32>, vector<256x576xf32>, vector<16x576xf32> -> vector<16x576xf32>
    %cst_13 = arith.constant 0.000000e+00 : f32
    %14 = vector.broadcast %cst_13 : f32 to vector<32x64xf32>
    %c0_14 = arith.constant 0 : index
    %c0_15 = arith.constant 0 : index
    %c0_16 = arith.constant 0 : index
    %15 = vector.load %arg5[%c0_14, %c0_15, %c0_16] : memref<9x32x16xf32, #tpu.memory_space<vmem>>, vector<1x32x16xf32>
    %16 = vector.shape_cast %15 : vector<1x32x16xf32> to vector<32x16xf32>
    %17 = vector.extract_strided_slice %13 {offsets = [0, 0], sizes = [16, 64], strides = [1, 1]} : vector<16x576xf32> to vector<16x64xf32>
    %cst_17 = arith.constant dense<0.000000e+00> : vector<32x64xf32>
    %18 = tpu.matmul %16, %17, %cst_17 {dimension_numbers = #tpu.dot_dimension_numbers<[1], [0], [0], [1], [0, 0, 1, 1], [], []>} : vector<32x16xf32>, vector<16x64xf32>, vector<32x64xf32> -> vector<32x64xf32>
    %19 = arith.addf %14, %18 : vector<32x64xf32>
    %c1 = arith.constant 1 : index
    %c0_18 = arith.constant 0 : index
    %c0_19 = arith.constant 0 : index
    %20 = vector.load %arg5[%c1, %c0_18, %c0_19] : memref<9x32x16xf32, #tpu.memory_space<vmem>>, vector<1x32x16xf32>
    %21 = vector.shape_cast %20 : vector<1x32x16xf32> to vector<32x16xf32>
    %22 = vector.extract_strided_slice %13 {offsets = [0, 64], sizes = [16, 64], strides = [1, 1]} : vector<16x576xf32> to vector<16x64xf32>
    %cst_20 = arith.constant dense<0.000000e+00> : vector<32x64xf32>
    %23 = tpu.matmul %21, %22, %cst_20 {dimension_numbers = #tpu.dot_dimension_numbers<[1], [0], [0], [1], [0, 0, 1, 1], [], []>} : vector<32x16xf32>, vector<16x64xf32>, vector<32x64xf32> -> vector<32x64xf32>
    %24 = arith.addf %19, %23 : vector<32x64xf32>
    %c2 = arith.constant 2 : index
    %c0_21 = arith.constant 0 : index
    %c0_22 = arith.constant 0 : index
    %25 = vector.load %arg5[%c2, %c0_21, %c0_22] : memref<9x32x16xf32, #tpu.memory_space<vmem>>, vector<1x32x16xf32>
    %26 = vector.shape_cast %25 : vector<1x32x16xf32> to vector<32x16xf32>
    %27 = vector.extract_strided_slice %13 {offsets = [0, 128], sizes = [16, 64], strides = [1, 1]} : vector<16x576xf32> to vector<16x64xf32>
    %cst_23 = arith.constant dense<0.000000e+00> : vector<32x64xf32>
    %28 = tpu.matmul %26, %27, %cst_23 {dimension_numbers = #tpu.dot_dimension_numbers<[1], [0], [0], [1], [0, 0, 1, 1], [], []>} : vector<32x16xf32>, vector<16x64xf32>, vector<32x64xf32> -> vector<32x64xf32>
    %29 = arith.addf %24, %28 : vector<32x64xf32>
    %c3 = arith.constant 3 : index
    %c0_24 = arith.constant 0 : index
    %c0_25 = arith.constant 0 : index
    %30 = vector.load %arg5[%c3, %c0_24, %c0_25] : memref<9x32x16xf32, #tpu.memory_space<vmem>>, vector<1x32x16xf32>
    %31 = vector.shape_cast %30 : vector<1x32x16xf32> to vector<32x16xf32>
    %32 = vector.extract_strided_slice %13 {offsets = [0, 192], sizes = [16, 64], strides = [1, 1]} : vector<16x576xf32> to vector<16x64xf32>
    %cst_26 = arith.constant dense<0.000000e+00> : vector<32x64xf32>
    %33 = tpu.matmul %31, %32, %cst_26 {dimension_numbers = #tpu.dot_dimension_numbers<[1], [0], [0], [1], [0, 0, 1, 1], [], []>} : vector<32x16xf32>, vector<16x64xf32>, vector<32x64xf32> -> vector<32x64xf32>
    %34 = arith.addf %29, %33 : vector<32x64xf32>
    %c4 = arith.constant 4 : index
    %c0_27 = arith.constant 0 : index
    %c0_28 = arith.constant 0 : index
    %35 = vector.load %arg5[%c4, %c0_27, %c0_28] : memref<9x32x16xf32, #tpu.memory_space<vmem>>, vector<1x32x16xf32>
    %36 = vector.shape_cast %35 : vector<1x32x16xf32> to vector<32x16xf32>
    %37 = vector.extract_strided_slice %13 {offsets = [0, 256], sizes = [16, 64], strides = [1, 1]} : vector<16x576xf32> to vector<16x64xf32>
    %cst_29 = arith.constant dense<0.000000e+00> : vector<32x64xf32>
    %38 = tpu.matmul %36, %37, %cst_29 {dimension_numbers = #tpu.dot_dimension_numbers<[1], [0], [0], [1], [0, 0, 1, 1], [], []>} : vector<32x16xf32>, vector<16x64xf32>, vector<32x64xf32> -> vector<32x64xf32>
    %39 = arith.addf %34, %38 : vector<32x64xf32>
    %c5 = arith.constant 5 : index
    %c0_30 = arith.constant 0 : index
    %c0_31 = arith.constant 0 : index
    %40 = vector.load %arg5[%c5, %c0_30, %c0_31] : memref<9x32x16xf32, #tpu.memory_space<vmem>>, vector<1x32x16xf32>
    %41 = vector.shape_cast %40 : vector<1x32x16xf32> to vector<32x16xf32>
    %42 = vector.extract_strided_slice %13 {offsets = [0, 320], sizes = [16, 64], strides = [1, 1]} : vector<16x576xf32> to vector<16x64xf32>
    %cst_32 = arith.constant dense<0.000000e+00> : vector<32x64xf32>
    %43 = tpu.matmul %41, %42, %cst_32 {dimension_numbers = #tpu.dot_dimension_numbers<[1], [0], [0], [1], [0, 0, 1, 1], [], []>} : vector<32x16xf32>, vector<16x64xf32>, vector<32x64xf32> -> vector<32x64xf32>
    %44 = arith.addf %39, %43 : vector<32x64xf32>
    %c6 = arith.constant 6 : index
    %c0_33 = arith.constant 0 : index
    %c0_34 = arith.constant 0 : index
    %45 = vector.load %arg5[%c6, %c0_33, %c0_34] : memref<9x32x16xf32, #tpu.memory_space<vmem>>, vector<1x32x16xf32>
    %46 = vector.shape_cast %45 : vector<1x32x16xf32> to vector<32x16xf32>
    %47 = vector.extract_strided_slice %13 {offsets = [0, 384], sizes = [16, 64], strides = [1, 1]} : vector<16x576xf32> to vector<16x64xf32>
    %cst_35 = arith.constant dense<0.000000e+00> : vector<32x64xf32>
    %48 = tpu.matmul %46, %47, %cst_35 {dimension_numbers = #tpu.dot_dimension_numbers<[1], [0], [0], [1], [0, 0, 1, 1], [], []>} : vector<32x16xf32>, vector<16x64xf32>, vector<32x64xf32> -> vector<32x64xf32>
    %49 = arith.addf %44, %48 : vector<32x64xf32>
    %c7 = arith.constant 7 : index
    %c0_36 = arith.constant 0 : index
    %c0_37 = arith.constant 0 : index
    %50 = vector.load %arg5[%c7, %c0_36, %c0_37] : memref<9x32x16xf32, #tpu.memory_space<vmem>>, vector<1x32x16xf32>
    %51 = vector.shape_cast %50 : vector<1x32x16xf32> to vector<32x16xf32>
    %52 = vector.extract_strided_slice %13 {offsets = [0, 448], sizes = [16, 64], strides = [1, 1]} : vector<16x576xf32> to vector<16x64xf32>
    %cst_38 = arith.constant dense<0.000000e+00> : vector<32x64xf32>
    %53 = tpu.matmul %51, %52, %cst_38 {dimension_numbers = #tpu.dot_dimension_numbers<[1], [0], [0], [1], [0, 0, 1, 1], [], []>} : vector<32x16xf32>, vector<16x64xf32>, vector<32x64xf32> -> vector<32x64xf32>
    %54 = arith.addf %49, %53 : vector<32x64xf32>
    %c8 = arith.constant 8 : index
    %c0_39 = arith.constant 0 : index
    %c0_40 = arith.constant 0 : index
    %55 = vector.load %arg5[%c8, %c0_39, %c0_40] : memref<9x32x16xf32, #tpu.memory_space<vmem>>, vector<1x32x16xf32>
    %56 = vector.shape_cast %55 : vector<1x32x16xf32> to vector<32x16xf32>
    %57 = vector.extract_strided_slice %13 {offsets = [0, 512], sizes = [16, 64], strides = [1, 1]} : vector<16x576xf32> to vector<16x64xf32>
    %cst_41 = arith.constant dense<0.000000e+00> : vector<32x64xf32>
    %58 = tpu.matmul %56, %57, %cst_41 {dimension_numbers = #tpu.dot_dimension_numbers<[1], [0], [0], [1], [0, 0, 1, 1], [], []>} : vector<32x16xf32>, vector<16x64xf32>, vector<32x64xf32> -> vector<32x64xf32>
    %59 = arith.addf %54, %58 : vector<32x64xf32>
    %c0_42 = arith.constant 0 : index
    %c0_43 = arith.constant 0 : index
    %60 = vector.load %arg8[%c0_42, %c0_43] : memref<32x1xf32, #tpu.memory_space<vmem>>, vector<32x1xf32>
    %61 = vector.broadcast %60 : vector<32x1xf32> to vector<32x64xf32>
    %62 = arith.addf %59, %61 : vector<32x64xf32>
    %cst_44 = arith.constant 0.000000e+00 : f32
    %63 = vector.broadcast %cst_44 : f32 to vector<32x64xf32>
    %64 = arith.maximumf %62, %63 : vector<32x64xf32>
    %c0_45 = arith.constant 0 : index
    %c0_46 = arith.constant 0 : index
    %c0_47 = arith.constant 0 : index
    %65 = vector.load %arg11[%c0_45, %c0_46, %c0_47] : memref<1x32x64xf32, #tpu.memory_space<vmem>>, vector<1x32x64xf32>
    %66 = vector.shape_cast %65 : vector<1x32x64xf32> to vector<32x64xf32>
    %67 = vector.shape_cast %64 : vector<32x64xf32> to vector<1x32x64xf32>
    tpu.vector_store %arg11[%c0_45, %c0_46, %c0_47], %67 {strides = array<i32>} : memref<1x32x64xf32, #tpu.memory_space<vmem>>, vector<1x32x64xf32>,
    %c0_48 = arith.constant 0 : index
    %c0_49 = arith.constant 0 : index
    %68 = vector.load %arg3[%c0_48, %c0_49] : memref<64x144xf32, #tpu.memory_space<vmem>>, vector<64x144xf32>
    %cst_50 = arith.constant dense<0.000000e+00> : vector<32x144xf32>
    %69 = tpu.matmul %64, %68, %cst_50 {dimension_numbers = #tpu.dot_dimension_numbers<[1], [0], [0], [1], [0, 0, 1, 1], [], []>} : vector<32x64xf32>, vector<64x144xf32>, vector<32x144xf32> -> vector<32x144xf32>
    %cst_51 = arith.constant 0.000000e+00 : f32
    %70 = vector.broadcast %cst_51 : f32 to vector<64x16xf32>
    %c0_52 = arith.constant 0 : index
    %c0_53 = arith.constant 0 : index
    %c0_54 = arith.constant 0 : index
    %71 = vector.load %arg6[%c0_52, %c0_53, %c0_54] : memref<9x64x32xf32, #tpu.memory_space<vmem>>, vector<1x64x32xf32>
    %72 = vector.shape_cast %71 : vector<1x64x32xf32> to vector<64x32xf32>
    %73 = vector.extract_strided_slice %69 {offsets = [0, 0], sizes = [32, 16], strides = [1, 1]} : vector<32x144xf32> to vector<32x16xf32>
    %cst_55 = arith.constant dense<0.000000e+00> : vector<64x16xf32>
    %74 = tpu.matmul %72, %73, %cst_55 {dimension_numbers = #tpu.dot_dimension_numbers<[1], [0], [0], [1], [0, 0, 1, 1], [], []>} : vector<64x32xf32>, vector<32x16xf32>, vector<64x16xf32> -> vector<64x16xf32>
    %75 = arith.addf %70, %74 : vector<64x16xf32>
    %c1_56 = arith.constant 1 : index
    %c0_57 = arith.constant 0 : index
    %c0_58 = arith.constant 0 : index
    %76 = vector.load %arg6[%c1_56, %c0_57, %c0_58] : memref<9x64x32xf32, #tpu.memory_space<vmem>>, vector<1x64x32xf32>
    %77 = vector.shape_cast %76 : vector<1x64x32xf32> to vector<64x32xf32>
    %78 = vector.extract_strided_slice %69 {offsets = [0, 16], sizes = [32, 16], strides = [1, 1]} : vector<32x144xf32> to vector<32x16xf32>
    %cst_59 = arith.constant dense<0.000000e+00> : vector<64x16xf32>
    %79 = tpu.matmul %77, %78, %cst_59 {dimension_numbers = #tpu.dot_dimension_numbers<[1], [0], [0], [1], [0, 0, 1, 1], [], []>} : vector<64x32xf32>, vector<32x16xf32>, vector<64x16xf32> -> vector<64x16xf32>
    %80 = arith.addf %75, %79 : vector<64x16xf32>
    %c2_60 = arith.constant 2 : index
    %c0_61 = arith.constant 0 : index
    %c0_62 = arith.constant 0 : index
    %81 = vector.load %arg6[%c2_60, %c0_61, %c0_62] : memref<9x64x32xf32, #tpu.memory_space<vmem>>, vector<1x64x32xf32>
    %82 = vector.shape_cast %81 : vector<1x64x32xf32> to vector<64x32xf32>
    %83 = vector.extract_strided_slice %69 {offsets = [0, 32], sizes = [32, 16], strides = [1, 1]} : vector<32x144xf32> to vector<32x16xf32>
    %cst_63 = arith.constant dense<0.000000e+00> : vector<64x16xf32>
    %84 = tpu.matmul %82, %83, %cst_63 {dimension_numbers = #tpu.dot_dimension_numbers<[1], [0], [0], [1], [0, 0, 1, 1], [], []>} : vector<64x32xf32>, vector<32x16xf32>, vector<64x16xf32> -> vector<64x16xf32>
    %85 = arith.addf %80, %84 : vector<64x16xf32>
    %c3_64 = arith.constant 3 : index
    %c0_65 = arith.constant 0 : index
    %c0_66 = arith.constant 0 : index
    %86 = vector.load %arg6[%c3_64, %c0_65, %c0_66] : memref<9x64x32xf32, #tpu.memory_space<vmem>>, vector<1x64x32xf32>
    %87 = vector.shape_cast %86 : vector<1x64x32xf32> to vector<64x32xf32>
    %88 = vector.extract_strided_slice %69 {offsets = [0, 48], sizes = [32, 16], strides = [1, 1]} : vector<32x144xf32> to vector<32x16xf32>
    %cst_67 = arith.constant dense<0.000000e+00> : vector<64x16xf32>
    %89 = tpu.matmul %87, %88, %cst_67 {dimension_numbers = #tpu.dot_dimension_numbers<[1], [0], [0], [1], [0, 0, 1, 1], [], []>} : vector<64x32xf32>, vector<32x16xf32>, vector<64x16xf32> -> vector<64x16xf32>
    %90 = arith.addf %85, %89 : vector<64x16xf32>
    %c4_68 = arith.constant 4 : index
    %c0_69 = arith.constant 0 : index
    %c0_70 = arith.constant 0 : index
    %91 = vector.load %arg6[%c4_68, %c0_69, %c0_70] : memref<9x64x32xf32, #tpu.memory_space<vmem>>, vector<1x64x32xf32>
    %92 = vector.shape_cast %91 : vector<1x64x32xf32> to vector<64x32xf32>
    %93 = vector.extract_strided_slice %69 {offsets = [0, 64], sizes = [32, 16], strides = [1, 1]} : vector<32x144xf32> to vector<32x16xf32>
    %cst_71 = arith.constant dense<0.000000e+00> : vector<64x16xf32>
    %94 = tpu.matmul %92, %93, %cst_71 {dimension_numbers = #tpu.dot_dimension_numbers<[1], [0], [0], [1], [0, 0, 1, 1], [], []>} : vector<64x32xf32>, vector<32x16xf32>, vector<64x16xf32> -> vector<64x16xf32>
    %95 = arith.addf %90, %94 : vector<64x16xf32>
    %c5_72 = arith.constant 5 : index
    %c0_73 = arith.constant 0 : index
    %c0_74 = arith.constant 0 : index
    %96 = vector.load %arg6[%c5_72, %c0_73, %c0_74] : memref<9x64x32xf32, #tpu.memory_space<vmem>>, vector<1x64x32xf32>
    %97 = vector.shape_cast %96 : vector<1x64x32xf32> to vector<64x32xf32>
    %98 = vector.extract_strided_slice %69 {offsets = [0, 80], sizes = [32, 16], strides = [1, 1]} : vector<32x144xf32> to vector<32x16xf32>
    %cst_75 = arith.constant dense<0.000000e+00> : vector<64x16xf32>
    %99 = tpu.matmul %97, %98, %cst_75 {dimension_numbers = #tpu.dot_dimension_numbers<[1], [0], [0], [1], [0, 0, 1, 1], [], []>} : vector<64x32xf32>, vector<32x16xf32>, vector<64x16xf32> -> vector<64x16xf32>
    %100 = arith.addf %95, %99 : vector<64x16xf32>
    %c6_76 = arith.constant 6 : index
    %c0_77 = arith.constant 0 : index
    %c0_78 = arith.constant 0 : index
    %101 = vector.load %arg6[%c6_76, %c0_77, %c0_78] : memref<9x64x32xf32, #tpu.memory_space<vmem>>, vector<1x64x32xf32>
    %102 = vector.shape_cast %101 : vector<1x64x32xf32> to vector<64x32xf32>
    %103 = vector.extract_strided_slice %69 {offsets = [0, 96], sizes = [32, 16], strides = [1, 1]} : vector<32x144xf32> to vector<32x16xf32>
    %cst_79 = arith.constant dense<0.000000e+00> : vector<64x16xf32>
    %104 = tpu.matmul %102, %103, %cst_79 {dimension_numbers = #tpu.dot_dimension_numbers<[1], [0], [0], [1], [0, 0, 1, 1], [], []>} : vector<64x32xf32>, vector<32x16xf32>, vector<64x16xf32> -> vector<64x16xf32>
    %105 = arith.addf %100, %104 : vector<64x16xf32>
    %c7_80 = arith.constant 7 : index
    %c0_81 = arith.constant 0 : index
    %c0_82 = arith.constant 0 : index
    %106 = vector.load %arg6[%c7_80, %c0_81, %c0_82] : memref<9x64x32xf32, #tpu.memory_space<vmem>>, vector<1x64x32xf32>
    %107 = vector.shape_cast %106 : vector<1x64x32xf32> to vector<64x32xf32>
    %108 = vector.extract_strided_slice %69 {offsets = [0, 112], sizes = [32, 16], strides = [1, 1]} : vector<32x144xf32> to vector<32x16xf32>
    %cst_83 = arith.constant dense<0.000000e+00> : vector<64x16xf32>
    %109 = tpu.matmul %107, %108, %cst_83 {dimension_numbers = #tpu.dot_dimension_numbers<[1], [0], [0], [1], [0, 0, 1, 1], [], []>} : vector<64x32xf32>, vector<32x16xf32>, vector<64x16xf32> -> vector<64x16xf32>
    %110 = arith.addf %105, %109 : vector<64x16xf32>
    %c8_84 = arith.constant 8 : index
    %c0_85 = arith.constant 0 : index
    %c0_86 = arith.constant 0 : index
    %111 = vector.load %arg6[%c8_84, %c0_85, %c0_86] : memref<9x64x32xf32, #tpu.memory_space<vmem>>, vector<1x64x32xf32>
    %112 = vector.shape_cast %111 : vector<1x64x32xf32> to vector<64x32xf32>
    %113 = vector.extract_strided_slice %69 {offsets = [0, 128], sizes = [32, 16], strides = [1, 1]} : vector<32x144xf32> to vector<32x16xf32>
    %cst_87 = arith.constant dense<0.000000e+00> : vector<64x16xf32>
    %114 = tpu.matmul %112, %113, %cst_87 {dimension_numbers = #tpu.dot_dimension_numbers<[1], [0], [0], [1], [0, 0, 1, 1], [], []>} : vector<64x32xf32>, vector<32x16xf32>, vector<64x16xf32> -> vector<64x16xf32>
    %115 = arith.addf %110, %114 : vector<64x16xf32>
    %c0_88 = arith.constant 0 : index
    %c0_89 = arith.constant 0 : index
    %116 = vector.load %arg9[%c0_88, %c0_89] : memref<64x1xf32, #tpu.memory_space<vmem>>, vector<64x1xf32>
    %117 = vector.broadcast %116 : vector<64x1xf32> to vector<64x16xf32>
    %118 = arith.addf %115, %117 : vector<64x16xf32>
    %cst_90 = arith.constant 0.000000e+00 : f32
    %119 = vector.broadcast %cst_90 : f32 to vector<64x16xf32>
    %120 = arith.maximumf %118, %119 : vector<64x16xf32>
    %c0_91 = arith.constant 0 : index
    %c0_92 = arith.constant 0 : index
    %c0_93 = arith.constant 0 : index
    %121 = vector.load %arg12[%c0_91, %c0_92, %c0_93] : memref<1x64x16xf32, #tpu.memory_space<vmem>>, vector<1x64x16xf32>
    %122 = vector.shape_cast %121 : vector<1x64x16xf32> to vector<64x16xf32>
    %123 = vector.shape_cast %120 : vector<64x16xf32> to vector<1x64x16xf32>
    tpu.vector_store %arg12[%c0_91, %c0_92, %c0_93], %123 {strides = array<i32>} : memref<1x64x16xf32, #tpu.memory_space<vmem>>, vector<1x64x16xf32>,
    return
  }
  func.func @transform_0(%arg0: i32) -> (i32, i32, i32) {
    %c0_i32 = arith.constant 0 : i32
    %c0_i32_0 = arith.constant 0 : i32
    %c0_i32_1 = arith.constant 0 : i32
    return %arg0, %c0_i32, %c0_i32_0 : i32, i32, i32
  }
  func.func @transform_1(%arg0: i32) -> (i32, i32) {
    %c0_i32 = arith.constant 0 : i32
    %c0_i32_0 = arith.constant 0 : i32
    %c0_i32_1 = arith.constant 0 : i32
    return %c0_i32, %c0_i32_0 : i32, i32
  }
  func.func @transform_2(%arg0: i32) -> (i32, i32) {
    %c0_i32 = arith.constant 0 : i32
    %c0_i32_0 = arith.constant 0 : i32
    %c0_i32_1 = arith.constant 0 : i32
    return %c0_i32, %c0_i32_0 : i32, i32
  }
  func.func @transform_3(%arg0: i32) -> (i32, i32) {
    %c0_i32 = arith.constant 0 : i32
    %c0_i32_0 = arith.constant 0 : i32
    %c0_i32_1 = arith.constant 0 : i32
    return %c0_i32, %c0_i32_0 : i32, i32
  }
  func.func @transform_4(%arg0: i32) -> (i32, i32, i32) {
    %c0_i32 = arith.constant 0 : i32
    %c0_i32_0 = arith.constant 0 : i32
    %c0_i32_1 = arith.constant 0 : i32
    %c0_i32_2 = arith.constant 0 : i32
    return %c0_i32, %c0_i32_0, %c0_i32_1 : i32, i32, i32
  }
  func.func @transform_5(%arg0: i32) -> (i32, i32, i32) {
    %c0_i32 = arith.constant 0 : i32
    %c0_i32_0 = arith.constant 0 : i32
    %c0_i32_1 = arith.constant 0 : i32
    %c0_i32_2 = arith.constant 0 : i32
    return %c0_i32, %c0_i32_0, %c0_i32_1 : i32, i32, i32
  }
  func.func @transform_6(%arg0: i32) -> (i32, i32) {
    %c0_i32 = arith.constant 0 : i32
    %c0_i32_0 = arith.constant 0 : i32
    %c0_i32_1 = arith.constant 0 : i32
    return %c0_i32, %c0_i32_0 : i32, i32
  }
  func.func @transform_7(%arg0: i32) -> (i32, i32) {
    %c0_i32 = arith.constant 0 : i32
    %c0_i32_0 = arith.constant 0 : i32
    %c0_i32_1 = arith.constant 0 : i32
    return %c0_i32, %c0_i32_0 : i32, i32
  }
  func.func @transform_8(%arg0: i32) -> (i32, i32) {
    %c0_i32 = arith.constant 0 : i32
    %c0_i32_0 = arith.constant 0 : i32
    %c0_i32_1 = arith.constant 0 : i32
    return %c0_i32, %c0_i32_0 : i32, i32
  }
  func.func @transform_9(%arg0: i32) -> (i32, i32, i32) {
    %c0_i32 = arith.constant 0 : i32
    %c0_i32_0 = arith.constant 0 : i32
    %c0_i32_1 = arith.constant 0 : i32
    return %arg0, %c0_i32, %c0_i32_0 : i32, i32, i32
  }
  func.func @transform_10(%arg0: i32) -> (i32, i32, i32) {
    %c0_i32 = arith.constant 0 : i32
    %c0_i32_0 = arith.constant 0 : i32
    %c0_i32_1 = arith.constant 0 : i32
    return %arg0, %c0_i32, %c0_i32_0 : i32, i32, i32
  }
  func.func @transform_11(%arg0: i32) -> (i32, i32, i32) {
    %c0_i32 = arith.constant 0 : i32
    %c0_i32_0 = arith.constant 0 : i32
    %c0_i32_1 = arith.constant 0 : i32
    return %arg0, %c0_i32, %c0_i32_0 : i32, i32, i32
  }
}

</mosaic_0001>

<llo_original>
// kernel: tiny_backbone_forward.1
$region0: #{tiny_backbone_forward.1}
  #allocation0 [shape = 'u32[]', space=smem, size = 0x4, offset = 0x4, fixed_abs, tag = 'smem constant byte address 0x4 - core index']
  #allocation1 [shape = 'u32[144,128]{1,0:T(1,128)}', space=vmem, size = 0x12000, scoped, tag = 'internal scratch']
  %s0 = inlined_call_operand.vmem [shape: f32[2,27,256], index: 0, kind: input, shape index: {}]
  %s1 = inlined_call_operand.vmem [shape: f32[256,576], index: 1, kind: input, shape index: {}]
  %s2 = inlined_call_operand.vmem [shape: f32[64,144], index: 2, kind: input, shape index: {}]
  %s3 = inlined_call_operand.vmem [shape: f32[16,27], index: 3, kind: input, shape index: {}]
  %s4 = inlined_call_operand.vmem [shape: f32[9,32,16], index: 4, kind: input, shape index: {}]
  %s5 = inlined_call_operand.vmem [shape: f32[9,64,32], index: 5, kind: input, shape index: {}]
  %s6 = inlined_call_operand.vmem [shape: f32[16,1], index: 6, kind: input, shape index: {}]
  %s7 = inlined_call_operand.vmem [shape: f32[32,1], index: 7, kind: input, shape index: {}]
  %s8 = inlined_call_operand.vmem [shape: f32[64,1], index: 8, kind: input, shape index: {}]
  %s9 = inlined_call_operand.vmem [shape: f32[2,16,256], index: 9, kind: output, shape index: {0}]
  %s10 = inlined_call_operand.vmem [shape: f32[2,32,64], index: 10, kind: output, shape index: {1}]
  %s11 = inlined_call_operand.vmem [shape: f32[2,64,16], index: 11, kind: output, shape index: {2}]
  %12 = xla_tuple %s9, %s10, %s11
  %s13 = sld [smem:[#allocation0]]
  $region85: #{tiny_backbone_forward.1} parent=0
    _
  %s15 = ssub.s32 1, %s13
  %s16 = scalar_select 0, %s15, %s13
  loop: start=0, step=1, limit=4
  $region2: #{tiny_backbone_forward.1} parent=0 // loop_pre_header
    _
  $region3: #{tiny_backbone_forward.1} parent=0 // loop_header
    %s18 = sphi 0, %s22
    %p19 = scmp.ge.s32.totalorder %s18, 4
    %s28 = sphi 0, %s30
    %s31 = sphi 0, %s28
    %s32 = sphi 0, %s31
    %s48 = sphi 0, %s32
    %s52 = sphi 0, %s52
    %s54 = sphi 0, %s52
    %s55 = sphi 0, %s54
    %s69 = sphi 0, %s55
    %s73 = sphi 0, %s73
    %s75 = sphi 0, %s73
    %s76 = sphi 0, %s75
    %s90 = sphi 0, %s76
    %s94 = sphi 0, %s94
    %s96 = sphi 0, %s94
    %s97 = sphi 0, %s96
    %s111 = sphi 0, %s97
    %s115 = sphi 0, %s115
    %s117 = sphi 0, %s115
    %s118 = sphi 0, %s117
    %s132 = sphi 0, %s118
    %s136 = sphi 0, %s136
    %s138 = sphi 0, %s136
    %s139 = sphi 0, %s138
    %s153 = sphi 0, %s139
    %s157 = sphi 0, %s157
    %s159 = sphi 0, %s157
    %s160 = sphi 0, %s159
    %s174 = sphi 0, %s160
    %s178 = sphi 0, %s178
    %s180 = sphi 0, %s178
    %s181 = sphi 0, %s180
    %s195 = sphi 0, %s181
    %s199 = sphi 0, %s199
    %s201 = sphi 0, %s199
    %s202 = sphi 0, %s201
    %s216 = sphi 0, %s202
    %s222 = sphi 0, %s224
    %s225 = sphi 0, %s222
    %s226 = sphi 0, %s225
    %s242 = sphi 0, %s226
    %s248 = sphi 0, %s250
    %s251 = sphi 0, %s248
    %s252 = sphi 0, %s251
    %s268 = sphi 0, %s252
    %s274 = sphi 0, %s276
    %s277 = sphi 0, %s274
    %s278 = sphi 0, %s277
    %s294 = sphi 0, %s278
  $region4: #{tiny_backbone_forward.1} parent=0 // loop_header_branch
    %21 = sbr.rel (%p19) target = $region8
  $region5: #{tiny_backbone_forward.1} parent=0 // loop_body
    %s23 = ssub.s32 %s18, 1
    %s24 = ssub.s32 %s18, 2
    %s25 = sadd.s32 %s18, 1
    %s26 = ssub.s32 %s18, %s25
    %p27 = scmp.eq.s32.totalorder %s26, 0
    %s29 = sadd.s32 %s28, 1
    %s30 = scalar_select %p27, %s28, %s29
    %p33 = pneg %p27
    %p34 = scmp.eq.s32.totalorder %s18, 1
    %p35 = por %p33, %p34
    %p36 = scmp.ne.s32.totalorder %s28, %s31
    %p37 = scmp.eq.s32.totalorder %s18, 0
    %p38 = por %p36, %p37
    %p39 = scmp.ne.s32.totalorder %s28, %s31
    %p40 = scmp.eq.s32.totalorder %s23, 1
    %p41 = por %p39, %p40
    %p42 = scmp.ne.s32.totalorder %s31, %s32
    %p43 = scmp.eq.s32.totalorder %s23, 0
    %p44 = por %p42, %p43
    %p45 = scmp.ne.s32.totalorder %s31, %s32
    %p46 = scmp.eq.s32.totalorder %s24, 1
    %p47 = por %p45, %p46
    %p49 = scmp.ne.s32.totalorder %s32, %s48
    %p50 = scmp.eq.s32.totalorder %s24, 0
    %p51 = por %p49, %p50
    %s53 = sadd.s32 %s52, 1
    %p56 = scmp.eq.s32.totalorder %s18, 1
    %p57 = scmp.ne.s32.totalorder %s52, %s54
    %p58 = scmp.eq.s32.totalorder %s18, 0
    %p59 = por %p57, %p58
    %p60 = scmp.ne.s32.totalorder %s52, %s54
    %p61 = scmp.eq.s32.totalorder %s23, 1
    %p62 = por %p60, %p61
    %p63 = scmp.ne.s32.totalorder %s54, %s55
    %p64 = scmp.eq.s32.totalorder %s23, 0
    %p65 = por %p63, %p64
    %p66 = scmp.ne.s32.totalorder %s54, %s55
    %p67 = scmp.eq.s32.totalorder %s24, 1
    %p68 = por %p66, %p67
    %p70 = scmp.ne.s32.totalorder %s55, %s69
    %p71 = scmp.eq.s32.totalorder %s24, 0
    %p72 = por %p70, %p71
    %s74 = sadd.s32 %s73, 1
    %p77 = scmp.eq.s32.totalorder %s18, 1
    %p78 = scmp.ne.s32.totalorder %s73, %s75
    %p79 = scmp.eq.s32.totalorder %s18, 0
    %p80 = por %p78, %p79
    %p81 = scmp.ne.s32.totalorder %s73, %s75
    %p82 = scmp.eq.s32.totalorder %s23, 1
    %p83 = por %p81, %p82
    %p84 = scmp.ne.s32.totalorder %s75, %s76
    %p85 = scmp.eq.s32.totalorder %s23, 0
    %p86 = por %p84, %p85
    %p87 = scmp.ne.s32.totalorder %s75, %s76
    %p88 = scmp.eq.s32.totalorder %s24, 1
    %p89 = por %p87, %p88
    %p91 = scmp.ne.s32.totalorder %s76, %s90
    %p92 = scmp.eq.s32.totalorder %s24, 0
    %p93 = por %p91, %p92
    %s95 = sadd.s32 %s94, 1
    %p98 = scmp.eq.s32.totalorder %s18, 1
    %p99 = scmp.ne.s32.totalorder %s94, %s96
    %p100 = scmp.eq.s32.totalorder %s18, 0
    %p101 = por %p99, %p100
    %p102 = scmp.ne.s32.totalorder %s94, %s96
    %p103 = scmp.eq.s32.totalorder %s23, 1
    %p104 = por %p102, %p103
    %p105 = scmp.ne.s32.totalorder %s96, %s97
    %p106 = scmp.eq.s32.totalorder %s23, 0
    %p107 = por %p105, %p106
    %p108 = scmp.ne.s32.totalorder %s96, %s97
    %p109 = scmp.eq.s32.totalorder %s24, 1
    %p110 = por %p108, %p109
    %p112 = scmp.ne.s32.totalorder %s97, %s111
    %p113 = scmp.eq.s32.totalorder %s24, 0
    %p114 = por %p112, %p113
    %s116 = sadd.s32 %s115, 1
    %p119 = scmp.eq.s32.totalorder %s18, 1
    %p120 = scmp.ne.s32.totalorder %s115, %s117
    %p121 = scmp.eq.s32.totalorder %s18, 0
    %p122 = por %p120, %p121
    %p123 = scmp.ne.s32.totalorder %s115, %s117
    %p124 = scmp.eq.s32.totalorder %s23, 1
    %p125 = por %p123, %p124
    %p126 = scmp.ne.s32.totalorder %s117, %s118
    %p127 = scmp.eq.s32.totalorder %s23, 0
    %p128 = por %p126, %p127
    %p129 = scmp.ne.s32.totalorder %s117, %s118
    %p130 = scmp.eq.s32.totalorder %s24, 1
    %p131 = por %p129, %p130
    %p133 = scmp.ne.s32.totalorder %s118, %s132
    %p134 = scmp.eq.s32.totalorder %s24, 0
    %p135 = por %p133, %p134
    %s137 = sadd.s32 %s136, 1
    %p140 = scmp.eq.s32.totalorder %s18, 1
    %p141 = scmp.ne.s32.totalorder %s136, %s138
    %p142 = scmp.eq.s32.totalorder %s18, 0
    %p143 = por %p141, %p142
    %p144 = scmp.ne.s32.totalorder %s136, %s138
    %p145 = scmp.eq.s32.totalorder %s23, 1
    %p146 = por %p144, %p145
    %p147 = scmp.ne.s32.totalorder %s138, %s139
    %p148 = scmp.eq.s32.totalorder %s23, 0
    %p149 = por %p147, %p148
    %p150 = scmp.ne.s32.totalorder %s138, %s139
    %p151 = scmp.eq.s32.totalorder %s24, 1
    %p152 = por %p150, %p151
    %p154 = scmp.ne.s32.totalorder %s139, %s153
    %p155 = scmp.eq.s32.totalorder %s24, 0
    %p156 = por %p154, %p155
    %s158 = sadd.s32 %s157, 1
    %p161 = scmp.eq.s32.totalorder %s18, 1
    %p162 = scmp.ne.s32.totalorder %s157, %s159
    %p163 = scmp.eq.s32.totalorder %s18, 0
    %p164 = por %p162, %p163
    %p165 = scmp.ne.s32.totalorder %s157, %s159
    %p166 = scmp.eq.s32.totalorder %s23, 1
    %p167 = por %p165, %p166
    %p168 = scmp.ne.s32.totalorder %s159, %s160
    %p169 = scmp.eq.s32.totalorder %s23, 0
    %p170 = por %p168, %p169
    %p171 = scmp.ne.s32.totalorder %s159, %s160
    %p172 = scmp.eq.s32.totalorder %s24, 1
    %p173 = por %p171, %p172
    %p175 = scmp.ne.s32.totalorder %s160, %s174
    %p176 = scmp.eq.s32.totalorder %s24, 0
    %p177 = por %p175, %p176
    %s179 = sadd.s32 %s178, 1
    %p182 = scmp.eq.s32.totalorder %s18, 1
    %p183 = scmp.ne.s32.totalorder %s178, %s180
    %p184 = scmp.eq.s32.totalorder %s18, 0
    %p185 = por %p183, %p184
    %p186 = scmp.ne.s32.totalorder %s178, %s180
    %p187 = scmp.eq.s32.totalorder %s23, 1
    %p188 = por %p186, %p187
    %p189 = scmp.ne.s32.totalorder %s180, %s181
    %p190 = scmp.eq.s32.totalorder %s23, 0
    %p191 = por %p189, %p190
    %p192 = scmp.ne.s32.totalorder %s180, %s181
    %p193 = scmp.eq.s32.totalorder %s24, 1
    %p194 = por %p192, %p193
    %p196 = scmp.ne.s32.totalorder %s181, %s195
    %p197 = scmp.eq.s32.totalorder %s24, 0
    %p198 = por %p196, %p197
    %s200 = sadd.s32 %s199, 1
    %p203 = scmp.eq.s32.totalorder %s18, 1
    %p204 = scmp.ne.s32.totalorder %s199, %s201
    %p205 = scmp.eq.s32.totalorder %s18, 0
    %p206 = por %p204, %p205
    %p207 = scmp.ne.s32.totalorder %s199, %s201
    %p208 = scmp.eq.s32.totalorder %s23, 1
    %p209 = por %p207, %p208
    %p210 = scmp.ne.s32.totalorder %s201, %s202
    %p211 = scmp.eq.s32.totalorder %s23, 0
    %p212 = por %p210, %p211
    %p213 = scmp.ne.s32.totalorder %s201, %s202
    %p214 = scmp.eq.s32.totalorder %s24, 1
    %p215 = por %p213, %p214
    %p217 = scmp.ne.s32.totalorder %s202, %s216
    %p218 = scmp.eq.s32.totalorder %s24, 0
    %p219 = por %p217, %p218
    %s220 = ssub.s32 %s18, %s25
    %p221 = scmp.eq.s32.totalorder %s220, 0
    %s223 = sadd.s32 %s222, 1
    %s224 = scalar_select %p221, %s222, %s223
    %p227 = pneg %p221
    %p228 = scmp.eq.s32.totalorder %s18, 1
    %p229 = por %p227, %p228
    %p230 = scmp.ne.s32.totalorder %s222, %s225
    %p231 = scmp.eq.s32.totalorder %s18, 0
    %p232 = por %p230, %p231
    %p233 = scmp.ne.s32.totalorder %s222, %s225
    %p234 = scmp.eq.s32.totalorder %s23, 1
    %p235 = por %p233, %p234
    %p236 = scmp.ne.s32.totalorder %s225, %s226
    %p237 = scmp.eq.s32.totalorder %s23, 0
    %p238 = por %p236, %p237
    %p239 = scmp.ne.s32.totalorder %s225, %s226
    %p240 = scmp.eq.s32.totalorder %s24, 1
    %p241 = por %p239, %p240
    %p243 = scmp.ne.s32.totalorder %s226, %s242
    %p244 = scmp.eq.s32.totalorder %s24, 0
    %p245 = por %p243, %p244
    %s246 = ssub.s32 %s18, %s25
    %p247 = scmp.eq.s32.totalorder %s246, 0
    %s249 = sadd.s32 %s248, 1
    %s250 = scalar_select %p247, %s248, %s249
    %p253 = pneg %p247
    %p254 = scmp.eq.s32.totalorder %s18, 1
    %p255 = por %p253, %p254
    %p256 = scmp.ne.s32.totalorder %s248, %s251
    %p257 = scmp.eq.s32.totalorder %s18, 0
    %p258 = por %p256, %p257
    %p259 = scmp.ne.s32.totalorder %s248, %s251
    %p260 = scmp.eq.s32.totalorder %s23, 1
    %p261 = por %p259, %p260
    %p262 = scmp.ne.s32.totalorder %s251, %s252
    %p263 = scmp.eq.s32.totalorder %s23, 0
    %p264 = por %p262, %p263
    %p265 = scmp.ne.s32.totalorder %s251, %s252
    %p266 = scmp.eq.s32.totalorder %s24, 1
    %p267 = por %p265, %p266
    %p269 = scmp.ne.s32.totalorder %s252, %s268
    %p270 = scmp.eq.s32.totalorder %s24, 0
    %p271 = por %p269, %p270
    %s272 = ssub.s32 %s18, %s25
    %p273 = scmp.eq.s32.totalorder %s272, 0
    %s275 = sadd.s32 %s274, 1
    %s276 = scalar_select %p273, %s274, %s275
    %p279 = pneg %p273
    %p280 = scmp.eq.s32.totalorder %s18, 1
    %p281 = por %p279, %p280
    %p282 = scmp.ne.s32.totalorder %s274, %s277
    %p283 = scmp.eq.s32.totalorder %s18, 0
    %p284 = por %p282, %p283
    %p285 = scmp.ne.s32.totalorder %s274, %s277
    %p286 = scmp.eq.s32.totalorder %s23, 1
    %p287 = por %p285, %p286
    %p288 = scmp.ne.s32.totalorder %s277, %s278
    %p289 = scmp.eq.s32.totalorder %s23, 0
    %p290 = por %p288, %p289
    %p291 = scmp.ne.s32.totalorder %s277, %s278
    %p292 = scmp.eq.s32.totalorder %s24, 1
    %p293 = por %p291, %p292
    %p295 = scmp.ne.s32.totalorder %s278, %s294
    %p296 = scmp.eq.s32.totalorder %s24, 0
    %p297 = por %p295, %p296
    %p298 = scmp.le.s32.totalorder 1, %s18
    %p299 = scmp.lt.s32.totalorder %s18, 3
    %p300 = pnand %p298, %p299
    %p301 = pneg %p300
    // Predicated region
    $region9: #{tiny_backbone_forward.1} parent=5 // pred_check
      _
    $region10: #{tiny_backbone_forward.1} parent=5 // pred_check_branch
      %303 = sbr.rel (%p300) target = $region12
    $region11: #{tiny_backbone_forward.1} parent=5 // pred_region
      %s304 = ssub.s32 %s18, 1
      // Predicated region
      $region13: #{tiny_backbone_forward.1} parent=11 // pred_check
        %p305 = pneg %p65
      $region14: #{tiny_backbone_forward.1} parent=11 // pred_check_branch
        %307 = sbr.rel (%p305) target = $region16
      $region15: #{tiny_backbone_forward.1} parent=11 // pred_region
        _
      $region16: #{tiny_backbone_forward.1} parent=11 // pred_fallthru
        _
      // Predicated region
      $region17: #{tiny_backbone_forward.1} parent=11 // pred_check
        %p308 = pneg %p86
      $region18: #{tiny_backbone_forward.1} parent=11 // pred_check_branch
        %310 = sbr.rel (%p308) target = $region20
      $region19: #{tiny_backbone_forward.1} parent=11 // pred_region
        _
      $region20: #{tiny_backbone_forward.1} parent=11 // pred_fallthru
        _
      // Predicated region
      $region21: #{tiny_backbone_forward.1} parent=11 // pred_check
        %p311 = pneg %p107
      $region22: #{tiny_backbone_forward.1} parent=11 // pred_check_branch
        %313 = sbr.rel (%p311) target = $region24
      $region23: #{tiny_backbone_forward.1} parent=11 // pred_region
        _
      $region24: #{tiny_backbone_forward.1} parent=11 // pred_fallthru
        _
      // Predicated region
      $region25: #{tiny_backbone_forward.1} parent=11 // pred_check
        %p314 = pneg %p128
      $region26: #{tiny_backbone_forward.1} parent=11 // pred_check_branch
        %316 = sbr.rel (%p314) target = $region28
      $region27: #{tiny_backbone_forward.1} parent=11 // pred_region
        _
      $region28: #{tiny_backbone_forward.1} parent=11 // pred_fallthru
        _
      // Predicated region
      $region29: #{tiny_backbone_forward.1} parent=11 // pred_check
        %p317 = pneg %p149
      $region30: #{tiny_backbone_forward.1} parent=11 // pred_check_branch
        %319 = sbr.rel (%p317) target = $region32
      $region31: #{tiny_backbone_forward.1} parent=11 // pred_region
        _
      $region32: #{tiny_backbone_forward.1} parent=11 // pred_fallthru
        _
      // Predicated region
      $region33: #{tiny_backbone_forward.1} parent=11 // pred_check
        %p320 = pneg %p170
      $region34: #{tiny_backbone_forward.1} parent=11 // pred_check_branch
        %322 = sbr.rel (%p320) target = $region36
      $region35: #{tiny_backbone_forward.1} parent=11 // pred_region
        _
      $region36: #{tiny_backbone_forward.1} parent=11 // pred_fallthru
        _
      // Predicated region
      $region37: #{tiny_backbone_forward.1} parent=11 // pred_check
        %p323 = pneg %p191
      $region38: #{tiny_backbone_forward.1} parent=11 // pred_check_branch
        %325 = sbr.rel (%p323) target = $region40
      $region39: #{tiny_backbone_forward.1} parent=11 // pred_region
        _
      $region40: #{tiny_backbone_forward.1} parent=11 // pred_fallthru
        _
      // Predicated region
      $region41: #{tiny_backbone_forward.1} parent=11 // pred_check
        %p326 = pneg %p212
      $region42: #{tiny_backbone_forward.1} parent=11 // pred_check_branch
        %328 = sbr.rel (%p326) target = $region44
      $region43: #{tiny_backbone_forward.1} parent=11 // pred_region
        _
      $region44: #{tiny_backbone_forward.1} parent=11 // pred_fallthru
        _
    $region12: #{tiny_backbone_forward.1} parent=5 // pred_fallthru
      _
    %p329 = scmp.lt.s32.totalorder %s18, 2
    // Predicated region
    $region45: #{tiny_backbone_forward.1} parent=5 // pred_check
      %p330 = pneg %p329
    $region46: #{tiny_backbone_forward.1} parent=5 // pred_check_branch
      %332 = sbr.rel (%p330) target = $region48
    $region47: #{tiny_backbone_forward.1} parent=5 // pred_region
      // Predicated region
      $region49: #{tiny_backbone_forward.1} parent=47 // pred_check
        %p333 = pneg %p38
      $region50: #{tiny_backbone_forward.1} parent=47 // pred_check_branch
        %335 = sbr.rel (%p333) target = $region52
      $region51: #{tiny_backbone_forward.1} parent=47 // pred_region
        %p336 = scmp.lt.s32.totalorder %s18, 1
        %s337 = scalar_select %p336, %s18, 1
        %s338 = smul.addr %s337, 8
        %s339 = smul.addr %s338, 8
        %s340 = scalar_lea.vmem %s0, %s339
      $region52: #{tiny_backbone_forward.1} parent=47 // pred_fallthru
        _
    $region48: #{tiny_backbone_forward.1} parent=5 // pred_fallthru
      _
    %p341 = scmp.le.s32.totalorder 1, %s18
    %p342 = scmp.lt.s32.totalorder %s18, 3
    %p343 = pnand %p341, %p342
    %p344 = pneg %p343
    // Predicated region
    $region53: #{tiny_backbone_forward.1} parent=5 // pred_check
      _
    $region54: #{tiny_backbone_forward.1} parent=5 // pred_check_branch
      %346 = sbr.rel (%p343) target = $region56
    $region55: #{tiny_backbone_forward.1} parent=5 // pred_region
      %s347 = ssub.s32 %s18, 1
      %p348 = scmp.lt.s32.totalorder %s23, 1
      %s349 = scalar_select %p348, %s23, 1
      %s350 = smul.addr %s349, 8
      %s351 = smul.addr %s350, 8
      %s352 = scalar_lea.vmem %s0, %s351
      %p353 = pneg %p44
      %p354 = pneg %p41
      %p355 = pneg %p65
      %p356 = pneg %p62
      %p357 = pneg %p86
      %p358 = pneg %p83
      %p359 = pneg %p107
      %p360 = pneg %p104
      %p361 = pneg %p128
      %p362 = pneg %p125
      %p363 = pneg %p149
      %p364 = pneg %p146
      %p365 = pneg %p170
      %p366 = pneg %p167
      %p367 = pneg %p191
      %p368 = pneg %p188
      %p369 = pneg %p212
      %p370 = pneg %p209
      %p371 = pneg %p238
      %p372 = pneg %p235
      %p373 = scmp.lt.s32.totalorder %s23, 1
      %s374 = scalar_select %p373, %s23, 1
      %s375 = smul.addr %s374, 4
      %s376 = smul.addr %s375, 8
      %s377 = scalar_lea.vmem %s9, %s376
      %p378 = pneg %p264
      %p379 = pneg %p261
      %p380 = scmp.lt.s32.totalorder %s23, 1
      %s381 = scalar_select %p380, %s23, 1
      %s382 = smul.addr %s381, 4
      %s383 = smul.addr %s382, 8
      %s384 = scalar_lea.vmem %s10, %s383
      %p385 = pneg %p290
      %p386 = pneg %p287
      %p387 = scmp.lt.s32.totalorder %s23, 1
      %s388 = scalar_select %p387, %s23, 1
      %s389 = smul.addr %s388, 8
      %s390 = smul.addr %s389, 8
      %s391 = scalar_lea.vmem %s11, %s390
      %p392 = scmp.lt.s32.totalorder %s23, 1
      %s393 = scalar_select %p392, %s23, 1
      %s394 = smul.addr %s393, 8
      %s395 = smul.addr %s394, 8
      %s396 = scalar_lea.vmem %s0, %s395
      %p397 = scmp.lt.s32.totalorder %s23, 1
      %s398 = scalar_select %p397, %s23, 1
      %s399 = smul.addr %s398, 4
      %s400 = smul.addr %s399, 8
      %s401 = scalar_lea.vmem %s9, %s400
      %p402 = scmp.lt.s32.totalorder %s23, 1
      %s403 = scalar_select %p402, %s23, 1
      %s404 = smul.addr %s403, 4
      %s405 = smul.addr %s404, 8
      %s406 = scalar_lea.vmem %s10, %s405
      %p407 = scmp.lt.s32.totalorder %s23, 1
      %s408 = scalar_select %p407, %s23, 1
      %s409 = smul.addr %s408, 8
      %s410 = smul.addr %s409, 8
      %s411 = scalar_lea.vmem %s11, %s410
      %v412 = vld [vmem:[%s3] sm:$0xff]
      %v413 = vld [vmem:[%s3 + $0x8] sm:$0xff]
      %v414 = vld [vmem:[%s6] sm:$0xff]
      %v415 = vld [vmem:[%s6 + $0x8] sm:$0xff]
      %v416 = vld [vmem:[%s396] sm:$0xff]
      %v417 = vld [vmem:[%s396 + $0x8] sm:$0xff]
      %v418 = vld [vmem:[%s396 + $0x10] sm:$0xff]
      %v419 = vld [vmem:[%s396 + $0x18] sm:$0xff]
      %v420 = vld [vmem:[%s396 + $0x20] sm:$0xff]
      %v421 = vld [vmem:[%s396 + $0x28] sm:$0xff]
      %v422 = vld [vmem:[%s396 + $0x30] sm:$0x7]
      %v423 = vld [vmem:[%s396 + $0x38] sm:$0x7]
      %425 = vset.pattern.permute.xlu0 0
      %426 = vperm.xlu0 %425, %v414
      %v427 = vpop.permute.xlu0 %426
      %430 = vset.pattern.permute.xlu0 0
      %431 = vperm.xlu0 %430, %v415
      %v432 = vpop.permute.xlu0 %431
      %vm434 = vcmask 220160
      %v436 = vsel %vm434, %v412, 0
      %v439 = vsel %vm434, %v413, 0
      %vm441 = vcmask 1042432
      %v443 = vsel %vm441, %v422, 0
      %v446 = vsel %vm441, %v423, 0
      %448 = vmatprep.subr.mxu0 %v417
      %449 = vmatpush1.msra.mxu0 %v416
      %450 = vmatprep.subr.mxu0 %v419
      %451 = vmatpush1.msra.mxu0 %v418
      %452 = vmatprep.subr.mxu0 %v421
      %453 = vmatpush1.msra.mxu0 %v420
      %454 = vmatprep.subr.mxu0 %v446
      %455 = vmatpush1.msra.mxu0 %v443
      %456 = vmatprep.subr.mxu0 0.0
      %457 = vmatpush1.msra.mxu0 0.0
      %458 = vmatprep.subr.mxu0 0.0
      %459 = vmatpush1.msra.mxu0 0.0
      %460 = vmatprep.subr.mxu0 0.0
      %461 = vmatpush1.msra.mxu0 0.0
      %462 = vmatprep.subr.mxu0 0.0
      %463 = vmatpush1.msra.mxu0 0.0
      %464 = vmatprep.subr.mxu0 0.0
      %465 = vmatpush1.msra.mxu0 0.0
      %466 = vmatprep.subr.mxu0 0.0
      %467 = vmatpush1.msra.mxu0 0.0
      %468 = vmatprep.subr.mxu0 0.0
      %469 = vmatpush1.msra.mxu0 0.0
      %470 = vmatprep.subr.mxu0 0.0
      %471 = vmatpush1.msra.mxu0 0.0
      %472 = vmatprep.subr.mxu0 0.0
      %473 = vmatpush1.msra.mxu0 0.0
      %474 = vmatprep.subr.mxu0 0.0
      %475 = vmatpush1.msra.mxu0 0.0
      %476 = vmatprep.subr.mxu0 0.0
      %477 = vmatpush1.msra.mxu0 0.0
      %478 = vmatprep.subr.mxu0 0.0
      %479 = vmatpush1.msra.mxu0 0.0
      %480 = vmatprep.subr.mxu0 0.0
      %481 = vmatpush1.msra.mxu0 0.0
      %482 = vmatprep.subr.mxu0 0.0
      %483 = vmatpush1.msra.mxu0 0.0
      %484 = vmatprep.subr.mxu0 0.0
      %485 = vmatpush1.msra.mxu0 0.0
      %486 = vmatprep.subr.mxu0 0.0
      %487 = vmatpush1.msra.mxu0 0.0
      %488 = vmatprep.subr.mxu0 0.0
      %489 = vmatpush1.msra.mxu0 0.0
      %490 = vmatprep.subr.mxu0 0.0
      %491 = vmatpush1.msra.mxu0 0.0
      %492 = vmatprep.subr.mxu0 0.0
      %493 = vmatpush1.msra.mxu0 0.0
      %494 = vmatprep.subr.mxu0 0.0
      %495 = vmatpush1.msra.mxu0 0.0
      %496 = vmatprep.subr.mxu0 0.0
      %497 = vmatpush1.msra.mxu0 0.0
      %498 = vmatprep.subr.mxu0 0.0
      %499 = vmatpush1.msra.mxu0 0.0
      %500 = vmatprep.subr.mxu0 0.0
      %501 = vmatpush1.msra.mxu0 0.0
      %502 = vmatprep.subr.mxu0 0.0
      %503 = vmatpush1.msra.mxu0 0.0
      %504 = vmatprep.subr.mxu0 0.0
      %505 = vmatpush1.msra.mxu0 0.0
      %506 = vmatprep.subr.mxu0 0.0
      %507 = vmatpush1.msra.mxu0 0.0
      %508 = vmatprep.subr.mxu0 0.0
      %509 = vmatpush1.msra.mxu0 0.0
      %510 = vmatprep.subr.mxu0 0.0
      %511 = vmatpush1.msra.mxu0 0.0
      %512 = vmatprep.mubr.f32.mxu0 0.0
      %513 = vmatmul.mubr.f32.gmra.mrb[0].mxu0 %v436
      %v514 = vpop.f32.mrb[0].mxu0
      %v515 = vadd.f32 %v427, %v514
      %v516 = vpop.f32.mrb[0].mxu0
      %v517 = vadd.f32 %v427, %v516
      %518 = vmatprep.mubr.f32.mxu0 0.0
      %519 = vmatmul.mubr.f32.gmra.mrb[0].mxu0 %v439
      %v520 = vpop.f32.mrb[0].mxu0
      %v521 = vadd.f32 %v432, %v520
      %v522 = vpop.f32.mrb[0].mxu0
      %v523 = vadd.f32 %v432, %v522
      %524 = vdwg.mxu0
      %v525 = vmax.f32 %v515, 0.0
      %v526 = vmax.f32 %v517, 0.0
      %v527 = vmax.f32 %v521, 0.0
      %v528 = vmax.f32 %v523, 0.0
      %529 = vst [vmem:[%s401] sm:$0xff] %v525
      %530 = vst [vmem:[%s401 + $0x8] sm:$0xff] %v526
      %531 = vst [vmem:[%s401 + $0x10] sm:$0xff] %v527
      %532 = vst [vmem:[%s401 + $0x18] sm:$0xff] %v528
      %v533 = vld [vmem:[%s1] sm:$0xff]
      %v534 = vld [vmem:[%s1 + $0x8] sm:$0xff]
      %v535 = vld [vmem:[%s1 + $0x10] sm:$0xff]
      %v536 = vld [vmem:[%s1 + $0x18] sm:$0xff]
      %v537 = vld [vmem:[%s1 + $0x20] sm:$0xff]
      %v538 = vld [vmem:[%s1 + $0x28] sm:$0xff]
      %v539 = vld [vmem:[%s1 + $0x30] sm:$0xff]
      %v540 = vld [vmem:[%s1 + $0x38] sm:$0xff]
      %v541 = vld [vmem:[%s1 + $0x40] sm:$0xff]
      %v542 = vld [vmem:[%s1 + $0x48] sm:$0xff]
      %v543 = vld [vmem:[%s1 + $0x50] sm:$0xff]
      %v544 = vld [vmem:[%s1 + $0x58] sm:$0xff]
      %v545 = vld [vmem:[%s1 + $0x60] sm:$0xff]
      %v546 = vld [vmem:[%s1 + $0x68] sm:$0xff]
      %v547 = vld [vmem:[%s1 + $0x70] sm:$0xff]
      %v548 = vld [vmem:[%s1 + $0x78] sm:$0xff]
      %v549 = vld [vmem:[%s1 + $0x80] sm:$0xff]
      %v550 = vld [vmem:[%s1 + $0x88] sm:$0xff]
      %v551 = vld [vmem:[%s1 + $0x90] sm:$0xff]
      %v552 = vld [vmem:[%s1 + $0x98] sm:$0xff]
      %v553 = vld [vmem:[%s1 + $0xa0] sm:$0xff]
      %v554 = vld [vmem:[%s1 + $0xa8] sm:$0xff]
      %v555 = vld [vmem:[%s1 + $0xb0] sm:$0xff]
      %v556 = vld [vmem:[%s1 + $0xb8] sm:$0xff]
      %v557 = vld [vmem:[%s1 + $0xc0] sm:$0xff]
      %v558 = vld [vmem:[%s1 + $0xc8] sm:$0xff]
      %v559 = vld [vmem:[%s1 + $0xd0] sm:$0xff]
      %v560 = vld [vmem:[%s1 + $0xd8] sm:$0xff]
      %v561 = vld [vmem:[%s1 + $0xe0] sm:$0xff]
      %v562 = vld [vmem:[%s1 + $0xe8] sm:$0xff]
      %v563 = vld [vmem:[%s1 + $0xf0] sm:$0xff]
      %v564 = vld [vmem:[%s1 + $0xf8] sm:$0xff]
      %v565 = vld [vmem:[%s1 + $0x100] sm:$0xff]
      %v566 = vld [vmem:[%s1 + $0x108] sm:$0xff]
      %v567 = vld [vmem:[%s1 + $0x110] sm:$0xff]
      %v568 = vld [vmem:[%s1 + $0x118] sm:$0xff]
      %v569 = vld [vmem:[%s1 + $0x120] sm:$0xff]
      %v570 = vld [vmem:[%s1 + $0x128] sm:$0xff]
      %v571 = vld [vmem:[%s1 + $0x130] sm:$0xff]
      %v572 = vld [vmem:[%s1 + $0x138] sm:$0xff]
      %v573 = vld [vmem:[%s1 + $0x140] sm:$0xff]
      %v574 = vld [vmem:[%s1 + $0x148] sm:$0xff]
      %v575 = vld [vmem:[%s1 + $0x150] sm:$0xff]
      %v576 = vld [vmem:[%s1 + $0x158] sm:$0xff]
      %v577 = vld [vmem:[%s1 + $0x160] sm:$0xff]
      %v578 = vld [vmem:[%s1 + $0x168] sm:$0xff]
      %v579 = vld [vmem:[%s1 + $0x170] sm:$0xff]
      %v580 = vld [vmem:[%s1 + $0x178] sm:$0xff]
      %v581 = vld [vmem:[%s1 + $0x180] sm:$0xff]
      %v582 = vld [vmem:[%s1 + $0x188] sm:$0xff]
      %v583 = vld [vmem:[%s1 + $0x190] sm:$0xff]
      %v584 = vld [vmem:[%s1 + $0x198] sm:$0xff]
      %v585 = vld [vmem:[%s1 + $0x1a0] sm:$0xff]
      %v586 = vld [vmem:[%s1 + $0x1a8] sm:$0xff]
      %v587 = vld [vmem:[%s1 + $0x1b0] sm:$0xff]
      %v588 = vld [vmem:[%s1 + $0x1b8] sm:$0xff]
      %v589 = vld [vmem:[%s1 + $0x1c0] sm:$0xff]
      %v590 = vld [vmem:[%s1 + $0x1c8] sm:$0xff]
      %v591 = vld [vmem:[%s1 + $0x1d0] sm:$0xff]
      %v592 = vld [vmem:[%s1 + $0x1d8] sm:$0xff]
      %v593 = vld [vmem:[%s1 + $0x1e0] sm:$0xff]
      %v594 = vld [vmem:[%s1 + $0x1e8] sm:$0xff]
      %v595 = vld [vmem:[%s1 + $0x1f0] sm:$0xff]
      %v596 = vld [vmem:[%s1 + $0x1f8] sm:$0xff]
      %v597 = vld [vmem:[%s1 + $0x200] sm:$0xff]
      %v598 = vld [vmem:[%s1 + $0x208] sm:$0xff]
      %v599 = vld [vmem:[%s1 + $0x210] sm:$0xff]
      %v600 = vld [vmem:[%s1 + $0x218] sm:$0xff]
      %v601 = vld [vmem:[%s1 + $0x220] sm:$0xff]
      %v602 = vld [vmem:[%s1 + $0x228] sm:$0xff]
      %v603 = vld [vmem:[%s1 + $0x230] sm:$0xff]
      %v604 = vld [vmem:[%s1 + $0x238] sm:$0xff]
      %v605 = vld [vmem:[%s1 + $0x240] sm:$0xff]
      %v606 = vld [vmem:[%s1 + $0x248] sm:$0xff]
      %v607 = vld [vmem:[%s1 + $0x250] sm:$0xff]
      %v608 = vld [vmem:[%s1 + $0x258] sm:$0xff]
      %v609 = vld [vmem:[%s1 + $0x260] sm:$0xff]
      %v610 = vld [vmem:[%s1 + $0x268] sm:$0xff]
      %v611 = vld [vmem:[%s1 + $0x270] sm:$0xff]
      %v612 = vld [vmem:[%s1 + $0x278] sm:$0xff]
      %v613 = vld [vmem:[%s1 + $0x280] sm:$0xff]
      %v614 = vld [vmem:[%s1 + $0x288] sm:$0xff]
      %v615 = vld [vmem:[%s1 + $0x290] sm:$0xff]
      %v616 = vld [vmem:[%s1 + $0x298] sm:$0xff]
      %v617 = vld [vmem:[%s1 + $0x2a0] sm:$0xff]
      %v618 = vld [vmem:[%s1 + $0x2a8] sm:$0xff]
      %v619 = vld [vmem:[%s1 + $0x2b0] sm:$0xff]
      %v620 = vld [vmem:[%s1 + $0x2b8] sm:$0xff]
      %v621 = vld [vmem:[%s1 + $0x2c0] sm:$0xff]
      %v622 = vld [vmem:[%s1 + $0x2c8] sm:$0xff]
      %v623 = vld [vmem:[%s1 + $0x2d0] sm:$0xff]
      %v624 = vld [vmem:[%s1 + $0x2d8] sm:$0xff]
      %v625 = vld [vmem:[%s1 + $0x2e0] sm:$0xff]
      %v626 = vld [vmem:[%s1 + $0x2e8] sm:$0xff]
      %v627 = vld [vmem:[%s1 + $0x2f0] sm:$0xff]
      %v628 = vld [vmem:[%s1 + $0x2f8] sm:$0xff]
      %v629 = vld [vmem:[%s1 + $0x300] sm:$0xff]
      %v630 = vld [vmem:[%s1 + $0x308] sm:$0xff]
      %v631 = vld [vmem:[%s1 + $0x310] sm:$0xff]
      %v632 = vld [vmem:[%s1 + $0x318] sm:$0xff]
      %v633 = vld [vmem:[%s1 + $0x320] sm:$0xff]
      %v634 = vld [vmem:[%s1 + $0x328] sm:$0xff]
      %v635 = vld [vmem:[%s1 + $0x330] sm:$0xff]
      %v636 = vld [vmem:[%s1 + $0x338] sm:$0xff]
      %v637 = vld [vmem:[%s1 + $0x340] sm:$0xff]
      %v638 = vld [vmem:[%s1 + $0x348] sm:$0xff]
      %v639 = vld [vmem:[%s1 + $0x350] sm:$0xff]
      %v640 = vld [vmem:[%s1 + $0x358] sm:$0xff]
      %v641 = vld [vmem:[%s1 + $0x360] sm:$0xff]
      %v642 = vld [vmem:[%s1 + $0x368] sm:$0xff]
      %v643 = vld [vmem:[%s1 + $0x370] sm:$0xff]
      %v644 = vld [vmem:[%s1 + $0x378] sm:$0xff]
      %v645 = vld [vmem:[%s1 + $0x380] sm:$0xff]
      %v646 = vld [vmem:[%s1 + $0x388] sm:$0xff]
      %v647 = vld [vmem:[%s1 + $0x390] sm:$0xff]
      %v648 = vld [vmem:[%s1 + $0x398] sm:$0xff]
      %v649 = vld [vmem:[%s1 + $0x3a0] sm:$0xff]
      %v650 = vld [vmem:[%s1 + $0x3a8] sm:$0xff]
      %v651 = vld [vmem:[%s1 + $0x3b0] sm:$0xff]
      %v652 = vld [vmem:[%s1 + $0x3b8] sm:$0xff]
      %v653 = vld [vmem:[%s1 + $0x3c0] sm:$0xff]
      %v654 = vld [vmem:[%s1 + $0x3c8] sm:$0xff]
      %v655 = vld [vmem:[%s1 + $0x3d0] sm:$0xff]
      %v656 = vld [vmem:[%s1 + $0x3d8] sm:$0xff]
      %v657 = vld [vmem:[%s1 + $0x3e0] sm:$0xff]
      %v658 = vld [vmem:[%s1 + $0x3e8] sm:$0xff]
      %v659 = vld [vmem:[%s1 + $0x3f0] sm:$0xff]
      %v660 = vld [vmem:[%s1 + $0x3f8] sm:$0xff]
      %v661 = vld [vmem:[%s1 + $0x400] sm:$0xff]
      %v662 = vld [vmem:[%s1 + $0x408] sm:$0xff]
      %v663 = vld [vmem:[%s1 + $0x410] sm:$0xff]
      %v664 = vld [vmem:[%s1 + $0x418] sm:$0xff]
      %v665 = vld [vmem:[%s1 + $0x420] sm:$0xff]
      %v666 = vld [vmem:[%s1 + $0x428] sm:$0xff]
      %v667 = vld [vmem:[%s1 + $0x430] sm:$0xff]
      %v668 = vld [vmem:[%s1 + $0x438] sm:$0xff]
      %v669 = vld [vmem:[%s1 + $0x440] sm:$0xff]
      %v670 = vld [vmem:[%s1 + $0x448] sm:$0xff]
      %v671 = vld [vmem:[%s1 + $0x450] sm:$0xff]
      %v672 = vld [vmem:[%s1 + $0x458] sm:$0xff]
      %v673 = vld [vmem:[%s1 + $0x460] sm:$0xff]
      %v674 = vld [vmem:[%s1 + $0x468] sm:$0xff]
      %v675 = vld [vmem:[%s1 + $0x470] sm:$0xff]
      %v676 = vld [vmem:[%s1 + $0x478] sm:$0xff]
      %v677 = vld [vmem:[%s1 + $0x480] sm:$0xff]
      %v678 = vld [vmem:[%s1 + $0x488] sm:$0xff]
      %v679 = vld [vmem:[%s1 + $0x490] sm:$0xff]
      %v680 = vld [vmem:[%s1 + $0x498] sm:$0xff]
      %v681 = vld [vmem:[%s1 + $0x4a0] sm:$0xff]
      %v682 = vld [vmem:[%s1 + $0x4a8] sm:$0xff]
      %v683 = vld [vmem:[%s1 + $0x4b0] sm:$0xff]
      %v684 = vld [vmem:[%s1 + $0x4b8] sm:$0xff]
      %v685 = vld [vmem:[%s1 + $0x4c0] sm:$0xff]
      %v686 = vld [vmem:[%s1 + $0x4c8] sm:$0xff]
      %v687 = vld [vmem:[%s1 + $0x4d0] sm:$0xff]
      %v688 = vld [vmem:[%s1 + $0x4d8] sm:$0xff]
      %v689 = vld [vmem:[%s1 + $0x4e0] sm:$0xff]
      %v690 = vld [vmem:[%s1 + $0x4e8] sm:$0xff]
      %v691 = vld [vmem:[%s1 + $0x4f0] sm:$0xff]
      %v692 = vld [vmem:[%s1 + $0x4f8] sm:$0xff]
      %693 = vmatprep.subr.mxu0 %v534
      %694 = vmatpush1.msra.mxu0 %v533
      %695 = vmatprep.subr.mxu0 %v539
      %696 = vmatpush1.msra.mxu0 %v538
      %697 = vmatprep.subr.mxu0 %v544
      %698 = vmatpush1.msra.mxu0 %v543
      %699 = vmatprep.subr.mxu0 %v549
      %700 = vmatpush1.msra.mxu0 %v548
      %701 = vmatprep.subr.mxu0 %v554
      %702 = vmatpush1.msra.mxu0 %v553
      %703 = vmatprep.subr.mxu0 %v559
      %704 = vmatpush1.msra.mxu0 %v558
      %705 = vmatprep.subr.mxu0 %v564
      %706 = vmatpush1.msra.mxu0 %v563
      %707 = vmatprep.subr.mxu0 %v569
      %708 = vmatpush1.msra.mxu0 %v568
      %709 = vmatprep.subr.mxu0 %v574
      %710 = vmatpush1.msra.mxu0 %v573
      %711 = vmatprep.subr.mxu0 %v579
      %712 = vmatpush1.msra.mxu0 %v578
      %713 = vmatprep.subr.mxu0 %v584
      %714 = vmatpush1.msra.mxu0 %v583
      %715 = vmatprep.subr.mxu0 %v589
      %716 = vmatpush1.msra.mxu0 %v588
      %717 = vmatprep.subr.mxu0 %v594
      %718 = vmatpush1.msra.mxu0 %v593
      %719 = vmatprep.subr.mxu0 %v599
      %720 = vmatpush1.msra.mxu0 %v598
      %721 = vmatprep.subr.mxu0 %v604
      %722 = vmatpush1.msra.mxu0 %v603
      %723 = vmatprep.subr.mxu0 %v609
      %724 = vmatpush1.msra.mxu0 %v608
      %725 = vmatprep.subr.mxu0 %v614
      %726 = vmatpush1.msra.mxu0 %v613
      %727 = vmatprep.subr.mxu0 %v619
      %728 = vmatpush1.msra.mxu0 %v618
      %729 = vmatprep.subr.mxu0 %v624
      %730 = vmatpush1.msra.mxu0 %v623
      %731 = vmatprep.subr.mxu0 %v629
      %732 = vmatpush1.msra.mxu0 %v628
      %733 = vmatprep.subr.mxu0 %v634
      %734 = vmatpush1.msra.mxu0 %v633
      %735 = vmatprep.subr.mxu0 %v639
      %736 = vmatpush1.msra.mxu0 %v638
      %737 = vmatprep.subr.mxu0 %v644
      %738 = vmatpush1.msra.mxu0 %v643
      %739 = vmatprep.subr.mxu0 %v649
      %740 = vmatpush1.msra.mxu0 %v648
      %741 = vmatprep.subr.mxu0 %v654
      %742 = vmatpush1.msra.mxu0 %v653
      %743 = vmatprep.subr.mxu0 %v659
      %744 = vmatpush1.msra.mxu0 %v658
      %745 = vmatprep.subr.mxu0 %v664
      %746 = vmatpush1.msra.mxu0 %v663
      %747 = vmatprep.subr.mxu0 %v669
      %748 = vmatpush1.msra.mxu0 %v668
      %749 = vmatprep.subr.mxu0 %v674
      %750 = vmatpush1.msra.mxu0 %v673
      %751 = vmatprep.subr.mxu0 %v679
      %752 = vmatpush1.msra.mxu0 %v678
      %753 = vmatprep.subr.mxu0 %v684
      %754 = vmatpush1.msra.mxu0 %v683
      %755 = vmatprep.subr.mxu0 %v689
      %756 = vmatpush1.msra.mxu0 %v688
      %757 = vmatprep.mubr.f32.mxu0 %v526
      %758 = vmatmul.mubr.f32.gmra.mrb[0].mxu0 %v525
      %v759 = vpop.f32.mrb[0].mxu0
      %v760 = vadd.f32 0.0, %v759
      %v761 = vpop.f32.mrb[0].mxu0
      %v762 = vadd.f32 0.0, %v761
      %763 = vmatprep.mubr.f32.mxu0 %v528
      %764 = vmatmul.mubr.f32.gmra.mrb[0].mxu0 %v527
      %v765 = vpop.f32.mrb[0].mxu0
      %v766 = vadd.f32 0.0, %v765
      %v767 = vpop.f32.mrb[0].mxu0
      %v768 = vadd.f32 0.0, %v767
      %769 = vdwg.mxu0
      %770 = vmatprep.subr.mxu0 %v536
      %771 = vmatpush1.msra.mxu0 %v535
      %772 = vmatprep.subr.mxu0 %v541
      %773 = vmatpush1.msra.mxu0 %v540
      %774 = vmatprep.subr.mxu0 %v546
      %775 = vmatpush1.msra.mxu0 %v545
      %776 = vmatprep.subr.mxu0 %v551
      %777 = vmatpush1.msra.mxu0 %v550
      %778 = vmatprep.subr.mxu0 %v556
      %779 = vmatpush1.msra.mxu0 %v555
      %780 = vmatprep.subr.mxu0 %v561
      %781 = vmatpush1.msra.mxu0 %v560
      %782 = vmatprep.subr.mxu0 %v566
      %783 = vmatpush1.msra.mxu0 %v565
      %784 = vmatprep.subr.mxu0 %v571
      %785 = vmatpush1.msra.mxu0 %v570
      %786 = vmatprep.subr.mxu0 %v576
      %787 = vmatpush1.msra.mxu0 %v575
      %788 = vmatprep.subr.mxu0 %v581
      %789 = vmatpush1.msra.mxu0 %v580
      %790 = vmatprep.subr.mxu0 %v586
      %791 = vmatpush1.msra.mxu0 %v585
      %792 = vmatprep.subr.mxu0 %v591
      %793 = vmatpush1.msra.mxu0 %v590
      %794 = vmatprep.subr.mxu0 %v596
      %795 = vmatpush1.msra.mxu0 %v595
      %796 = vmatprep.subr.mxu0 %v601
      %797 = vmatpush1.msra.mxu0 %v600
      %798 = vmatprep.subr.mxu0 %v606
      %799 = vmatpush1.msra.mxu0 %v605
      %800 = vmatprep.subr.mxu0 %v611
      %801 = vmatpush1.msra.mxu0 %v610
      %802 = vmatprep.subr.mxu0 %v616
      %803 = vmatpush1.msra.mxu0 %v615
      %804 = vmatprep.subr.mxu0 %v621
      %805 = vmatpush1.msra.mxu0 %v620
      %806 = vmatprep.subr.mxu0 %v626
      %807 = vmatpush1.msra.mxu0 %v625
      %808 = vmatprep.subr.mxu0 %v631
      %809 = vmatpush1.msra.mxu0 %v630
      %810 = vmatprep.subr.mxu0 %v636
      %811 = vmatpush1.msra.mxu0 %v635
      %812 = vmatprep.subr.mxu0 %v641
      %813 = vmatpush1.msra.mxu0 %v640
      %814 = vmatprep.subr.mxu0 %v646
      %815 = vmatpush1.msra.mxu0 %v645
      %816 = vmatprep.subr.mxu0 %v651
      %817 = vmatpush1.msra.mxu0 %v650
      %818 = vmatprep.subr.mxu0 %v656
      %819 = vmatpush1.msra.mxu0 %v655
      %820 = vmatprep.subr.mxu0 %v661
      %821 = vmatpush1.msra.mxu0 %v660
      %822 = vmatprep.subr.mxu0 %v666
      %823 = vmatpush1.msra.mxu0 %v665
      %824 = vmatprep.subr.mxu0 %v671
      %825 = vmatpush1.msra.mxu0 %v670
      %826 = vmatprep.subr.mxu0 %v676
      %827 = vmatpush1.msra.mxu0 %v675
      %828 = vmatprep.subr.mxu0 %v681
      %829 = vmatpush1.msra.mxu0 %v680
      %830 = vmatprep.subr.mxu0 %v686
      %831 = vmatpush1.msra.mxu0 %v685
      %832 = vmatprep.subr.mxu0 %v691
      %833 = vmatpush1.msra.mxu0 %v690
      %834 = vmatprep.mubr.f32.mxu0 %v526
      %835 = vmatmul.mubr.f32.gmra.mrb[0].mxu0 %v525
      %v836 = vpop.f32.mrb[0].mxu0
      %v837 = vadd.f32 0.0, %v836
      %v838 = vpop.f32.mrb[0].mxu0
      %v839 = vadd.f32 0.0, %v838
      %840 = vmatprep.mubr.f32.mxu0 %v528
      %841 = vmatmul.mubr.f32.gmra.mrb[0].mxu0 %v527
      %v842 = vpop.f32.mrb[0].mxu0
      %v843 = vadd.f32 0.0, %v842
      %v844 = vpop.f32.mrb[0].mxu0
      %v845 = vadd.f32 0.0, %v844
      %846 = vdwg.mxu0
      %847 = vmatprep.subr.mxu0 0.0
      %848 = vmatpush1.msra.mxu0 %v537
      %849 = vmatprep.subr.mxu0 0.0
      %850 = vmatpush1.msra.mxu0 %v542
      %851 = vmatprep.subr.mxu0 0.0
      %852 = vmatpush1.msra.mxu0 %v547
      %853 = vmatprep.subr.mxu0 0.0
      %854 = vmatpush1.msra.mxu0 %v552
      %855 = vmatprep.subr.mxu0 0.0
      %856 = vmatpush1.msra.mxu0 %v557
      %857 = vmatprep.subr.mxu0 0.0
      %858 = vmatpush1.msra.mxu0 %v562
      %859 = vmatprep.subr.mxu0 0.0
      %860 = vmatpush1.msra.mxu0 %v567
      %861 = vmatprep.subr.mxu0 0.0
      %862 = vmatpush1.msra.mxu0 %v572
      %863 = vmatprep.subr.mxu0 0.0
      %864 = vmatpush1.msra.mxu0 %v577
      %865 = vmatprep.subr.mxu0 0.0
      %866 = vmatpush1.msra.mxu0 %v582
      %867 = vmatprep.subr.mxu0 0.0
      %868 = vmatpush1.msra.mxu0 %v587
      %869 = vmatprep.subr.mxu0 0.0
      %870 = vmatpush1.msra.mxu0 %v592
      %871 = vmatprep.subr.mxu0 0.0
      %872 = vmatpush1.msra.mxu0 %v597
      %873 = vmatprep.subr.mxu0 0.0
      %874 = vmatpush1.msra.mxu0 %v602
      %875 = vmatprep.subr.mxu0 0.0
      %876 = vmatpush1.msra.mxu0 %v607
      %877 = vmatprep.subr.mxu0 0.0
      %878 = vmatpush1.msra.mxu0 %v612
      %879 = vmatprep.subr.mxu0 0.0
      %880 = vmatpush1.msra.mxu0 %v617
      %881 = vmatprep.subr.mxu0 0.0
      %882 = vmatpush1.msra.mxu0 %v622
      %883 = vmatprep.subr.mxu0 0.0
      %884 = vmatpush1.msra.mxu0 %v627
      %885 = vmatprep.subr.mxu0 0.0
      %886 = vmatpush1.msra.mxu0 %v632
      %887 = vmatprep.subr.mxu0 0.0
      %888 = vmatpush1.msra.mxu0 %v637
      %889 = vmatprep.subr.mxu0 0.0
      %890 = vmatpush1.msra.mxu0 %v642
      %891 = vmatprep.subr.mxu0 0.0
      %892 = vmatpush1.msra.mxu0 %v647
      %893 = vmatprep.subr.mxu0 0.0
      %894 = vmatpush1.msra.mxu0 %v652
      %895 = vmatprep.subr.mxu0 0.0
      %896 = vmatpush1.msra.mxu0 %v657
      %897 = vmatprep.subr.mxu0 0.0
      %898 = vmatpush1.msra.mxu0 %v662
      %899 = vmatprep.subr.mxu0 0.0
      %900 = vmatpush1.msra.mxu0 %v667
      %901 = vmatprep.subr.mxu0 0.0
      %902 = vmatpush1.msra.mxu0 %v672
      %903 = vmatprep.subr.mxu0 0.0
      %904 = vmatpush1.msra.mxu0 %v677
      %905 = vmatprep.subr.mxu0 0.0
      %906 = vmatpush1.msra.mxu0 %v682
      %907 = vmatprep.subr.mxu0 0.0
      %908 = vmatpush1.msra.mxu0 %v687
      %909 = vmatprep.subr.mxu0 0.0
      %910 = vmatpush1.msra.mxu0 %v692
      %911 = vmatprep.mubr.f32.mxu0 %v526
      %912 = vmatmul.mubr.f32.gmra.mrb[0].mxu0 %v525
      %v913 = vpop.f32.mrb[0].mxu0
      %v914 = vadd.f32 0.0, %v913
      %v915 = vpop.f32.mrb[0].mxu0
      %916 = vmatprep.mubr.f32.mxu0 %v528
      %917 = vmatmul.mubr.f32.gmra.mrb[0].mxu0 %v527
      %v918 = vpop.f32.mrb[0].mxu0
      %v919 = vadd.f32 0.0, %v918
      %v920 = vpop.f32.mrb[0].mxu0
      %921 = vdwg.mxu0
      %v922 = vld [vmem:[%s4] sm:$0xff]
      %v923 = vld [vmem:[%s4 + $0x8] sm:$0xff]
      %v924 = vld [vmem:[%s4 + $0x10] sm:$0xff]
      %v925 = vld [vmem:[%s4 + $0x18] sm:$0xff]
      %s926 = scalar_lea.vmem %s4, 32
      %v927 = vld [vmem:[%s926] sm:$0xff]
      %v928 = vld [vmem:[%s926 + $0x8] sm:$0xff]
      %v929 = vld [vmem:[%s926 + $0x10] sm:$0xff]
      %v930 = vld [vmem:[%s926 + $0x18] sm:$0xff]
      %933 = vrot.lane.b32.xlu0 %v760, 64
      %v934 = vpop.permute.xlu0 %933
      %935 = vrot.lane.b32.xlu0 %v766, 64
      %v936 = vpop.permute.xlu0 %935
      %vm939 = vcmask 130048
      %v941 = vsel %vm939, %v927, 0
      %v944 = vsel %vm939, %v928, 0
      %v947 = vsel %vm939, %v929, 0
      %v950 = vsel %vm939, %v930, 0
      %952 = vmatprep.subr.mxu0 0.0
      %953 = vmatpush1.msra.mxu0 %v934
      %954 = vmatprep.subr.mxu0 0.0
      %955 = vmatpush1.msra.mxu0 %v936
      %956 = vmatprep.subr.mxu0 0.0
      %957 = vmatpush1.msra.mxu0 0.0
      %958 = vmatprep.subr.mxu0 0.0
      %959 = vmatpush1.msra.mxu0 0.0
      %960 = vmatprep.subr.mxu0 0.0
      %961 = vmatpush1.msra.mxu0 0.0
      %962 = vmatprep.subr.mxu0 0.0
      %963 = vmatpush1.msra.mxu0 0.0
      %964 = vmatprep.subr.mxu0 0.0
      %965 = vmatpush1.msra.mxu0 0.0
      %966 = vmatprep.subr.mxu0 0.0
      %967 = vmatpush1.msra.mxu0 0.0
      %968 = vmatprep.subr.mxu0 0.0
      %969 = vmatpush1.msra.mxu0 0.0
      %970 = vmatprep.subr.mxu0 0.0
      %971 = vmatpush1.msra.mxu0 0.0
      %972 = vmatprep.subr.mxu0 0.0
      %973 = vmatpush1.msra.mxu0 0.0
      %974 = vmatprep.subr.mxu0 0.0
      %975 = vmatpush1.msra.mxu0 0.0
      %976 = vmatprep.subr.mxu0 0.0
      %977 = vmatpush1.msra.mxu0 0.0
      %978 = vmatprep.subr.mxu0 0.0
      %979 = vmatpush1.msra.mxu0 0.0
      %980 = vmatprep.subr.mxu0 0.0
      %981 = vmatpush1.msra.mxu0 0.0
      %982 = vmatprep.subr.mxu0 0.0
      %983 = vmatpush1.msra.mxu0 0.0
      %984 = vmatprep.subr.mxu0 0.0
      %985 = vmatpush1.msra.mxu0 0.0
      %986 = vmatprep.subr.mxu0 0.0
      %987 = vmatpush1.msra.mxu0 0.0
      %988 = vmatprep.subr.mxu0 0.0
      %989 = vmatpush1.msra.mxu0 0.0
      %990 = vmatprep.subr.mxu0 0.0
      %991 = vmatpush1.msra.mxu0 0.0
      %992 = vmatprep.subr.mxu0 0.0
      %993 = vmatpush1.msra.mxu0 0.0
      %994 = vmatprep.subr.mxu0 0.0
      %995 = vmatpush1.msra.mxu0 0.0
      %996 = vmatprep.subr.mxu0 0.0
      %997 = vmatpush1.msra.mxu0 0.0
      %998 = vmatprep.subr.mxu0 0.0
      %999 = vmatpush1.msra.mxu0 0.0
      %1000 = vmatprep.subr.mxu0 0.0
      %1001 = vmatpush1.msra.mxu0 0.0
      %1002 = vmatprep.subr.mxu0 0.0
      %1003 = vmatpush1.msra.mxu0 0.0
      %1004 = vmatprep.subr.mxu0 0.0
      %1005 = vmatpush1.msra.mxu0 0.0
      %1006 = vmatprep.subr.mxu0 0.0
      %1007 = vmatpush1.msra.mxu0 0.0
      %1008 = vmatprep.subr.mxu0 0.0
      %1009 = vmatpush1.msra.mxu0 0.0
      %1010 = vmatprep.subr.mxu0 0.0
      %1011 = vmatpush1.msra.mxu0 0.0
      %1012 = vmatprep.subr.mxu0 0.0
      %1013 = vmatpush1.msra.mxu0 0.0
      %1014 = vmatprep.subr.mxu0 0.0
      %1015 = vmatpush1.msra.mxu0 0.0
      %1016 = vmatprep.mubr.f32.mxu0 0.0
      %1017 = vmatmul.mubr.f32.gmra.mrb[0].mxu0 %v941
      %v1018 = vpop.f32.mrb[0].mxu0
      %v1019 = vadd.f32 0.0, %v1018
      %v1020 = vpop.f32.mrb[0].mxu0
      %1021 = vmatprep.mubr.f32.mxu0 0.0
      %1022 = vmatmul.mubr.f32.gmra.mrb[0].mxu0 %v944
      %v1023 = vpop.f32.mrb[0].mxu0
      %v1024 = vadd.f32 0.0, %v1023
      %v1025 = vpop.f32.mrb[0].mxu0
      %1026 = vmatprep.mubr.f32.mxu0 0.0
      %1027 = vmatmul.mubr.f32.gmra.mrb[0].mxu0 %v947
      %v1028 = vpop.f32.mrb[0].mxu0
      %v1029 = vadd.f32 0.0, %v1028
      %v1030 = vpop.f32.mrb[0].mxu0
      %1031 = vmatprep.mubr.f32.mxu0 0.0
      %1032 = vmatmul.mubr.f32.gmra.mrb[0].mxu0 %v950
      %v1033 = vpop.f32.mrb[0].mxu0
      %v1034 = vadd.f32 0.0, %v1033
      %v1035 = vpop.f32.mrb[0].mxu0
      %1036 = vdwg.mxu0
      %v1038 = vsel %vm939, %v922, 0
      %v1041 = vsel %vm939, %v923, 0
      %v1044 = vsel %vm939, %v924, 0
      %v1047 = vsel %vm939, %v925, 0
      %1049 = vmatprep.subr.mxu0 0.0
      %1050 = vmatpush1.msra.mxu0 %v760
      %1051 = vmatprep.subr.mxu0 0.0
      %1052 = vmatpush1.msra.mxu0 %v766
      %1053 = vmatprep.subr.mxu0 0.0
      %1054 = vmatpush1.msra.mxu0 0.0
      %1055 = vmatprep.subr.mxu0 0.0
      %1056 = vmatpush1.msra.mxu0 0.0
      %1057 = vmatprep.subr.mxu0 0.0
      %1058 = vmatpush1.msra.mxu0 0.0
      %1059 = vmatprep.subr.mxu0 0.0
      %1060 = vmatpush1.msra.mxu0 0.0
      %1061 = vmatprep.subr.mxu0 0.0
      %1062 = vmatpush1.msra.mxu0 0.0
      %1063 = vmatprep.subr.mxu0 0.0
      %1064 = vmatpush1.msra.mxu0 0.0
      %1065 = vmatprep.subr.mxu0 0.0
      %1066 = vmatpush1.msra.mxu0 0.0
      %1067 = vmatprep.subr.mxu0 0.0
      %1068 = vmatpush1.msra.mxu0 0.0
      %1069 = vmatprep.subr.mxu0 0.0
      %1070 = vmatpush1.msra.mxu0 0.0
      %1071 = vmatprep.subr.mxu0 0.0
      %1072 = vmatpush1.msra.mxu0 0.0
      %1073 = vmatprep.subr.mxu0 0.0
      %1074 = vmatpush1.msra.mxu0 0.0
      %1075 = vmatprep.subr.mxu0 0.0
      %1076 = vmatpush1.msra.mxu0 0.0
      %1077 = vmatprep.subr.mxu0 0.0
      %1078 = vmatpush1.msra.mxu0 0.0
      %1079 = vmatprep.subr.mxu0 0.0
      %1080 = vmatpush1.msra.mxu0 0.0
      %1081 = vmatprep.subr.mxu0 0.0
      %1082 = vmatpush1.msra.mxu0 0.0
      %1083 = vmatprep.subr.mxu0 0.0
      %1084 = vmatpush1.msra.mxu0 0.0
      %1085 = vmatprep.subr.mxu0 0.0
      %1086 = vmatpush1.msra.mxu0 0.0
      %1087 = vmatprep.subr.mxu0 0.0
      %1088 = vmatpush1.msra.mxu0 0.0
      %1089 = vmatprep.subr.mxu0 0.0
      %1090 = vmatpush1.msra.mxu0 0.0
      %1091 = vmatprep.subr.mxu0 0.0
      %1092 = vmatpush1.msra.mxu0 0.0
      %1093 = vmatprep.subr.mxu0 0.0
      %1094 = vmatpush1.msra.mxu0 0.0
      %1095 = vmatprep.subr.mxu0 0.0
      %1096 = vmatpush1.msra.mxu0 0.0
      %1097 = vmatprep.subr.mxu0 0.0
      %1098 = vmatpush1.msra.mxu0 0.0
      %1099 = vmatprep.subr.mxu0 0.0
      %1100 = vmatpush1.msra.mxu0 0.0
      %1101 = vmatprep.subr.mxu0 0.0
      %1102 = vmatpush1.msra.mxu0 0.0
      %1103 = vmatprep.subr.mxu0 0.0
      %1104 = vmatpush1.msra.mxu0 0.0
      %1105 = vmatprep.subr.mxu0 0.0
      %1106 = vmatpush1.msra.mxu0 0.0
      %1107 = vmatprep.subr.mxu0 0.0
      %1108 = vmatpush1.msra.mxu0 0.0
      %1109 = vmatprep.subr.mxu0 0.0
      %1110 = vmatpush1.msra.mxu0 0.0
      %1111 = vmatprep.subr.mxu0 0.0
      %1112 = vmatpush1.msra.mxu0 0.0
      %1113 = vmatprep.mubr.f32.mxu0 0.0
      %1114 = vmatmul.mubr.f32.gmra.mrb[0].mxu0 %v1038
      %v1115 = vpop.f32.mrb[0].mxu0
      %v1116 = vadd.f32 %v1019, %v1115
      %v1117 = vpop.f32.mrb[0].mxu0
      %1118 = vmatprep.mubr.f32.mxu0 0.0
      %1119 = vmatmul.mubr.f32.gmra.mrb[0].mxu0 %v1041
      %v1120 = vpop.f32.mrb[0].mxu0
      %v1121 = vadd.f32 %v1024, %v1120
      %v1122 = vpop.f32.mrb[0].mxu0
      %1123 = vmatprep.mubr.f32.mxu0 0.0
      %1124 = vmatmul.mubr.f32.gmra.mrb[0].mxu0 %v1044
      %v1125 = vpop.f32.mrb[0].mxu0
      %v1126 = vadd.f32 %v1029, %v1125
      %v1127 = vpop.f32.mrb[0].mxu0
      %1128 = vmatprep.mubr.f32.mxu0 0.0
      %1129 = vmatmul.mubr.f32.gmra.mrb[0].mxu0 %v1047
      %v1130 = vpop.f32.mrb[0].mxu0
      %v1131 = vadd.f32 %v1034, %v1130
      %v1132 = vpop.f32.mrb[0].mxu0
      %1133 = vdwg.mxu0
      %s1134 = scalar_lea.vmem %s4, 64
      %v1135 = vld [vmem:[%s1134] sm:$0xff]
      %v1136 = vld [vmem:[%s1134 + $0x8] sm:$0xff]
      %v1137 = vld [vmem:[%s1134 + $0x10] sm:$0xff]
      %v1138 = vld [vmem:[%s1134 + $0x18] sm:$0xff]
      %v1140 = vsel %vm939, %v1135, 0
      %v1143 = vsel %vm939, %v1136, 0
      %v1146 = vsel %vm939, %v1137, 0
      %v1149 = vsel %vm939, %v1138, 0
      %1151 = vmatprep.subr.mxu0 0.0
      %1152 = vmatpush1.msra.mxu0 %v762
      %1153 = vmatprep.subr.mxu0 0.0
      %1154 = vmatpush1.msra.mxu0 %v768
      %1155 = vmatprep.subr.mxu0 0.0
      %1156 = vmatpush1.msra.mxu0 0.0
      %1157 = vmatprep.subr.mxu0 0.0
      %1158 = vmatpush1.msra.mxu0 0.0
      %1159 = vmatprep.subr.mxu0 0.0
      %1160 = vmatpush1.msra.mxu0 0.0
      %1161 = vmatprep.subr.mxu0 0.0
      %1162 = vmatpush1.msra.mxu0 0.0
      %1163 = vmatprep.subr.mxu0 0.0
      %1164 = vmatpush1.msra.mxu0 0.0
      %1165 = vmatprep.subr.mxu0 0.0
      %1166 = vmatpush1.msra.mxu0 0.0
      %1167 = vmatprep.subr.mxu0 0.0
      %1168 = vmatpush1.msra.mxu0 0.0
      %1169 = vmatprep.subr.mxu0 0.0
      %1170 = vmatpush1.msra.mxu0 0.0
      %1171 = vmatprep.subr.mxu0 0.0
      %1172 = vmatpush1.msra.mxu0 0.0
      %1173 = vmatprep.subr.mxu0 0.0
      %1174 = vmatpush1.msra.mxu0 0.0
      %1175 = vmatprep.subr.mxu0 0.0
      %1176 = vmatpush1.msra.mxu0 0.0
      %1177 = vmatprep.subr.mxu0 0.0
      %1178 = vmatpush1.msra.mxu0 0.0
      %1179 = vmatprep.subr.mxu0 0.0
      %1180 = vmatpush1.msra.mxu0 0.0
      %1181 = vmatprep.subr.mxu0 0.0
      %1182 = vmatpush1.msra.mxu0 0.0
      %1183 = vmatprep.subr.mxu0 0.0
      %1184 = vmatpush1.msra.mxu0 0.0
      %1185 = vmatprep.subr.mxu0 0.0
      %1186 = vmatpush1.msra.mxu0 0.0
      %1187 = vmatprep.subr.mxu0 0.0
      %1188 = vmatpush1.msra.mxu0 0.0
      %1189 = vmatprep.subr.mxu0 0.0
      %1190 = vmatpush1.msra.mxu0 0.0
      %1191 = vmatprep.subr.mxu0 0.0
      %1192 = vmatpush1.msra.mxu0 0.0
      %1193 = vmatprep.subr.mxu0 0.0
      %1194 = vmatpush1.msra.mxu0 0.0
      %1195 = vmatprep.subr.mxu0 0.0
      %1196 = vmatpush1.msra.mxu0 0.0
      %1197 = vmatprep.subr.mxu0 0.0
      %1198 = vmatpush1.msra.mxu0 0.0
      %1199 = vmatprep.subr.mxu0 0.0
      %1200 = vmatpush1.msra.mxu0 0.0
      %1201 = vmatprep.subr.mxu0 0.0
      %1202 = vmatpush1.msra.mxu0 0.0
      %1203 = vmatprep.subr.mxu0 0.0
      %1204 = vmatpush1.msra.mxu0 0.0
      %1205 = vmatprep.subr.mxu0 0.0
      %1206 = vmatpush1.msra.mxu0 0.0
      %1207 = vmatprep.subr.mxu0 0.0
      %1208 = vmatpush1.msra.mxu0 0.0
      %1209 = vmatprep.subr.mxu0 0.0
      %1210 = vmatpush1.msra.mxu0 0.0
      %1211 = vmatprep.subr.mxu0 0.0
      %1212 = vmatpush1.msra.mxu0 0.0
      %1213 = vmatprep.subr.mxu0 0.0
      %1214 = vmatpush1.msra.mxu0 0.0
      %1215 = vmatprep.mubr.f32.mxu0 0.0
      %1216 = vmatmul.mubr.f32.gmra.mrb[0].mxu0 %v1140
      %v1217 = vpop.f32.mrb[0].mxu0
      %v1218 = vadd.f32 0.0, %v1217
      %v1219 = vpop.f32.mrb[0].mxu0
      %1220 = vmatprep.mubr.f32.mxu0 0.0
      %1221 = vmatmul.mubr.f32.gmra.mrb[0].mxu0 %v1143
      %v1222 = vpop.f32.mrb[0].mxu0
      %v1223 = vadd.f32 0.0, %v1222
      %v1224 = vpop.f32.mrb[0].mxu0
      %1225 = vmatprep.mubr.f32.mxu0 0.0
      %1226 = vmatmul.mubr.f32.gmra.mrb[0].mxu0 %v1146
      %v1227 = vpop.f32.mrb[0].mxu0
      %v1228 = vadd.f32 0.0, %v1227
      %v1229 = vpop.f32.mrb[0].mxu0
      %1230 = vmatprep.mubr.f32.mxu0 0.0
      %1231 = vmatmul.mubr.f32.gmra.mrb[0].mxu0 %v1149
      %v1232 = vpop.f32.mrb[0].mxu0
      %v1233 = vadd.f32 0.0, %v1232
      %v1234 = vpop.f32.mrb[0].mxu0
      %1235 = vdwg.mxu0
      %v1236 = vadd.f32 %v1116, %v1218
      %v1237 = vadd.f32 %v1121, %v1223
      %v1238 = vadd.f32 %v1126, %v1228
      %v1239 = vadd.f32 %v1131, %v1233
      %s1240 = scalar_lea.vmem %s4, 96
      %v1241 = vld [vmem:[%s1240] sm:$0xff]
      %v1242 = vld [vmem:[%s1240 + $0x8] sm:$0xff]
      %v1243 = vld [vmem:[%s1240 + $0x10] sm:$0xff]
      %v1244 = vld [vmem:[%s1240 + $0x18] sm:$0xff]
      %1247 = vrot.lane.b32.xlu0 %v762, 64
      %v1248 = vpop.permute.xlu0 %1247
      %1249 = vrot.lane.b32.xlu0 %v768, 64
      %v1250 = vpop.permute.xlu0 %1249
      %v1254 = vsel %vm939, %v1241, 0
      %v1257 = vsel %vm939, %v1242, 0
      %v1260 = vsel %vm939, %v1243, 0
      %v1263 = vsel %vm939, %v1244, 0
      %1265 = vmatprep.subr.mxu0 0.0
      %1266 = vmatpush1.msra.mxu0 %v1248
      %1267 = vmatprep.subr.mxu0 0.0
      %1268 = vmatpush1.msra.mxu0 %v1250
      %1269 = vmatprep.subr.mxu0 0.0
      %1270 = vmatpush1.msra.mxu0 0.0
      %1271 = vmatprep.subr.mxu0 0.0
      %1272 = vmatpush1.msra.mxu0 0.0
      %1273 = vmatprep.subr.mxu0 0.0
      %1274 = vmatpush1.msra.mxu0 0.0
      %1275 = vmatprep.subr.mxu0 0.0
      %1276 = vmatpush1.msra.mxu0 0.0
      %1277 = vmatprep.subr.mxu0 0.0
      %1278 = vmatpush1.msra.mxu0 0.0
      %1279 = vmatprep.subr.mxu0 0.0
      %1280 = vmatpush1.msra.mxu0 0.0
      %1281 = vmatprep.subr.mxu0 0.0
      %1282 = vmatpush1.msra.mxu0 0.0
      %1283 = vmatprep.subr.mxu0 0.0
      %1284 = vmatpush1.msra.mxu0 0.0
      %1285 = vmatprep.subr.mxu0 0.0
      %1286 = vmatpush1.msra.mxu0 0.0
      %1287 = vmatprep.subr.mxu0 0.0
      %1288 = vmatpush1.msra.mxu0 0.0
      %1289 = vmatprep.subr.mxu0 0.0
      %1290 = vmatpush1.msra.mxu0 0.0
      %1291 = vmatprep.subr.mxu0 0.0
      %1292 = vmatpush1.msra.mxu0 0.0
      %1293 = vmatprep.subr.mxu0 0.0
      %1294 = vmatpush1.msra.mxu0 0.0
      %1295 = vmatprep.subr.mxu0 0.0
      %1296 = vmatpush1.msra.mxu0 0.0
      %1297 = vmatprep.subr.mxu0 0.0
      %1298 = vmatpush1.msra.mxu0 0.0
      %1299 = vmatprep.subr.mxu0 0.0
      %1300 = vmatpush1.msra.mxu0 0.0
      %1301 = vmatprep.subr.mxu0 0.0
      %1302 = vmatpush1.msra.mxu0 0.0
      %1303 = vmatprep.subr.mxu0 0.0
      %1304 = vmatpush1.msra.mxu0 0.0
      %1305 = vmatprep.subr.mxu0 0.0
      %1306 = vmatpush1.msra.mxu0 0.0
      %1307 = vmatprep.subr.mxu0 0.0
      %1308 = vmatpush1.msra.mxu0 0.0
      %1309 = vmatprep.subr.mxu0 0.0
      %1310 = vmatpush1.msra.mxu0 0.0
      %1311 = vmatprep.subr.mxu0 0.0
      %1312 = vmatpush1.msra.mxu0 0.0
      %1313 = vmatprep.subr.mxu0 0.0
      %1314 = vmatpush1.msra.mxu0 0.0
      %1315 = vmatprep.subr.mxu0 0.0
      %1316 = vmatpush1.msra.mxu0 0.0
      %1317 = vmatprep.subr.mxu0 0.0
      %1318 = vmatpush1.msra.mxu0 0.0
      %1319 = vmatprep.subr.mxu0 0.0
      %1320 = vmatpush1.msra.mxu0 0.0
      %1321 = vmatprep.subr.mxu0 0.0
      %1322 = vmatpush1.msra.mxu0 0.0
      %1323 = vmatprep.subr.mxu0 0.0
      %1324 = vmatpush1.msra.mxu0 0.0
      %1325 = vmatprep.subr.mxu0 0.0
      %1326 = vmatpush1.msra.mxu0 0.0
      %1327 = vmatprep.subr.mxu0 0.0
      %1328 = vmatpush1.msra.mxu0 0.0
      %1329 = vmatprep.mubr.f32.mxu0 0.0
      %1330 = vmatmul.mubr.f32.gmra.mrb[0].mxu0 %v1254
      %v1331 = vpop.f32.mrb[0].mxu0
      %v1332 = vadd.f32 0.0, %v1331
      %v1333 = vpop.f32.mrb[0].mxu0
      %1334 = vmatprep.mubr.f32.mxu0 0.0
      %1335 = vmatmul.mubr.f32.gmra.mrb[0].mxu0 %v1257
      %v1336 = vpop.f32.mrb[0].mxu0
      %v1337 = vadd.f32 0.0, %v1336
      %v1338 = vpop.f32.mrb[0].mxu0
      %1339 = vmatprep.mubr.f32.mxu0 0.0
      %1340 = vmatmul.mubr.f32.gmra.mrb[0].mxu0 %v1260
      %v1341 = vpop.f32.mrb[0].mxu0
      %v1342 = vadd.f32 0.0, %v1341
      %v1343 = vpop.f32.mrb[0].mxu0
      %1344 = vmatprep.mubr.f32.mxu0 0.0
      %1345 = vmatmul.mubr.f32.gmra.mrb[0].mxu0 %v1263
      %v1346 = vpop.f32.mrb[0].mxu0
      %v1347 = vadd.f32 0.0, %v1346
      %v1348 = vpop.f32.mrb[0].mxu0
      %1349 = vdwg.mxu0
      %v1350 = vadd.f32 %v1236, %v1332
      %v1351 = vadd.f32 %v1237, %v1337
      %v1352 = vadd.f32 %v1238, %v1342
      %v1353 = vadd.f32 %v1239, %v1347
      %s1354 = scalar_lea.vmem %s4, 128
      %v1355 = vld [vmem:[%s1354] sm:$0xff]
      %v1356 = vld [vmem:[%s1354 + $0x8] sm:$0xff]
      %v1357 = vld [vmem:[%s1354 + $0x10] sm:$0xff]
      %v1358 = vld [vmem:[%s1354 + $0x18] sm:$0xff]
      %v1360 = vsel %vm939, %v1355, 0
      %v1363 = vsel %vm939, %v1356, 0
      %v1366 = vsel %vm939, %v1357, 0
      %v1369 = vsel %vm939, %v1358, 0
      %1371 = vmatprep.subr.mxu0 0.0
      %1372 = vmatpush1.msra.mxu0 %v837
      %1373 = vmatprep.subr.mxu0 0.0
      %1374 = vmatpush1.msra.mxu0 %v843
      %1375 = vmatprep.subr.mxu0 0.0
      %1376 = vmatpush1.msra.mxu0 0.0
      %1377 = vmatprep.subr.mxu0 0.0
      %1378 = vmatpush1.msra.mxu0 0.0
      %1379 = vmatprep.subr.mxu0 0.0
      %1380 = vmatpush1.msra.mxu0 0.0
      %1381 = vmatprep.subr.mxu0 0.0
      %1382 = vmatpush1.msra.mxu0 0.0
      %1383 = vmatprep.subr.mxu0 0.0
      %1384 = vmatpush1.msra.mxu0 0.0
      %1385 = vmatprep.subr.mxu0 0.0
      %1386 = vmatpush1.msra.mxu0 0.0
      %1387 = vmatprep.subr.mxu0 0.0
      %1388 = vmatpush1.msra.mxu0 0.0
      %1389 = vmatprep.subr.mxu0 0.0
      %1390 = vmatpush1.msra.mxu0 0.0
      %1391 = vmatprep.subr.mxu0 0.0
      %1392 = vmatpush1.msra.mxu0 0.0
      %1393 = vmatprep.subr.mxu0 0.0
      %1394 = vmatpush1.msra.mxu0 0.0
      %1395 = vmatprep.subr.mxu0 0.0
      %1396 = vmatpush1.msra.mxu0 0.0
      %1397 = vmatprep.subr.mxu0 0.0
      %1398 = vmatpush1.msra.mxu0 0.0
      %1399 = vmatprep.subr.mxu0 0.0
      %1400 = vmatpush1.msra.mxu0 0.0
      %1401 = vmatprep.subr.mxu0 0.0
      %1402 = vmatpush1.msra.mxu0 0.0
      %1403 = vmatprep.subr.mxu0 0.0
      %1404 = vmatpush1.msra.mxu0 0.0
      %1405 = vmatprep.subr.mxu0 0.0
      %1406 = vmatpush1.msra.mxu0 0.0
      %1407 = vmatprep.subr.mxu0 0.0
      %1408 = vmatpush1.msra.mxu0 0.0
      %1409 = vmatprep.subr.mxu0 0.0
      %1410 = vmatpush1.msra.mxu0 0.0
      %1411 = vmatprep.subr.mxu0 0.0
      %1412 = vmatpush1.msra.mxu0 0.0
      %1413 = vmatprep.subr.mxu0 0.0
      %1414 = vmatpush1.msra.mxu0 0.0
      %1415 = vmatprep.subr.mxu0 0.0
      %1416 = vmatpush1.msra.mxu0 0.0
      %1417 = vmatprep.subr.mxu0 0.0
      %1418 = vmatpush1.msra.mxu0 0.0
      %1419 = vmatprep.subr.mxu0 0.0
      %1420 = vmatpush1.msra.mxu0 0.0
      %1421 = vmatprep.subr.mxu0 0.0
      %1422 = vmatpush1.msra.mxu0 0.0
      %1423 = vmatprep.subr.mxu0 0.0
      %1424 = vmatpush1.msra.mxu0 0.0
      %1425 = vmatprep.subr.mxu0 0.0
      %1426 = vmatpush1.msra.mxu0 0.0
      %1427 = vmatprep.subr.mxu0 0.0
      %1428 = vmatpush1.msra.mxu0 0.0
      %1429 = vmatprep.subr.mxu0 0.0
      %1430 = vmatpush1.msra.mxu0 0.0
      %1431 = vmatprep.subr.mxu0 0.0
      %1432 = vmatpush1.msra.mxu0 0.0
      %1433 = vmatprep.subr.mxu0 0.0
      %1434 = vmatpush1.msra.mxu0 0.0
      %1435 = vmatprep.mubr.f32.mxu0 0.0
      %1436 = vmatmul.mubr.f32.gmra.mrb[0].mxu0 %v1360
      %v1437 = vpop.f32.mrb[0].mxu0
      %v1438 = vadd.f32 0.0, %v1437
      %v1439 = vpop.f32.mrb[0].mxu0
      %1440 = vmatprep.mubr.f32.mxu0 0.0
      %1441 = vmatmul.mubr.f32.gmra.mrb[0].mxu0 %v1363
      %v1442 = vpop.f32.mrb[0].mxu0
      %v1443 = vadd.f32 0.0, %v1442
      %v1444 = vpop.f32.mrb[0].mxu0
      %1445 = vmatprep.mubr.f32.mxu0 0.0
      %1446 = vmatmul.mubr.f32.gmra.mrb[0].mxu0 %v1366
      %v1447 = vpop.f32.mrb[0].mxu0
      %v1448 = vadd.f32 0.0, %v1447
      %v1449 = vpop.f32.mrb[0].mxu0
      %1450 = vmatprep.mubr.f32.mxu0 0.0
      %1451 = vmatmul.mubr.f32.gmra.mrb[0].mxu0 %v1369
      %v1452 = vpop.f32.mrb[0].mxu0
      %v1453 = vadd.f32 0.0, %v1452
      %v1454 = vpop.f32.mrb[0].mxu0
      %1455 = vdwg.mxu0
      %v1456 = vadd.f32 %v1350, %v1438
      %v1457 = vadd.f32 %v1351, %v1443
      %v1458 = vadd.f32 %v1352, %v1448
      %v1459 = vadd.f32 %v1353, %v1453
      %s1460 = scalar_lea.vmem %s4, 160
      %v1461 = vld [vmem:[%s1460] sm:$0xff]
      %v1462 = vld [vmem:[%s1460 + $0x8] sm:$0xff]
      %v1463 = vld [vmem:[%s1460 + $0x10] sm:$0xff]
      %v1464 = vld [vmem:[%s1460 + $0x18] sm:$0xff]
      %1467 = vrot.lane.b32.xlu0 %v837, 64
      %v1468 = vpop.permute.xlu0 %1467
      %1469 = vrot.lane.b32.xlu0 %v843, 64
      %v1470 = vpop.permute.xlu0 %1469
      %v1474 = vsel %vm939, %v1461, 0
      %v1477 = vsel %vm939, %v1462, 0
      %v1480 = vsel %vm939, %v1463, 0
      %v1483 = vsel %vm939, %v1464, 0
      %1485 = vmatprep.subr.mxu0 0.0
      %1486 = vmatpush1.msra.mxu0 %v1468
      %1487 = vmatprep.subr.mxu0 0.0
      %1488 = vmatpush1.msra.mxu0 %v1470
      %1489 = vmatprep.subr.mxu0 0.0
      %1490 = vmatpush1.msra.mxu0 0.0
      %1491 = vmatprep.subr.mxu0 0.0
      %1492 = vmatpush1.msra.mxu0 0.0
      %1493 = vmatprep.subr.mxu0 0.0
      %1494 = vmatpush1.msra.mxu0 0.0
      %1495 = vmatprep.subr.mxu0 0.0
      %1496 = vmatpush1.msra.mxu0 0.0
      %1497 = vmatprep.subr.mxu0 0.0
      %1498 = vmatpush1.msra.mxu0 0.0
      %1499 = vmatprep.subr.mxu0 0.0
      %1500 = vmatpush1.msra.mxu0 0.0
      %1501 = vmatprep.subr.mxu0 0.0
      %1502 = vmatpush1.msra.mxu0 0.0
      %1503 = vmatprep.subr.mxu0 0.0
      %1504 = vmatpush1.msra.mxu0 0.0
      %1505 = vmatprep.subr.mxu0 0.0
      %1506 = vmatpush1.msra.mxu0 0.0
      %1507 = vmatprep.subr.mxu0 0.0
      %1508 = vmatpush1.msra.mxu0 0.0
      %1509 = vmatprep.subr.mxu0 0.0
      %1510 = vmatpush1.msra.mxu0 0.0
      %1511 = vmatprep.subr.mxu0 0.0
      %1512 = vmatpush1.msra.mxu0 0.0
      %1513 = vmatprep.subr.mxu0 0.0
      %1514 = vmatpush1.msra.mxu0 0.0
      %1515 = vmatprep.subr.mxu0 0.0
      %1516 = vmatpush1.msra.mxu0 0.0
      %1517 = vmatprep.subr.mxu0 0.0
      %1518 = vmatpush1.msra.mxu0 0.0
      %1519 = vmatprep.subr.mxu0 0.0
      %1520 = vmatpush1.msra.mxu0 0.0
      %1521 = vmatprep.subr.mxu0 0.0
      %1522 = vmatpush1.msra.mxu0 0.0
      %1523 = vmatprep.subr.mxu0 0.0
      %1524 = vmatpush1.msra.mxu0 0.0
      %1525 = vmatprep.subr.mxu0 0.0
      %1526 = vmatpush1.msra.mxu0 0.0
      %1527 = vmatprep.subr.mxu0 0.0
      %1528 = vmatpush1.msra.mxu0 0.0
      %1529 = vmatprep.subr.mxu0 0.0
      %1530 = vmatpush1.msra.mxu0 0.0
      %1531 = vmatprep.subr.mxu0 0.0
      %1532 = vmatpush1.msra.mxu0 0.0
      %1533 = vmatprep.subr.mxu0 0.0
      %1534 = vmatpush1.msra.mxu0 0.0
      %1535 = vmatprep.subr.mxu0 0.0
      %1536 = vmatpush1.msra.mxu0 0.0
      %1537 = vmatprep.subr.mxu0 0.0
      %1538 = vmatpush1.msra.mxu0 0.0
      %1539 = vmatprep.subr.mxu0 0.0
      %1540 = vmatpush1.msra.mxu0 0.0
      %1541 = vmatprep.subr.mxu0 0.0
      %1542 = vmatpush1.msra.mxu0 0.0
      %1543 = vmatprep.subr.mxu0 0.0
      %1544 = vmatpush1.msra.mxu0 0.0
      %1545 = vmatprep.subr.mxu0 0.0
      %1546 = vmatpush1.msra.mxu0 0.0
      %1547 = vmatprep.subr.mxu0 0.0
      %1548 = vmatpush1.msra.mxu0 0.0
      %1549 = vmatprep.mubr.f32.mxu0 0.0
      %1550 = vmatmul.mubr.f32.gmra.mrb[0].mxu0 %v1474
      %v1551 = vpop.f32.mrb[0].mxu0
      %v1552 = vadd.f32 0.0, %v1551
      %v1553 = vpop.f32.mrb[0].mxu0
      %1554 = vmatprep.mubr.f32.mxu0 0.0
      %1555 = vmatmul.mubr.f32.gmra.mrb[0].mxu0 %v1477
      %v1556 = vpop.f32.mrb[0].mxu0
      %v1557 = vadd.f32 0.0, %v1556
      %v1558 = vpop.f32.mrb[0].mxu0
      %1559 = vmatprep.mubr.f32.mxu0 0.0
      %1560 = vmatmul.mubr.f32.gmra.mrb[0].mxu0 %v1480
      %v1561 = vpop.f32.mrb[0].mxu0
      %v1562 = vadd.f32 0.0, %v1561
      %v1563 = vpop.f32.mrb[0].mxu0
      %1564 = vmatprep.mubr.f32.mxu0 0.0
      %1565 = vmatmul.mubr.f32.gmra.mrb[0].mxu0 %v1483
      %v1566 = vpop.f32.mrb[0].mxu0
      %v1567 = vadd.f32 0.0, %v1566
      %v1568 = vpop.f32.mrb[0].mxu0
      %1569 = vdwg.mxu0
      %v1570 = vadd.f32 %v1456, %v1552
      %v1571 = vadd.f32 %v1457, %v1557
      %v1572 = vadd.f32 %v1458, %v1562
      %v1573 = vadd.f32 %v1459, %v1567
      %s1574 = scalar_lea.vmem %s4, 192
      %v1575 = vld [vmem:[%s1574] sm:$0xff]
      %v1576 = vld [vmem:[%s1574 + $0x8] sm:$0xff]
      %v1577 = vld [vmem:[%s1574 + $0x10] sm:$0xff]
      %v1578 = vld [vmem:[%s1574 + $0x18] sm:$0xff]
      %v1580 = vsel %vm939, %v1575, 0
      %v1583 = vsel %vm939, %v1576, 0
      %v1586 = vsel %vm939, %v1577, 0
      %v1589 = vsel %vm939, %v1578, 0
      %1591 = vmatprep.subr.mxu0 0.0
      %1592 = vmatpush1.msra.mxu0 %v839
      %1593 = vmatprep.subr.mxu0 0.0
      %1594 = vmatpush1.msra.mxu0 %v845
      %1595 = vmatprep.subr.mxu0 0.0
      %1596 = vmatpush1.msra.mxu0 0.0
      %1597 = vmatprep.subr.mxu0 0.0
      %1598 = vmatpush1.msra.mxu0 0.0
      %1599 = vmatprep.subr.mxu0 0.0
      %1600 = vmatpush1.msra.mxu0 0.0
      %1601 = vmatprep.subr.mxu0 0.0
      %1602 = vmatpush1.msra.mxu0 0.0
      %1603 = vmatprep.subr.mxu0 0.0
      %1604 = vmatpush1.msra.mxu0 0.0
      %1605 = vmatprep.subr.mxu0 0.0
      %1606 = vmatpush1.msra.mxu0 0.0
      %1607 = vmatprep.subr.mxu0 0.0
      %1608 = vmatpush1.msra.mxu0 0.0
      %1609 = vmatprep.subr.mxu0 0.0
      %1610 = vmatpush1.msra.mxu0 0.0
      %1611 = vmatprep.subr.mxu0 0.0
      %1612 = vmatpush1.msra.mxu0 0.0
      %1613 = vmatprep.subr.mxu0 0.0
      %1614 = vmatpush1.msra.mxu0 0.0
      %1615 = vmatprep.subr.mxu0 0.0
      %1616 = vmatpush1.msra.mxu0 0.0
      %1617 = vmatprep.subr.mxu0 0.0
      %1618 = vmatpush1.msra.mxu0 0.0
      %1619 = vmatprep.subr.mxu0 0.0
      %1620 = vmatpush1.msra.mxu0 0.0
      %1621 = vmatprep.subr.mxu0 0.0
      %1622 = vmatpush1.msra.mxu0 0.0
      %1623 = vmatprep.subr.mxu0 0.0
      %1624 = vmatpush1.msra.mxu0 0.0
      %1625 = vmatprep.subr.mxu0 0.0
      %1626 = vmatpush1.msra.mxu0 0.0
      %1627 = vmatprep.subr.mxu0 0.0
      %1628 = vmatpush1.msra.mxu0 0.0
      %1629 = vmatprep.subr.mxu0 0.0
      %1630 = vmatpush1.msra.mxu0 0.0
      %1631 = vmatprep.subr.mxu0 0.0
      %1632 = vmatpush1.msra.mxu0 0.0
      %1633 = vmatprep.subr.mxu0 0.0
      %1634 = vmatpush1.msra.mxu0 0.0
      %1635 = vmatprep.subr.mxu0 0.0
      %1636 = vmatpush1.msra.mxu0 0.0
      %1637 = vmatprep.subr.mxu0 0.0
      %1638 = vmatpush1.msra.mxu0 0.0
      %1639 = vmatprep.subr.mxu0 0.0
      %1640 = vmatpush1.msra.mxu0 0.0
      %1641 = vmatprep.subr.mxu0 0.0
      %1642 = vmatpush1.msra.mxu0 0.0
      %1643 = vmatprep.subr.mxu0 0.0
      %1644 = vmatpush1.msra.mxu0 0.0
      %1645 = vmatprep.subr.mxu0 0.0
      %1646 = vmatpush1.msra.mxu0 0.0
      %1647 = vmatprep.subr.mxu0 0.0
      %1648 = vmatpush1.msra.mxu0 0.0
      %1649 = vmatprep.subr.mxu0 0.0
      %1650 = vmatpush1.msra.mxu0 0.0
      %1651 = vmatprep.subr.mxu0 0.0
      %1652 = vmatpush1.msra.mxu0 0.0
      %1653 = vmatprep.subr.mxu0 0.0
      %1654 = vmatpush1.msra.mxu0 0.0
      %1655 = vmatprep.mubr.f32.mxu0 0.0
      %1656 = vmatmul.mubr.f32.gmra.mrb[0].mxu0 %v1580
      %v1657 = vpop.f32.mrb[0].mxu0
      %v1658 = vadd.f32 0.0, %v1657
      %v1659 = vpop.f32.mrb[0].mxu0
      %1660 = vmatprep.mubr.f32.mxu0 0.0
      %1661 = vmatmul.mubr.f32.gmra.mrb[0].mxu0 %v1583
      %v1662 = vpop.f32.mrb[0].mxu0
      %v1663 = vadd.f32 0.0, %v1662
      %v1664 = vpop.f32.mrb[0].mxu0
      %1665 = vmatprep.mubr.f32.mxu0 0.0
      %1666 = vmatmul.mubr.f32.gmra.mrb[0].mxu0 %v1586
      %v1667 = vpop.f32.mrb[0].mxu0
      %v1668 = vadd.f32 0.0, %v1667
      %v1669 = vpop.f32.mrb[0].mxu0
      %1670 = vmatprep.mubr.f32.mxu0 0.0
      %1671 = vmatmul.mubr.f32.gmra.mrb[0].mxu0 %v1589
      %v1672 = vpop.f32.mrb[0].mxu0
      %v1673 = vadd.f32 0.0, %v1672
      %v1674 = vpop.f32.mrb[0].mxu0
      %1675 = vdwg.mxu0
      %v1676 = vadd.f32 %v1570, %v1658
      %v1677 = vadd.f32 %v1571, %v1663
      %v1678 = vadd.f32 %v1572, %v1668
      %v1679 = vadd.f32 %v1573, %v1673
      %s1680 = scalar_lea.vmem %s4, 224
      %v1681 = vld [vmem:[%s1680] sm:$0xff]
      %v1682 = vld [vmem:[%s1680 + $0x8] sm:$0xff]
      %v1683 = vld [vmem:[%s1680 + $0x10] sm:$0xff]
      %v1684 = vld [vmem:[%s1680 + $0x18] sm:$0xff]
      %1687 = vrot.lane.b32.xlu0 %v839, 64
      %v1688 = vpop.permute.xlu0 %1687
      %1689 = vrot.lane.b32.xlu0 %v845, 64
      %v1690 = vpop.permute.xlu0 %1689
      %v1694 = vsel %vm939, %v1681, 0
      %v1697 = vsel %vm939, %v1682, 0
      %v1700 = vsel %vm939, %v1683, 0
      %v1703 = vsel %vm939, %v1684, 0
      %1705 = vmatprep.subr.mxu0 0.0
      %1706 = vmatpush1.msra.mxu0 %v1688
      %1707 = vmatprep.subr.mxu0 0.0
      %1708 = vmatpush1.msra.mxu0 %v1690
      %1709 = vmatprep.subr.mxu0 0.0
      %1710 = vmatpush1.msra.mxu0 0.0
      %1711 = vmatprep.subr.mxu0 0.0
      %1712 = vmatpush1.msra.mxu0 0.0
      %1713 = vmatprep.subr.mxu0 0.0
      %1714 = vmatpush1.msra.mxu0 0.0
      %1715 = vmatprep.subr.mxu0 0.0
      %1716 = vmatpush1.msra.mxu0 0.0
      %1717 = vmatprep.subr.mxu0 0.0
      %1718 = vmatpush1.msra.mxu0 0.0
      %1719 = vmatprep.subr.mxu0 0.0
      %1720 = vmatpush1.msra.mxu0 0.0
      %1721 = vmatprep.subr.mxu0 0.0
      %1722 = vmatpush1.msra.mxu0 0.0
      %1723 = vmatprep.subr.mxu0 0.0
      %1724 = vmatpush1.msra.mxu0 0.0
      %1725 = vmatprep.subr.mxu0 0.0
      %1726 = vmatpush1.msra.mxu0 0.0
      %1727 = vmatprep.subr.mxu0 0.0
      %1728 = vmatpush1.msra.mxu0 0.0
      %1729 = vmatprep.subr.mxu0 0.0
      %1730 = vmatpush1.msra.mxu0 0.0
      %1731 = vmatprep.subr.mxu0 0.0
      %1732 = vmatpush1.msra.mxu0 0.0
      %1733 = vmatprep.subr.mxu0 0.0
      %1734 = vmatpush1.msra.mxu0 0.0
      %1735 = vmatprep.subr.mxu0 0.0
      %1736 = vmatpush1.msra.mxu0 0.0
      %1737 = vmatprep.subr.mxu0 0.0
      %1738 = vmatpush1.msra.mxu0 0.0
      %1739 = vmatprep.subr.mxu0 0.0
      %1740 = vmatpush1.msra.mxu0 0.0
      %1741 = vmatprep.subr.mxu0 0.0
      %1742 = vmatpush1.msra.mxu0 0.0
      %1743 = vmatprep.subr.mxu0 0.0
      %1744 = vmatpush1.msra.mxu0 0.0
      %1745 = vmatprep.subr.mxu0 0.0
      %1746 = vmatpush1.msra.mxu0 0.0
      %1747 = vmatprep.subr.mxu0 0.0
      %1748 = vmatpush1.msra.mxu0 0.0
      %1749 = vmatprep.subr.mxu0 0.0
      %1750 = vmatpush1.msra.mxu0 0.0
      %1751 = vmatprep.subr.mxu0 0.0
      %1752 = vmatpush1.msra.mxu0 0.0
      %1753 = vmatprep.subr.mxu0 0.0
      %1754 = vmatpush1.msra.mxu0 0.0
      %1755 = vmatprep.subr.mxu0 0.0
      %1756 = vmatpush1.msra.mxu0 0.0
      %1757 = vmatprep.subr.mxu0 0.0
      %1758 = vmatpush1.msra.mxu0 0.0
      %1759 = vmatprep.subr.mxu0 0.0
      %1760 = vmatpush1.msra.mxu0 0.0
      %1761 = vmatprep.subr.mxu0 0.0
      %1762 = vmatpush1.msra.mxu0 0.0
      %1763 = vmatprep.subr.mxu0 0.0
      %1764 = vmatpush1.msra.mxu0 0.0
      %1765 = vmatprep.subr.mxu0 0.0
      %1766 = vmatpush1.msra.mxu0 0.0
      %1767 = vmatprep.subr.mxu0 0.0
      %1768 = vmatpush1.msra.mxu0 0.0
      %1769 = vmatprep.mubr.f32.mxu0 0.0
      %1770 = vmatmul.mubr.f32.gmra.mrb[0].mxu0 %v1694
      %v1771 = vpop.f32.mrb[0].mxu0
      %v1772 = vadd.f32 0.0, %v1771
      %v1773 = vpop.f32.mrb[0].mxu0
      %1774 = vmatprep.mubr.f32.mxu0 0.0
      %1775 = vmatmul.mubr.f32.gmra.mrb[0].mxu0 %v1697
      %v1776 = vpop.f32.mrb[0].mxu0
      %v1777 = vadd.f32 0.0, %v1776
      %v1778 = vpop.f32.mrb[0].mxu0
      %1779 = vmatprep.mubr.f32.mxu0 0.0
      %1780 = vmatmul.mubr.f32.gmra.mrb[0].mxu0 %v1700
      %v1781 = vpop.f32.mrb[0].mxu0
      %v1782 = vadd.f32 0.0, %v1781
      %v1783 = vpop.f32.mrb[0].mxu0
      %1784 = vmatprep.mubr.f32.mxu0 0.0
      %1785 = vmatmul.mubr.f32.gmra.mrb[0].mxu0 %v1703
      %v1786 = vpop.f32.mrb[0].mxu0
      %v1787 = vadd.f32 0.0, %v1786
      %v1788 = vpop.f32.mrb[0].mxu0
      %1789 = vdwg.mxu0
      %v1790 = vadd.f32 %v1676, %v1772
      %v1791 = vadd.f32 %v1677, %v1777
      %v1792 = vadd.f32 %v1678, %v1782
      %v1793 = vadd.f32 %v1679, %v1787
      %s1794 = scalar_lea.vmem %s4, 256
      %v1795 = vld [vmem:[%s1794] sm:$0xff]
      %v1796 = vld [vmem:[%s1794 + $0x8] sm:$0xff]
      %v1797 = vld [vmem:[%s1794 + $0x10] sm:$0xff]
      %v1798 = vld [vmem:[%s1794 + $0x18] sm:$0xff]
      %v1800 = vsel %vm939, %v1795, 0
      %v1803 = vsel %vm939, %v1796, 0
      %v1806 = vsel %vm939, %v1797, 0
      %v1809 = vsel %vm939, %v1798, 0
      %1811 = vmatprep.subr.mxu0 0.0
      %1812 = vmatpush1.msra.mxu0 %v914
      %1813 = vmatprep.subr.mxu0 0.0
      %1814 = vmatpush1.msra.mxu0 %v919
      %1815 = vmatprep.subr.mxu0 0.0
      %1816 = vmatpush1.msra.mxu0 0.0
      %1817 = vmatprep.subr.mxu0 0.0
      %1818 = vmatpush1.msra.mxu0 0.0
      %1819 = vmatprep.subr.mxu0 0.0
      %1820 = vmatpush1.msra.mxu0 0.0
      %1821 = vmatprep.subr.mxu0 0.0
      %1822 = vmatpush1.msra.mxu0 0.0
      %1823 = vmatprep.subr.mxu0 0.0
      %1824 = vmatpush1.msra.mxu0 0.0
      %1825 = vmatprep.subr.mxu0 0.0
      %1826 = vmatpush1.msra.mxu0 0.0
      %1827 = vmatprep.subr.mxu0 0.0
      %1828 = vmatpush1.msra.mxu0 0.0
      %1829 = vmatprep.subr.mxu0 0.0
      %1830 = vmatpush1.msra.mxu0 0.0
      %1831 = vmatprep.subr.mxu0 0.0
      %1832 = vmatpush1.msra.mxu0 0.0
      %1833 = vmatprep.subr.mxu0 0.0
      %1834 = vmatpush1.msra.mxu0 0.0
      %1835 = vmatprep.subr.mxu0 0.0
      %1836 = vmatpush1.msra.mxu0 0.0
      %1837 = vmatprep.subr.mxu0 0.0
      %1838 = vmatpush1.msra.mxu0 0.0
      %1839 = vmatprep.subr.mxu0 0.0
      %1840 = vmatpush1.msra.mxu0 0.0
      %1841 = vmatprep.subr.mxu0 0.0
      %1842 = vmatpush1.msra.mxu0 0.0
      %1843 = vmatprep.subr.mxu0 0.0
      %1844 = vmatpush1.msra.mxu0 0.0
      %1845 = vmatprep.subr.mxu0 0.0
      %1846 = vmatpush1.msra.mxu0 0.0
      %1847 = vmatprep.subr.mxu0 0.0
      %1848 = vmatpush1.msra.mxu0 0.0
      %1849 = vmatprep.subr.mxu0 0.0
      %1850 = vmatpush1.msra.mxu0 0.0
      %1851 = vmatprep.subr.mxu0 0.0
      %1852 = vmatpush1.msra.mxu0 0.0
      %1853 = vmatprep.subr.mxu0 0.0
      %1854 = vmatpush1.msra.mxu0 0.0
      %1855 = vmatprep.subr.mxu0 0.0
      %1856 = vmatpush1.msra.mxu0 0.0
      %1857 = vmatprep.subr.mxu0 0.0
      %1858 = vmatpush1.msra.mxu0 0.0
      %1859 = vmatprep.subr.mxu0 0.0
      %1860 = vmatpush1.msra.mxu0 0.0
      %1861 = vmatprep.subr.mxu0 0.0
      %1862 = vmatpush1.msra.mxu0 0.0
      %1863 = vmatprep.subr.mxu0 0.0
      %1864 = vmatpush1.msra.mxu0 0.0
      %1865 = vmatprep.subr.mxu0 0.0
      %1866 = vmatpush1.msra.mxu0 0.0
      %1867 = vmatprep.subr.mxu0 0.0
      %1868 = vmatpush1.msra.mxu0 0.0
      %1869 = vmatprep.subr.mxu0 0.0
      %1870 = vmatpush1.msra.mxu0 0.0
      %1871 = vmatprep.subr.mxu0 0.0
      %1872 = vmatpush1.msra.mxu0 0.0
      %1873 = vmatprep.subr.mxu0 0.0
      %1874 = vmatpush1.msra.mxu0 0.0
      %1875 = vmatprep.mubr.f32.mxu0 0.0
      %1876 = vmatmul.mubr.f32.gmra.mrb[0].mxu0 %v1800
      %v1877 = vpop.f32.mrb[0].mxu0
      %v1878 = vadd.f32 0.0, %v1877
      %v1879 = vpop.f32.mrb[0].mxu0
      %1880 = vmatprep.mubr.f32.mxu0 0.0
      %1881 = vmatmul.mubr.f32.gmra.mrb[0].mxu0 %v1803
      %v1882 = vpop.f32.mrb[0].mxu0
      %v1883 = vadd.f32 0.0, %v1882
      %v1884 = vpop.f32.mrb[0].mxu0
      %1885 = vmatprep.mubr.f32.mxu0 0.0
      %1886 = vmatmul.mubr.f32.gmra.mrb[0].mxu0 %v1806
      %v1887 = vpop.f32.mrb[0].mxu0
      %v1888 = vadd.f32 0.0, %v1887
      %v1889 = vpop.f32.mrb[0].mxu0
      %1890 = vmatprep.mubr.f32.mxu0 0.0
      %1891 = vmatmul.mubr.f32.gmra.mrb[0].mxu0 %v1809
      %v1892 = vpop.f32.mrb[0].mxu0
      %v1893 = vadd.f32 0.0, %v1892
      %v1894 = vpop.f32.mrb[0].mxu0
      %1895 = vdwg.mxu0
      %v1896 = vadd.f32 %v1790, %v1878
      %v1897 = vadd.f32 %v1791, %v1883
      %v1898 = vadd.f32 %v1792, %v1888
      %v1899 = vadd.f32 %v1793, %v1893
      %v1900 = vld [vmem:[%s7] sm:$0xff]
      %v1901 = vld [vmem:[%s7 + $0x8] sm:$0xff]
      %v1902 = vld [vmem:[%s7 + $0x10] sm:$0xff]
      %v1903 = vld [vmem:[%s7 + $0x18] sm:$0xff]
      %1905 = vset.pattern.permute.xlu0 0
      %1906 = vperm.xlu0 %1905, %v1900
      %v1907 = vpop.permute.xlu0 %1906
      %1910 = vset.pattern.permute.xlu0 0
      %1911 = vperm.xlu0 %1910, %v1901
      %v1912 = vpop.permute.xlu0 %1911
      %1915 = vset.pattern.permute.xlu0 0
      %1916 = vperm.xlu0 %1915, %v1902
      %v1917 = vpop.permute.xlu0 %1916
      %1920 = vset.pattern.permute.xlu0 0
      %1921 = vperm.xlu0 %1920, %v1903
      %v1922 = vpop.permute.xlu0 %1921
      %v1924 = vadd.f32 %v1896, %v1907
      %v1925 = vadd.f32 %v1897, %v1912
      %v1926 = vadd.f32 %v1898, %v1917
      %v1927 = vadd.f32 %v1899, %v1922
      %v1928 = vmax.f32 %v1924, 0.0
      %v1929 = vmax.f32 %v1925, 0.0
      %v1930 = vmax.f32 %v1926, 0.0
      %v1931 = vmax.f32 %v1927, 0.0
      %vm1932 = vcmask 523264
      %1933 = vst.msk [vmem:[%s406] sm:$0xff] %vm1932, %v1928
      %1934 = vst.msk [vmem:[%s406 + $0x8] sm:$0xff] %vm1932, %v1929
      %1935 = vst.msk [vmem:[%s406 + $0x10] sm:$0xff] %vm1932, %v1930
      %1936 = vst.msk [vmem:[%s406 + $0x18] sm:$0xff] %vm1932, %v1931
      %v1937 = vld [vmem:[%s2] sm:$0xff]
      %v1938 = vld [vmem:[%s2 + $0x8] sm:$0xff]
      %v1939 = vld [vmem:[%s2 + $0x10] sm:$0xff]
      %v1940 = vld [vmem:[%s2 + $0x18] sm:$0xff]
      %v1941 = vld [vmem:[%s2 + $0x20] sm:$0xff]
      %v1942 = vld [vmem:[%s2 + $0x28] sm:$0xff]
      %v1943 = vld [vmem:[%s2 + $0x30] sm:$0xff]
      %v1944 = vld [vmem:[%s2 + $0x38] sm:$0xff]
      %v1945 = vld [vmem:[%s2 + $0x40] sm:$0xff]
      %v1946 = vld [vmem:[%s2 + $0x48] sm:$0xff]
      %v1947 = vld [vmem:[%s2 + $0x50] sm:$0xff]
      %v1948 = vld [vmem:[%s2 + $0x58] sm:$0xff]
      %v1949 = vld [vmem:[%s2 + $0x60] sm:$0xff]
      %v1950 = vld [vmem:[%s2 + $0x68] sm:$0xff]
      %v1951 = vld [vmem:[%s2 + $0x70] sm:$0xff]
      %v1952 = vld [vmem:[%s2 + $0x78] sm:$0xff]
      %v1954 = vsel %vm1932, %v1928, 0
      %v1957 = vsel %vm1932, %v1929, 0
      %v1960 = vsel %vm1932, %v1930, 0
      %v1963 = vsel %vm1932, %v1931, 0
      %1965 = vmatprep.subr.mxu0 %v1938
      %1966 = vmatpush1.msra.mxu0 %v1937
      %1967 = vmatprep.subr.mxu0 %v1940
      %1968 = vmatpush1.msra.mxu0 %v1939
      %1969 = vmatprep.subr.mxu0 %v1942
      %1970 = vmatpush1.msra.mxu0 %v1941
      %1971 = vmatprep.subr.mxu0 %v1944
      %1972 = vmatpush1.msra.mxu0 %v1943
      %1973 = vmatprep.subr.mxu0 %v1946
      %1974 = vmatpush1.msra.mxu0 %v1945
      %1975 = vmatprep.subr.mxu0 %v1948
      %1976 = vmatpush1.msra.mxu0 %v1947
      %1977 = vmatprep.subr.mxu0 %v1950
      %1978 = vmatpush1.msra.mxu0 %v1949
      %1979 = vmatprep.subr.mxu0 %v1952
      %1980 = vmatpush1.msra.mxu0 %v1951
      %1981 = vmatprep.subr.mxu0 0.0
      %1982 = vmatpush1.msra.mxu0 0.0
      %1983 = vmatprep.subr.mxu0 0.0
      %1984 = vmatpush1.msra.mxu0 0.0
      %1985 = vmatprep.subr.mxu0 0.0
      %1986 = vmatpush1.msra.mxu0 0.0
      %1987 = vmatprep.subr.mxu0 0.0
      %1988 = vmatpush1.msra.mxu0 0.0
      %1989 = vmatprep.subr.mxu0 0.0
      %1990 = vmatpush1.msra.mxu0 0.0
      %1991 = vmatprep.subr.mxu0 0.0
      %1992 = vmatpush1.msra.mxu0 0.0
      %1993 = vmatprep.subr.mxu0 0.0
      %1994 = vmatpush1.msra.mxu0 0.0
      %1995 = vmatprep.subr.mxu0 0.0
      %1996 = vmatpush1.msra.mxu0 0.0
      %1997 = vmatprep.subr.mxu0 0.0
      %1998 = vmatpush1.msra.mxu0 0.0
      %1999 = vmatprep.subr.mxu0 0.0
      %2000 = vmatpush1.msra.mxu0 0.0
      %2001 = vmatprep.subr.mxu0 0.0
      %2002 = vmatpush1.msra.mxu0 0.0
      %2003 = vmatprep.subr.mxu0 0.0
      %2004 = vmatpush1.msra.mxu0 0.0
      %2005 = vmatprep.subr.mxu0 0.0
      %2006 = vmatpush1.msra.mxu0 0.0
      %2007 = vmatprep.subr.mxu0 0.0
      %2008 = vmatpush1.msra.mxu0 0.0
      %2009 = vmatprep.subr.mxu0 0.0
      %2010 = vmatpush1.msra.mxu0 0.0
      %2011 = vmatprep.subr.mxu0 0.0
      %2012 = vmatpush1.msra.mxu0 0.0
      %2013 = vmatprep.subr.mxu0 0.0
      %2014 = vmatpush1.msra.mxu0 0.0
      %2015 = vmatprep.subr.mxu0 0.0
      %2016 = vmatpush1.msra.mxu0 0.0
      %2017 = vmatprep.subr.mxu0 0.0
      %2018 = vmatpush1.msra.mxu0 0.0
      %2019 = vmatprep.subr.mxu0 0.0
      %2020 = vmatpush1.msra.mxu0 0.0
      %2021 = vmatprep.subr.mxu0 0.0
      %2022 = vmatpush1.msra.mxu0 0.0
      %2023 = vmatprep.subr.mxu0 0.0
      %2024 = vmatpush1.msra.mxu0 0.0
      %2025 = vmatprep.subr.mxu0 0.0
      %2026 = vmatpush1.msra.mxu0 0.0
      %2027 = vmatprep.subr.mxu0 0.0
      %2028 = vmatpush1.msra.mxu0 0.0
      %2029 = vmatprep.mubr.f32.mxu0 0.0
      %2030 = vmatmul.mubr.f32.gmra.mrb[0].mxu0 %v1954
      %v2031 = vpop.f32.mrb[0].mxu0
      %v2032 = vadd.f32 0.0, %v2031
      %v2033 = vpop.f32.mrb[0].mxu0
      %v2034 = vadd.f32 0.0, %v2033
      %2035 = vmatprep.mubr.f32.mxu0 0.0
      %2036 = vmatmul.mubr.f32.gmra.mrb[0].mxu0 %v1957
      %v2037 = vpop.f32.mrb[0].mxu0
      %v2038 = vadd.f32 0.0, %v2037
      %v2039 = vpop.f32.mrb[0].mxu0
      %v2040 = vadd.f32 0.0, %v2039
      %2041 = vmatprep.mubr.f32.mxu0 0.0
      %2042 = vmatmul.mubr.f32.gmra.mrb[0].mxu0 %v1960
      %v2043 = vpop.f32.mrb[0].mxu0
      %v2044 = vadd.f32 0.0, %v2043
      %v2045 = vpop.f32.mrb[0].mxu0
      %v2046 = vadd.f32 0.0, %v2045
      %2047 = vmatprep.mubr.f32.mxu0 0.0
      %2048 = vmatmul.mubr.f32.gmra.mrb[0].mxu0 %v1963
      %v2049 = vpop.f32.mrb[0].mxu0
      %v2050 = vadd.f32 0.0, %v2049
      %v2051 = vpop.f32.mrb[0].mxu0
      %v2052 = vadd.f32 0.0, %v2051
      %2053 = vdwg.mxu0
      %v2054 = vld [vmem:[%s5] sm:$0xff]
      %v2055 = vld [vmem:[%s5 + $0x8] sm:$0xff]
      %v2056 = vld [vmem:[%s5 + $0x10] sm:$0xff]
      %v2057 = vld [vmem:[%s5 + $0x18] sm:$0xff]
      %v2058 = vld [vmem:[%s5 + $0x20] sm:$0xff]
      %v2059 = vld [vmem:[%s5 + $0x28] sm:$0xff]
      %v2060 = vld [vmem:[%s5 + $0x30] sm:$0xff]
      %v2061 = vld [vmem:[%s5 + $0x38] sm:$0xff]
      %s2062 = scalar_lea.vmem %s5, 64
      %v2063 = vld [vmem:[%s2062] sm:$0xff]
      %v2064 = vld [vmem:[%s2062 + $0x8] sm:$0xff]
      %v2065 = vld [vmem:[%s2062 + $0x10] sm:$0xff]
      %v2066 = vld [vmem:[%s2062 + $0x18] sm:$0xff]
      %v2067 = vld [vmem:[%s2062 + $0x20] sm:$0xff]
      %v2068 = vld [vmem:[%s2062 + $0x28] sm:$0xff]
      %v2069 = vld [vmem:[%s2062 + $0x30] sm:$0xff]
      %v2070 = vld [vmem:[%s2062 + $0x38] sm:$0xff]
      %2075 = vrot.lane.b32.xlu0 %v2032, 112
      %v2076 = vpop.permute.xlu0 %2075
      %2077 = vrot.lane.b32.xlu0 %v2038, 112
      %v2078 = vpop.permute.xlu0 %2077
      %2079 = vrot.lane.b32.xlu0 %v2044, 112
      %v2080 = vpop.permute.xlu0 %2079
      %2081 = vrot.lane.b32.xlu0 %v2050, 112
      %v2082 = vpop.permute.xlu0 %2081
      %vm2087 = vcmask 261120
      %v2089 = vsel %vm2087, %v2063, 0
      %v2092 = vsel %vm2087, %v2064, 0
      %v2095 = vsel %vm2087, %v2065, 0
      %v2098 = vsel %vm2087, %v2066, 0
      %v2101 = vsel %vm2087, %v2067, 0
      %v2104 = vsel %vm2087, %v2068, 0
      %v2107 = vsel %vm2087, %v2069, 0
      %v2110 = vsel %vm2087, %v2070, 0
      %2112 = vmatprep.subr.mxu0 0.0
      %2113 = vmatpush1.msra.mxu0 %v2076
      %2114 = vmatprep.subr.mxu0 0.0
      %2115 = vmatpush1.msra.mxu0 %v2078
      %2116 = vmatprep.subr.mxu0 0.0
      %2117 = vmatpush1.msra.mxu0 %v2080
      %2118 = vmatprep.subr.mxu0 0.0
      %2119 = vmatpush1.msra.mxu0 %v2082
      %2120 = vmatprep.subr.mxu0 0.0
      %2121 = vmatpush1.msra.mxu0 0.0
      %2122 = vmatprep.subr.mxu0 0.0
      %2123 = vmatpush1.msra.mxu0 0.0
      %2124 = vmatprep.subr.mxu0 0.0
      %2125 = vmatpush1.msra.mxu0 0.0
      %2126 = vmatprep.subr.mxu0 0.0
      %2127 = vmatpush1.msra.mxu0 0.0
      %2128 = vmatprep.subr.mxu0 0.0
      %2129 = vmatpush1.msra.mxu0 0.0
      %2130 = vmatprep.subr.mxu0 0.0
      %2131 = vmatpush1.msra.mxu0 0.0
      %2132 = vmatprep.subr.mxu0 0.0
      %2133 = vmatpush1.msra.mxu0 0.0
      %2134 = vmatprep.subr.mxu0 0.0
      %2135 = vmatpush1.msra.mxu0 0.0
      %2136 = vmatprep.subr.mxu0 0.0
      %2137 = vmatpush1.msra.mxu0 0.0
      %2138 = vmatprep.subr.mxu0 0.0
      %2139 = vmatpush1.msra.mxu0 0.0
      %2140 = vmatprep.subr.mxu0 0.0
      %2141 = vmatpush1.msra.mxu0 0.0
      %2142 = vmatprep.subr.mxu0 0.0
      %2143 = vmatpush1.msra.mxu0 0.0
      %2144 = vmatprep.subr.mxu0 0.0
      %2145 = vmatpush1.msra.mxu0 0.0
      %2146 = vmatprep.subr.mxu0 0.0
      %2147 = vmatpush1.msra.mxu0 0.0
      %2148 = vmatprep.subr.mxu0 0.0
      %2149 = vmatpush1.msra.mxu0 0.0
      %2150 = vmatprep.subr.mxu0 0.0
      %2151 = vmatpush1.msra.mxu0 0.0
      %2152 = vmatprep.subr.mxu0 0.0
      %2153 = vmatpush1.msra.mxu0 0.0
      %2154 = vmatprep.subr.mxu0 0.0
      %2155 = vmatpush1.msra.mxu0 0.0
      %2156 = vmatprep.subr.mxu0 0.0
      %2157 = vmatpush1.msra.mxu0 0.0
      %2158 = vmatprep.subr.mxu0 0.0
      %2159 = vmatpush1.msra.mxu0 0.0
      %2160 = vmatprep.subr.mxu0 0.0
      %2161 = vmatpush1.msra.mxu0 0.0
      %2162 = vmatprep.subr.mxu0 0.0
      %2163 = vmatpush1.msra.mxu0 0.0
      %2164 = vmatprep.subr.mxu0 0.0
      %2165 = vmatpush1.msra.mxu0 0.0
      %2166 = vmatprep.subr.mxu0 0.0
      %2167 = vmatpush1.msra.mxu0 0.0
      %2168 = vmatprep.subr.mxu0 0.0
      %2169 = vmatpush1.msra.mxu0 0.0
      %2170 = vmatprep.subr.mxu0 0.0
      %2171 = vmatpush1.msra.mxu0 0.0
      %2172 = vmatprep.subr.mxu0 0.0
      %2173 = vmatpush1.msra.mxu0 0.0
      %2174 = vmatprep.subr.mxu0 0.0
      %2175 = vmatpush1.msra.mxu0 0.0
      %2176 = vmatprep.mubr.f32.mxu0 0.0
      %2177 = vmatmul.mubr.f32.gmra.mrb[0].mxu0 %v2089
      %v2178 = vpop.f32.mrb[0].mxu0
      %v2179 = vadd.f32 0.0, %v2178
      %v2180 = vpop.f32.mrb[0].mxu0
      %2181 = vmatprep.mubr.f32.mxu0 0.0
      %2182 = vmatmul.mubr.f32.gmra.mrb[0].mxu0 %v2092
      %v2183 = vpop.f32.mrb[0].mxu0
      %v2184 = vadd.f32 0.0, %v2183
      %v2185 = vpop.f32.mrb[0].mxu0
      %2186 = vmatprep.mubr.f32.mxu0 0.0
      %2187 = vmatmul.mubr.f32.gmra.mrb[0].mxu0 %v2095
      %v2188 = vpop.f32.mrb[0].mxu0
      %v2189 = vadd.f32 0.0, %v2188
      %v2190 = vpop.f32.mrb[0].mxu0
      %2191 = vmatprep.mubr.f32.mxu0 0.0
      %2192 = vmatmul.mubr.f32.gmra.mrb[0].mxu0 %v2098
      %v2193 = vpop.f32.mrb[0].mxu0
      %v2194 = vadd.f32 0.0, %v2193
      %v2195 = vpop.f32.mrb[0].mxu0
      %2196 = vmatprep.mubr.f32.mxu0 0.0
      %2197 = vmatmul.mubr.f32.gmra.mrb[0].mxu0 %v2101
      %v2198 = vpop.f32.mrb[0].mxu0
      %v2199 = vadd.f32 0.0, %v2198
      %v2200 = vpop.f32.mrb[0].mxu0
      %2201 = vmatprep.mubr.f32.mxu0 0.0
      %2202 = vmatmul.mubr.f32.gmra.mrb[0].mxu0 %v2104
      %v2203 = vpop.f32.mrb[0].mxu0
      %v2204 = vadd.f32 0.0, %v2203
      %v2205 = vpop.f32.mrb[0].mxu0
      %2206 = vmatprep.mubr.f32.mxu0 0.0
      %2207 = vmatmul.mubr.f32.gmra.mrb[0].mxu0 %v2107
      %v2208 = vpop.f32.mrb[0].mxu0
      %v2209 = vadd.f32 0.0, %v2208
      %v2210 = vpop.f32.mrb[0].mxu0
      %2211 = vmatprep.mubr.f32.mxu0 0.0
      %2212 = vmatmul.mubr.f32.gmra.mrb[0].mxu0 %v2110
      %v2213 = vpop.f32.mrb[0].mxu0
      %v2214 = vadd.f32 0.0, %v2213
      %v2215 = vpop.f32.mrb[0].mxu0
      %2216 = vdwg.mxu0
      %v2218 = vsel %vm2087, %v2054, 0
      %v2221 = vsel %vm2087, %v2055, 0
      %v2224 = vsel %vm2087, %v2056, 0
      %v2227 = vsel %vm2087, %v2057, 0
      %v2230 = vsel %vm2087, %v2058, 0
      %v2233 = vsel %vm2087, %v2059, 0
      %v2236 = vsel %vm2087, %v2060, 0
      %v2239 = vsel %vm2087, %v2061, 0
      %2241 = vmatprep.subr.mxu0 0.0
      %2242 = vmatpush1.msra.mxu0 %v2032
      %2243 = vmatprep.subr.mxu0 0.0
      %2244 = vmatpush1.msra.mxu0 %v2038
      %2245 = vmatprep.subr.mxu0 0.0
      %2246 = vmatpush1.msra.mxu0 %v2044
      %2247 = vmatprep.subr.mxu0 0.0
      %2248 = vmatpush1.msra.mxu0 %v2050
      %2249 = vmatprep.subr.mxu0 0.0
      %2250 = vmatpush1.msra.mxu0 0.0
      %2251 = vmatprep.subr.mxu0 0.0
      %2252 = vmatpush1.msra.mxu0 0.0
      %2253 = vmatprep.subr.mxu0 0.0
      %2254 = vmatpush1.msra.mxu0 0.0
      %2255 = vmatprep.subr.mxu0 0.0
      %2256 = vmatpush1.msra.mxu0 0.0
      %2257 = vmatprep.subr.mxu0 0.0
      %2258 = vmatpush1.msra.mxu0 0.0
      %2259 = vmatprep.subr.mxu0 0.0
      %2260 = vmatpush1.msra.mxu0 0.0
      %2261 = vmatprep.subr.mxu0 0.0
      %2262 = vmatpush1.msra.mxu0 0.0
      %2263 = vmatprep.subr.mxu0 0.0
      %2264 = vmatpush1.msra.mxu0 0.0
      %2265 = vmatprep.subr.mxu0 0.0
      %2266 = vmatpush1.msra.mxu0 0.0
      %2267 = vmatprep.subr.mxu0 0.0
      %2268 = vmatpush1.msra.mxu0 0.0
      %2269 = vmatprep.subr.mxu0 0.0
      %2270 = vmatpush1.msra.mxu0 0.0
      %2271 = vmatprep.subr.mxu0 0.0
      %2272 = vmatpush1.msra.mxu0 0.0
      %2273 = vmatprep.subr.mxu0 0.0
      %2274 = vmatpush1.msra.mxu0 0.0
      %2275 = vmatprep.subr.mxu0 0.0
      %2276 = vmatpush1.msra.mxu0 0.0
      %2277 = vmatprep.subr.mxu0 0.0
      %2278 = vmatpush1.msra.mxu0 0.0
      %2279 = vmatprep.subr.mxu0 0.0
      %2280 = vmatpush1.msra.mxu0 0.0
      %2281 = vmatprep.subr.mxu0 0.0
      %2282 = vmatpush1.msra.mxu0 0.0
      %2283 = vmatprep.subr.mxu0 0.0
      %2284 = vmatpush1.msra.mxu0 0.0
      %2285 = vmatprep.subr.mxu0 0.0
      %2286 = vmatpush1.msra.mxu0 0.0
      %2287 = vmatprep.subr.mxu0 0.0
      %2288 = vmatpush1.msra.mxu0 0.0
      %2289 = vmatprep.subr.mxu0 0.0
      %2290 = vmatpush1.msra.mxu0 0.0
      %2291 = vmatprep.subr.mxu0 0.0
      %2292 = vmatpush1.msra.mxu0 0.0
      %2293 = vmatprep.subr.mxu0 0.0
      %2294 = vmatpush1.msra.mxu0 0.0
      %2295 = vmatprep.subr.mxu0 0.0
      %2296 = vmatpush1.msra.mxu0 0.0
      %2297 = vmatprep.subr.mxu0 0.0
      %2298 = vmatpush1.msra.mxu0 0.0
      %2299 = vmatprep.subr.mxu0 0.0
      %2300 = vmatpush1.msra.mxu0 0.0
      %2301 = vmatprep.subr.mxu0 0.0
      %2302 = vmatpush1.msra.mxu0 0.0
      %2303 = vmatprep.subr.mxu0 0.0
      %2304 = vmatpush1.msra.mxu0 0.0
      %2305 = vmatprep.mubr.f32.mxu0 0.0
      %2306 = vmatmul.mubr.f32.gmra.mrb[0].mxu0 %v2218
      %v2307 = vpop.f32.mrb[0].mxu0
      %v2308 = vadd.f32 %v2179, %v2307
      %v2309 = vpop.f32.mrb[0].mxu0
      %2310 = vmatprep.mubr.f32.mxu0 0.0
      %2311 = vmatmul.mubr.f32.gmra.mrb[0].mxu0 %v2221
      %v2312 = vpop.f32.mrb[0].mxu0
      %v2313 = vadd.f32 %v2184, %v2312
      %v2314 = vpop.f32.mrb[0].mxu0
      %2315 = vmatprep.mubr.f32.mxu0 0.0
      %2316 = vmatmul.mubr.f32.gmra.mrb[0].mxu0 %v2224
      %v2317 = vpop.f32.mrb[0].mxu0
      %v2318 = vadd.f32 %v2189, %v2317
      %v2319 = vpop.f32.mrb[0].mxu0
      %2320 = vmatprep.mubr.f32.mxu0 0.0
      %2321 = vmatmul.mubr.f32.gmra.mrb[0].mxu0 %v2227
      %v2322 = vpop.f32.mrb[0].mxu0
      %v2323 = vadd.f32 %v2194, %v2322
      %v2324 = vpop.f32.mrb[0].mxu0
      %2325 = vmatprep.mubr.f32.mxu0 0.0
      %2326 = vmatmul.mubr.f32.gmra.mrb[0].mxu0 %v2230
      %v2327 = vpop.f32.mrb[0].mxu0
      %v2328 = vadd.f32 %v2199, %v2327
      %v2329 = vpop.f32.mrb[0].mxu0
      %2330 = vmatprep.mubr.f32.mxu0 0.0
      %2331 = vmatmul.mubr.f32.gmra.mrb[0].mxu0 %v2233
      %v2332 = vpop.f32.mrb[0].mxu0
      %v2333 = vadd.f32 %v2204, %v2332
      %v2334 = vpop.f32.mrb[0].mxu0
      %2335 = vmatprep.mubr.f32.mxu0 0.0
      %2336 = vmatmul.mubr.f32.gmra.mrb[0].mxu0 %v2236
      %v2337 = vpop.f32.mrb[0].mxu0
      %v2338 = vadd.f32 %v2209, %v2337
      %v2339 = vpop.f32.mrb[0].mxu0
      %2340 = vmatprep.mubr.f32.mxu0 0.0
      %2341 = vmatmul.mubr.f32.gmra.mrb[0].mxu0 %v2239
      %v2342 = vpop.f32.mrb[0].mxu0
      %v2343 = vadd.f32 %v2214, %v2342
      %v2344 = vpop.f32.mrb[0].mxu0
      %2345 = vdwg.mxu0
      %s2346 = scalar_lea.vmem %s5, 128
      %v2347 = vld [vmem:[%s2346] sm:$0xff]
      %v2348 = vld [vmem:[%s2346 + $0x8] sm:$0xff]
      %v2349 = vld [vmem:[%s2346 + $0x10] sm:$0xff]
      %v2350 = vld [vmem:[%s2346 + $0x18] sm:$0xff]
      %v2351 = vld [vmem:[%s2346 + $0x20] sm:$0xff]
      %v2352 = vld [vmem:[%s2346 + $0x28] sm:$0xff]
      %v2353 = vld [vmem:[%s2346 + $0x30] sm:$0xff]
      %v2354 = vld [vmem:[%s2346 + $0x38] sm:$0xff]
      %2355 = vrot.lane.b32.xlu0 %v2032, 96
      %v2356 = vpop.permute.xlu0 %2355
      %2357 = vrot.lane.b32.xlu0 %v2038, 96
      %v2358 = vpop.permute.xlu0 %2357
      %2359 = vrot.lane.b32.xlu0 %v2044, 96
      %v2360 = vpop.permute.xlu0 %2359
      %2361 = vrot.lane.b32.xlu0 %v2050, 96
      %v2362 = vpop.permute.xlu0 %2361
      %v2368 = vsel %vm2087, %v2347, 0
      %v2371 = vsel %vm2087, %v2348, 0
      %v2374 = vsel %vm2087, %v2349, 0
      %v2377 = vsel %vm2087, %v2350, 0
      %v2380 = vsel %vm2087, %v2351, 0
      %v2383 = vsel %vm2087, %v2352, 0
      %v2386 = vsel %vm2087, %v2353, 0
      %v2389 = vsel %vm2087, %v2354, 0
      %2391 = vmatprep.subr.mxu0 0.0
      %2392 = vmatpush1.msra.mxu0 %v2356
      %2393 = vmatprep.subr.mxu0 0.0
      %2394 = vmatpush1.msra.mxu0 %v2358
      %2395 = vmatprep.subr.mxu0 0.0
      %2396 = vmatpush1.msra.mxu0 %v2360
      %2397 = vmatprep.subr.mxu0 0.0
      %2398 = vmatpush1.msra.mxu0 %v2362
      %2399 = vmatprep.subr.mxu0 0.0
      %2400 = vmatpush1.msra.mxu0 0.0
      %2401 = vmatprep.subr.mxu0 0.0
      %2402 = vmatpush1.msra.mxu0 0.0
      %2403 = vmatprep.subr.mxu0 0.0
      %2404 = vmatpush1.msra.mxu0 0.0
      %2405 = vmatprep.subr.mxu0 0.0
      %2406 = vmatpush1.msra.mxu0 0.0
      %2407 = vmatprep.subr.mxu0 0.0
      %2408 = vmatpush1.msra.mxu0 0.0
      %2409 = vmatprep.subr.mxu0 0.0
      %2410 = vmatpush1.msra.mxu0 0.0
      %2411 = vmatprep.subr.mxu0 0.0
      %2412 = vmatpush1.msra.mxu0 0.0
      %2413 = vmatprep.subr.mxu0 0.0
      %2414 = vmatpush1.msra.mxu0 0.0
      %2415 = vmatprep.subr.mxu0 0.0
      %2416 = vmatpush1.msra.mxu0 0.0
      %2417 = vmatprep.subr.mxu0 0.0
      %2418 = vmatpush1.msra.mxu0 0.0
      %2419 = vmatprep.subr.mxu0 0.0
      %2420 = vmatpush1.msra.mxu0 0.0
      %2421 = vmatprep.subr.mxu0 0.0
      %2422 = vmatpush1.msra.mxu0 0.0
      %2423 = vmatprep.subr.mxu0 0.0
      %2424 = vmatpush1.msra.mxu0 0.0
      %2425 = vmatprep.subr.mxu0 0.0
      %2426 = vmatpush1.msra.mxu0 0.0
      %2427 = vmatprep.subr.mxu0 0.0
      %2428 = vmatpush1.msra.mxu0 0.0
      %2429 = vmatprep.subr.mxu0 0.0
      %2430 = vmatpush1.msra.mxu0 0.0
      %2431 = vmatprep.subr.mxu0 0.0
      %2432 = vmatpush1.msra.mxu0 0.0
      %2433 = vmatprep.subr.mxu0 0.0
      %2434 = vmatpush1.msra.mxu0 0.0
      %2435 = vmatprep.subr.mxu0 0.0
      %2436 = vmatpush1.msra.mxu0 0.0
      %2437 = vmatprep.subr.mxu0 0.0
      %2438 = vmatpush1.msra.mxu0 0.0
      %2439 = vmatprep.subr.mxu0 0.0
      %2440 = vmatpush1.msra.mxu0 0.0
      %2441 = vmatprep.subr.mxu0 0.0
      %2442 = vmatpush1.msra.mxu0 0.0
      %2443 = vmatprep.subr.mxu0 0.0
      %2444 = vmatpush1.msra.mxu0 0.0
      %2445 = vmatprep.subr.mxu0 0.0
      %2446 = vmatpush1.msra.mxu0 0.0
      %2447 = vmatprep.subr.mxu0 0.0
      %2448 = vmatpush1.msra.mxu0 0.0
      %2449 = vmatprep.subr.mxu0 0.0
      %2450 = vmatpush1.msra.mxu0 0.0
      %2451 = vmatprep.subr.mxu0 0.0
      %2452 = vmatpush1.msra.mxu0 0.0
      %2453 = vmatprep.subr.mxu0 0.0
      %2454 = vmatpush1.msra.mxu0 0.0
      %2455 = vmatprep.mubr.f32.mxu0 0.0
      %2456 = vmatmul.mubr.f32.gmra.mrb[0].mxu0 %v2368
      %v2457 = vpop.f32.mrb[0].mxu0
      %v2458 = vadd.f32 0.0, %v2457
      %v2459 = vpop.f32.mrb[0].mxu0
      %2460 = vmatprep.mubr.f32.mxu0 0.0
      %2461 = vmatmul.mubr.f32.gmra.mrb[0].mxu0 %v2371
      %v2462 = vpop.f32.mrb[0].mxu0
      %v2463 = vadd.f32 0.0, %v2462
      %v2464 = vpop.f32.mrb[0].mxu0
      %2465 = vmatprep.mubr.f32.mxu0 0.0
      %2466 = vmatmul.mubr.f32.gmra.mrb[0].mxu0 %v2374
      %v2467 = vpop.f32.mrb[0].mxu0
      %v2468 = vadd.f32 0.0, %v2467
      %v2469 = vpop.f32.mrb[0].mxu0
      %2470 = vmatprep.mubr.f32.mxu0 0.0
      %2471 = vmatmul.mubr.f32.gmra.mrb[0].mxu0 %v2377
      %v2472 = vpop.f32.mrb[0].mxu0
      %v2473 = vadd.f32 0.0, %v2472
      %v2474 = vpop.f32.mrb[0].mxu0
      %2475 = vmatprep.mubr.f32.mxu0 0.0
      %2476 = vmatmul.mubr.f32.gmra.mrb[0].mxu0 %v2380
      %v2477 = vpop.f32.mrb[0].mxu0
      %v2478 = vadd.f32 0.0, %v2477
      %v2479 = vpop.f32.mrb[0].mxu0
      %2480 = vmatprep.mubr.f32.mxu0 0.0
      %2481 = vmatmul.mubr.f32.gmra.mrb[0].mxu0 %v2383
      %v2482 = vpop.f32.mrb[0].mxu0
      %v2483 = vadd.f32 0.0, %v2482
      %v2484 = vpop.f32.mrb[0].mxu0
      %2485 = vmatprep.mubr.f32.mxu0 0.0
      %2486 = vmatmul.mubr.f32.gmra.mrb[0].mxu0 %v2386
      %v2487 = vpop.f32.mrb[0].mxu0
      %v2488 = vadd.f32 0.0, %v2487
      %v2489 = vpop.f32.mrb[0].mxu0
      %2490 = vmatprep.mubr.f32.mxu0 0.0
      %2491 = vmatmul.mubr.f32.gmra.mrb[0].mxu0 %v2389
      %v2492 = vpop.f32.mrb[0].mxu0
      %v2493 = vadd.f32 0.0, %v2492
      %v2494 = vpop.f32.mrb[0].mxu0
      %2495 = vdwg.mxu0
      %v2496 = vadd.f32 %v2308, %v2458
      %v2497 = vadd.f32 %v2313, %v2463
      %v2498 = vadd.f32 %v2318, %v2468
      %v2499 = vadd.f32 %v2323, %v2473
      %v2500 = vadd.f32 %v2328, %v2478
      %v2501 = vadd.f32 %v2333, %v2483
      %v2502 = vadd.f32 %v2338, %v2488
      %v2503 = vadd.f32 %v2343, %v2493
      %s2504 = scalar_lea.vmem %s5, 192
      %v2505 = vld [vmem:[%s2504] sm:$0xff]
      %v2506 = vld [vmem:[%s2504 + $0x8] sm:$0xff]
      %v2507 = vld [vmem:[%s2504 + $0x10] sm:$0xff]
      %v2508 = vld [vmem:[%s2504 + $0x18] sm:$0xff]
      %v2509 = vld [vmem:[%s2504 + $0x20] sm:$0xff]
      %v2510 = vld [vmem:[%s2504 + $0x28] sm:$0xff]
      %v2511 = vld [vmem:[%s2504 + $0x30] sm:$0xff]
      %v2512 = vld [vmem:[%s2504 + $0x38] sm:$0xff]
      %2513 = vrot.lane.b32.xlu0 %v2032, 80
      %v2514 = vpop.permute.xlu0 %2513
      %2515 = vrot.lane.b32.xlu0 %v2038, 80
      %v2516 = vpop.permute.xlu0 %2515
      %2517 = vrot.lane.b32.xlu0 %v2044, 80
      %v2518 = vpop.permute.xlu0 %2517
      %2519 = vrot.lane.b32.xlu0 %v2050, 80
      %v2520 = vpop.permute.xlu0 %2519
      %v2526 = vsel %vm2087, %v2505, 0
      %v2529 = vsel %vm2087, %v2506, 0
      %v2532 = vsel %vm2087, %v2507, 0
      %v2535 = vsel %vm2087, %v2508, 0
      %v2538 = vsel %vm2087, %v2509, 0
      %v2541 = vsel %vm2087, %v2510, 0
      %v2544 = vsel %vm2087, %v2511, 0
      %v2547 = vsel %vm2087, %v2512, 0
      %2549 = vmatprep.subr.mxu0 0.0
      %2550 = vmatpush1.msra.mxu0 %v2514
      %2551 = vmatprep.subr.mxu0 0.0
      %2552 = vmatpush1.msra.mxu0 %v2516
      %2553 = vmatprep.subr.mxu0 0.0
      %2554 = vmatpush1.msra.mxu0 %v2518
      %2555 = vmatprep.subr.mxu0 0.0
      %2556 = vmatpush1.msra.mxu0 %v2520
      %2557 = vmatprep.subr.mxu0 0.0
      %2558 = vmatpush1.msra.mxu0 0.0
      %2559 = vmatprep.subr.mxu0 0.0
      %2560 = vmatpush1.msra.mxu0 0.0
      %2561 = vmatprep.subr.mxu0 0.0
      %2562 = vmatpush1.msra.mxu0 0.0
      %2563 = vmatprep.subr.mxu0 0.0
      %2564 = vmatpush1.msra.mxu0 0.0
      %2565 = vmatprep.subr.mxu0 0.0
      %2566 = vmatpush1.msra.mxu0 0.0
      %2567 = vmatprep.subr.mxu0 0.0
      %2568 = vmatpush1.msra.mxu0 0.0
      %2569 = vmatprep.subr.mxu0 0.0
      %2570 = vmatpush1.msra.mxu0 0.0
      %2571 = vmatprep.subr.mxu0 0.0
      %2572 = vmatpush1.msra.mxu0 0.0
      %2573 = vmatprep.subr.mxu0 0.0
      %2574 = vmatpush1.msra.mxu0 0.0
      %2575 = vmatprep.subr.mxu0 0.0
      %2576 = vmatpush1.msra.mxu0 0.0
      %2577 = vmatprep.subr.mxu0 0.0
      %2578 = vmatpush1.msra.mxu0 0.0
      %2579 = vmatprep.subr.mxu0 0.0
      %2580 = vmatpush1.msra.mxu0 0.0
      %2581 = vmatprep.subr.mxu0 0.0
      %2582 = vmatpush1.msra.mxu0 0.0
      %2583 = vmatprep.subr.mxu0 0.0
      %2584 = vmatpush1.msra.mxu0 0.0
      %2585 = vmatprep.subr.mxu0 0.0
      %2586 = vmatpush1.msra.mxu0 0.0
      %2587 = vmatprep.subr.mxu0 0.0
      %2588 = vmatpush1.msra.mxu0 0.0
      %2589 = vmatprep.subr.mxu0 0.0
      %2590 = vmatpush1.msra.mxu0 0.0
      %2591 = vmatprep.subr.mxu0 0.0
      %2592 = vmatpush1.msra.mxu0 0.0
      %2593 = vmatprep.subr.mxu0 0.0
      %2594 = vmatpush1.msra.mxu0 0.0
      %2595 = vmatprep.subr.mxu0 0.0
      %2596 = vmatpush1.msra.mxu0 0.0
      %2597 = vmatprep.subr.mxu0 0.0
      %2598 = vmatpush1.msra.mxu0 0.0
      %2599 = vmatprep.subr.mxu0 0.0
      %2600 = vmatpush1.msra.mxu0 0.0
      %2601 = vmatprep.subr.mxu0 0.0
      %2602 = vmatpush1.msra.mxu0 0.0
      %2603 = vmatprep.subr.mxu0 0.0
      %2604 = vmatpush1.msra.mxu0 0.0
      %2605 = vmatprep.subr.mxu0 0.0
      %2606 = vmatpush1.msra.mxu0 0.0
      %2607 = vmatprep.subr.mxu0 0.0
      %2608 = vmatpush1.msra.mxu0 0.0
      %2609 = vmatprep.subr.mxu0 0.0
      %2610 = vmatpush1.msra.mxu0 0.0
      %2611 = vmatprep.subr.mxu0 0.0
      %2612 = vmatpush1.msra.mxu0 0.0
      %2613 = vmatprep.mubr.f32.mxu0 0.0
      %2614 = vmatmul.mubr.f32.gmra.mrb[0].mxu0 %v2526
      %v2615 = vpop.f32.mrb[0].mxu0
      %v2616 = vadd.f32 0.0, %v2615
      %v2617 = vpop.f32.mrb[0].mxu0
      %2618 = vmatprep.mubr.f32.mxu0 0.0
      %2619 = vmatmul.mubr.f32.gmra.mrb[0].mxu0 %v2529
      %v2620 = vpop.f32.mrb[0].mxu0
      %v2621 = vadd.f32 0.0, %v2620
      %v2622 = vpop.f32.mrb[0].mxu0
      %2623 = vmatprep.mubr.f32.mxu0 0.0
      %2624 = vmatmul.mubr.f32.gmra.mrb[0].mxu0 %v2532
      %v2625 = vpop.f32.mrb[0].mxu0
      %v2626 = vadd.f32 0.0, %v2625
      %v2627 = vpop.f32.mrb[0].mxu0
      %2628 = vmatprep.mubr.f32.mxu0 0.0
      %2629 = vmatmul.mubr.f32.gmra.mrb[0].mxu0 %v2535
      %v2630 = vpop.f32.mrb[0].mxu0
      %v2631 = vadd.f32 0.0, %v2630
      %v2632 = vpop.f32.mrb[0].mxu0
      %2633 = vmatprep.mubr.f32.mxu0 0.0
      %2634 = vmatmul.mubr.f32.gmra.mrb[0].mxu0 %v2538
      %v2635 = vpop.f32.mrb[0].mxu0
      %v2636 = vadd.f32 0.0, %v2635
      %v2637 = vpop.f32.mrb[0].mxu0
      %2638 = vmatprep.mubr.f32.mxu0 0.0
      %2639 = vmatmul.mubr.f32.gmra.mrb[0].mxu0 %v2541
      %v2640 = vpop.f32.mrb[0].mxu0
      %v2641 = vadd.f32 0.0, %v2640
      %v2642 = vpop.f32.mrb[0].mxu0
      %2643 = vmatprep.mubr.f32.mxu0 0.0
      %2644 = vmatmul.mubr.f32.gmra.mrb[0].mxu0 %v2544
      %v2645 = vpop.f32.mrb[0].mxu0
      %v2646 = vadd.f32 0.0, %v2645
      %v2647 = vpop.f32.mrb[0].mxu0
      %2648 = vmatprep.mubr.f32.mxu0 0.0
      %2649 = vmatmul.mubr.f32.gmra.mrb[0].mxu0 %v2547
      %v2650 = vpop.f32.mrb[0].mxu0
      %v2651 = vadd.f32 0.0, %v2650
      %v2652 = vpop.f32.mrb[0].mxu0
      %2653 = vdwg.mxu0
      %v2654 = vadd.f32 %v2496, %v2616
      %v2655 = vadd.f32 %v2497, %v2621
      %v2656 = vadd.f32 %v2498, %v2626
      %v2657 = vadd.f32 %v2499, %v2631
      %v2658 = vadd.f32 %v2500, %v2636
      %v2659 = vadd.f32 %v2501, %v2641
      %v2660 = vadd.f32 %v2502, %v2646
      %v2661 = vadd.f32 %v2503, %v2651
      %s2662 = scalar_lea.vmem %s5, 256
      %v2663 = vld [vmem:[%s2662] sm:$0xff]
      %v2664 = vld [vmem:[%s2662 + $0x8] sm:$0xff]
      %v2665 = vld [vmem:[%s2662 + $0x10] sm:$0xff]
      %v2666 = vld [vmem:[%s2662 + $0x18] sm:$0xff]
      %v2667 = vld [vmem:[%s2662 + $0x20] sm:$0xff]
      %v2668 = vld [vmem:[%s2662 + $0x28] sm:$0xff]
      %v2669 = vld [vmem:[%s2662 + $0x30] sm:$0xff]
      %v2670 = vld [vmem:[%s2662 + $0x38] sm:$0xff]
      %2671 = vrot.lane.b32.xlu0 %v2032, 64
      %v2672 = vpop.permute.xlu0 %2671
      %2673 = vrot.lane.b32.xlu0 %v2038, 64
      %v2674 = vpop.permute.xlu0 %2673
      %2675 = vrot.lane.b32.xlu0 %v2044, 64
      %v2676 = vpop.permute.xlu0 %2675
      %2677 = vrot.lane.b32.xlu0 %v2050, 64
      %v2678 = vpop.permute.xlu0 %2677
      %v2684 = vsel %vm2087, %v2663, 0
      %v2687 = vsel %vm2087, %v2664, 0
      %v2690 = vsel %vm2087, %v2665, 0
      %v2693 = vsel %vm2087, %v2666, 0
      %v2696 = vsel %vm2087, %v2667, 0
      %v2699 = vsel %vm2087, %v2668, 0
      %v2702 = vsel %vm2087, %v2669, 0
      %v2705 = vsel %vm2087, %v2670, 0
      %2707 = vmatprep.subr.mxu0 0.0
      %2708 = vmatpush1.msra.mxu0 %v2672
      %2709 = vmatprep.subr.mxu0 0.0
      %2710 = vmatpush1.msra.mxu0 %v2674
      %2711 = vmatprep.subr.mxu0 0.0
      %2712 = vmatpush1.msra.mxu0 %v2676
      %2713 = vmatprep.subr.mxu0 0.0
      %2714 = vmatpush1.msra.mxu0 %v2678
      %2715 = vmatprep.subr.mxu0 0.0
      %2716 = vmatpush1.msra.mxu0 0.0
      %2717 = vmatprep.subr.mxu0 0.0
      %2718 = vmatpush1.msra.mxu0 0.0
      %2719 = vmatprep.subr.mxu0 0.0
      %2720 = vmatpush1.msra.mxu0 0.0
      %2721 = vmatprep.subr.mxu0 0.0
      %2722 = vmatpush1.msra.mxu0 0.0
      %2723 = vmatprep.subr.mxu0 0.0
      %2724 = vmatpush1.msra.mxu0 0.0
      %2725 = vmatprep.subr.mxu0 0.0
      %2726 = vmatpush1.msra.mxu0 0.0
      %2727 = vmatprep.subr.mxu0 0.0
      %2728 = vmatpush1.msra.mxu0 0.0
      %2729 = vmatprep.subr.mxu0 0.0
      %2730 = vmatpush1.msra.mxu0 0.0
      %2731 = vmatprep.subr.mxu0 0.0
      %2732 = vmatpush1.msra.mxu0 0.0
      %2733 = vmatprep.subr.mxu0 0.0
      %2734 = vmatpush1.msra.mxu0 0.0
      %2735 = vmatprep.subr.mxu0 0.0
      %2736 = vmatpush1.msra.mxu0 0.0
      %2737 = vmatprep.subr.mxu0 0.0
      %2738 = vmatpush1.msra.mxu0 0.0
      %2739 = vmatprep.subr.mxu0 0.0
      %2740 = vmatpush1.msra.mxu0 0.0
      %2741 = vmatprep.subr.mxu0 0.0
      %2742 = vmatpush1.msra.mxu0 0.0
      %2743 = vmatprep.subr.mxu0 0.0
      %2744 = vmatpush1.msra.mxu0 0.0
      %2745 = vmatprep.subr.mxu0 0.0
      %2746 = vmatpush1.msra.mxu0 0.0
      %2747 = vmatprep.subr.mxu0 0.0
      %2748 = vmatpush1.msra.mxu0 0.0
      %2749 = vmatprep.subr.mxu0 0.0
      %2750 = vmatpush1.msra.mxu0 0.0
      %2751 = vmatprep.subr.mxu0 0.0
      %2752 = vmatpush1.msra.mxu0 0.0
      %2753 = vmatprep.subr.mxu0 0.0
      %2754 = vmatpush1.msra.mxu0 0.0
      %2755 = vmatprep.subr.mxu0 0.0
      %2756 = vmatpush1.msra.mxu0 0.0
      %2757 = vmatprep.subr.mxu0 0.0
      %2758 = vmatpush1.msra.mxu0 0.0
      %2759 = vmatprep.subr.mxu0 0.0
      %2760 = vmatpush1.msra.mxu0 0.0
      %2761 = vmatprep.subr.mxu0 0.0
      %2762 = vmatpush1.msra.mxu0 0.0
      %2763 = vmatprep.subr.mxu0 0.0
      %2764 = vmatpush1.msra.mxu0 0.0
      %2765 = vmatprep.subr.mxu0 0.0
      %2766 = vmatpush1.msra.mxu0 0.0
      %2767 = vmatprep.subr.mxu0 0.0
      %2768 = vmatpush1.msra.mxu0 0.0
      %2769 = vmatprep.subr.mxu0 0.0
      %2770 = vmatpush1.msra.mxu0 0.0
      %2771 = vmatprep.mubr.f32.mxu0 0.0
      %2772 = vmatmul.mubr.f32.gmra.mrb[0].mxu0 %v2684
      %v2773 = vpop.f32.mrb[0].mxu0
      %v2774 = vadd.f32 0.0, %v2773
      %v2775 = vpop.f32.mrb[0].mxu0
      %2776 = vmatprep.mubr.f32.mxu0 0.0
      %2777 = vmatmul.mubr.f32.gmra.mrb[0].mxu0 %v2687
      %v2778 = vpop.f32.mrb[0].mxu0
      %v2779 = vadd.f32 0.0, %v2778
      %v2780 = vpop.f32.mrb[0].mxu0
      %2781 = vmatprep.mubr.f32.mxu0 0.0
      %2782 = vmatmul.mubr.f32.gmra.mrb[0].mxu0 %v2690
      %v2783 = vpop.f32.mrb[0].mxu0
      %v2784 = vadd.f32 0.0, %v2783
      %v2785 = vpop.f32.mrb[0].mxu0
      %2786 = vmatprep.mubr.f32.mxu0 0.0
      %2787 = vmatmul.mubr.f32.gmra.mrb[0].mxu0 %v2693
      %v2788 = vpop.f32.mrb[0].mxu0
      %v2789 = vadd.f32 0.0, %v2788
      %v2790 = vpop.f32.mrb[0].mxu0
      %2791 = vmatprep.mubr.f32.mxu0 0.0
      %2792 = vmatmul.mubr.f32.gmra.mrb[0].mxu0 %v2696
      %v2793 = vpop.f32.mrb[0].mxu0
      %v2794 = vadd.f32 0.0, %v2793
      %v2795 = vpop.f32.mrb[0].mxu0
      %2796 = vmatprep.mubr.f32.mxu0 0.0
      %2797 = vmatmul.mubr.f32.gmra.mrb[0].mxu0 %v2699
      %v2798 = vpop.f32.mrb[0].mxu0
      %v2799 = vadd.f32 0.0, %v2798
      %v2800 = vpop.f32.mrb[0].mxu0
      %2801 = vmatprep.mubr.f32.mxu0 0.0
      %2802 = vmatmul.mubr.f32.gmra.mrb[0].mxu0 %v2702
      %v2803 = vpop.f32.mrb[0].mxu0
      %v2804 = vadd.f32 0.0, %v2803
      %v2805 = vpop.f32.mrb[0].mxu0
      %2806 = vmatprep.mubr.f32.mxu0 0.0
      %2807 = vmatmul.mubr.f32.gmra.mrb[0].mxu0 %v2705
      %v2808 = vpop.f32.mrb[0].mxu0
      %v2809 = vadd.f32 0.0, %v2808
      %v2810 = vpop.f32.mrb[0].mxu0
      %2811 = vdwg.mxu0
      %v2812 = vadd.f32 %v2654, %v2774
      %v2813 = vadd.f32 %v2655, %v2779
      %v2814 = vadd.f32 %v2656, %v2784
      %v2815 = vadd.f32 %v2657, %v2789
      %v2816 = vadd.f32 %v2658, %v2794
      %v2817 = vadd.f32 %v2659, %v2799
      %v2818 = vadd.f32 %v2660, %v2804
      %v2819 = vadd.f32 %v2661, %v2809
      %s2820 = scalar_lea.vmem %s5, 320
      %v2821 = vld [vmem:[%s2820] sm:$0xff]
      %v2822 = vld [vmem:[%s2820 + $0x8] sm:$0xff]
      %v2823 = vld [vmem:[%s2820 + $0x10] sm:$0xff]
      %v2824 = vld [vmem:[%s2820 + $0x18] sm:$0xff]
      %v2825 = vld [vmem:[%s2820 + $0x20] sm:$0xff]
      %v2826 = vld [vmem:[%s2820 + $0x28] sm:$0xff]
      %v2827 = vld [vmem:[%s2820 + $0x30] sm:$0xff]
      %v2828 = vld [vmem:[%s2820 + $0x38] sm:$0xff]
      %2829 = vrot.lane.b32.xlu0 %v2032, 48
      %v2830 = vpop.permute.xlu0 %2829
      %2831 = vrot.lane.b32.xlu0 %v2038, 48
      %v2832 = vpop.permute.xlu0 %2831
      %2833 = vrot.lane.b32.xlu0 %v2044, 48
      %v2834 = vpop.permute.xlu0 %2833
      %2835 = vrot.lane.b32.xlu0 %v2050, 48
      %v2836 = vpop.permute.xlu0 %2835
      %v2842 = vsel %vm2087, %v2821, 0
      %v2845 = vsel %vm2087, %v2822, 0
      %v2848 = vsel %vm2087, %v2823, 0
      %v2851 = vsel %vm2087, %v2824, 0
      %v2854 = vsel %vm2087, %v2825, 0
      %v2857 = vsel %vm2087, %v2826, 0
      %v2860 = vsel %vm2087, %v2827, 0
      %v2863 = vsel %vm2087, %v2828, 0
      %2865 = vmatprep.subr.mxu0 0.0
      %2866 = vmatpush1.msra.mxu0 %v2830
      %2867 = vmatprep.subr.mxu0 0.0
      %2868 = vmatpush1.msra.mxu0 %v2832
      %2869 = vmatprep.subr.mxu0 0.0
      %2870 = vmatpush1.msra.mxu0 %v2834
      %2871 = vmatprep.subr.mxu0 0.0
      %2872 = vmatpush1.msra.mxu0 %v2836
      %2873 = vmatprep.subr.mxu0 0.0
      %2874 = vmatpush1.msra.mxu0 0.0
      %2875 = vmatprep.subr.mxu0 0.0
      %2876 = vmatpush1.msra.mxu0 0.0
      %2877 = vmatprep.subr.mxu0 0.0
      %2878 = vmatpush1.msra.mxu0 0.0
      %2879 = vmatprep.subr.mxu0 0.0
      %2880 = vmatpush1.msra.mxu0 0.0
      %2881 = vmatprep.subr.mxu0 0.0
      %2882 = vmatpush1.msra.mxu0 0.0
      %2883 = vmatprep.subr.mxu0 0.0
      %2884 = vmatpush1.msra.mxu0 0.0
      %2885 = vmatprep.subr.mxu0 0.0
      %2886 = vmatpush1.msra.mxu0 0.0
      %2887 = vmatprep.subr.mxu0 0.0
      %2888 = vmatpush1.msra.mxu0 0.0
      %2889 = vmatprep.subr.mxu0 0.0
      %2890 = vmatpush1.msra.mxu0 0.0
      %2891 = vmatprep.subr.mxu0 0.0
      %2892 = vmatpush1.msra.mxu0 0.0
      %2893 = vmatprep.subr.mxu0 0.0
      %2894 = vmatpush1.msra.mxu0 0.0
      %2895 = vmatprep.subr.mxu0 0.0
      %2896 = vmatpush1.msra.mxu0 0.0
      %2897 = vmatprep.subr.mxu0 0.0
      %2898 = vmatpush1.msra.mxu0 0.0
      %2899 = vmatprep.subr.mxu0 0.0
      %2900 = vmatpush1.msra.mxu0 0.0
      %2901 = vmatprep.subr.mxu0 0.0
      %2902 = vmatpush1.msra.mxu0 0.0
      %2903 = vmatprep.subr.mxu0 0.0
      %2904 = vmatpush1.msra.mxu0 0.0
      %2905 = vmatprep.subr.mxu0 0.0
      %2906 = vmatpush1.msra.mxu0 0.0
      %2907 = vmatprep.subr.mxu0 0.0
      %2908 = vmatpush1.msra.mxu0 0.0
      %2909 = vmatprep.subr.mxu0 0.0
      %2910 = vmatpush1.msra.mxu0 0.0
      %2911 = vmatprep.subr.mxu0 0.0
      %2912 = vmatpush1.msra.mxu0 0.0
      %2913 = vmatprep.subr.mxu0 0.0
      %2914 = vmatpush1.msra.mxu0 0.0
      %2915 = vmatprep.subr.mxu0 0.0
      %2916 = vmatpush1.msra.mxu0 0.0
      %2917 = vmatprep.subr.mxu0 0.0
      %2918 = vmatpush1.msra.mxu0 0.0
      %2919 = vmatprep.subr.mxu0 0.0
      %2920 = vmatpush1.msra.mxu0 0.0
      %2921 = vmatprep.subr.mxu0 0.0
      %2922 = vmatpush1.msra.mxu0 0.0
      %2923 = vmatprep.subr.mxu0 0.0
      %2924 = vmatpush1.msra.mxu0 0.0
      %2925 = vmatprep.subr.mxu0 0.0
      %2926 = vmatpush1.msra.mxu0 0.0
      %2927 = vmatprep.subr.mxu0 0.0
      %2928 = vmatpush1.msra.mxu0 0.0
      %2929 = vmatprep.mubr.f32.mxu0 0.0
      %2930 = vmatmul.mubr.f32.gmra.mrb[0].mxu0 %v2842
      %v2931 = vpop.f32.mrb[0].mxu0
      %v2932 = vadd.f32 0.0, %v2931
      %v2933 = vpop.f32.mrb[0].mxu0
      %2934 = vmatprep.mubr.f32.mxu0 0.0
      %2935 = vmatmul.mubr.f32.gmra.mrb[0].mxu0 %v2845
      %v2936 = vpop.f32.mrb[0].mxu0
      %v2937 = vadd.f32 0.0, %v2936
      %v2938 = vpop.f32.mrb[0].mxu0
      %2939 = vmatprep.mubr.f32.mxu0 0.0
      %2940 = vmatmul.mubr.f32.gmra.mrb[0].mxu0 %v2848
      %v2941 = vpop.f32.mrb[0].mxu0
      %v2942 = vadd.f32 0.0, %v2941
      %v2943 = vpop.f32.mrb[0].mxu0
      %2944 = vmatprep.mubr.f32.mxu0 0.0
      %2945 = vmatmul.mubr.f32.gmra.mrb[0].mxu0 %v2851
      %v2946 = vpop.f32.mrb[0].mxu0
      %v2947 = vadd.f32 0.0, %v2946
      %v2948 = vpop.f32.mrb[0].mxu0
      %2949 = vmatprep.mubr.f32.mxu0 0.0
      %2950 = vmatmul.mubr.f32.gmra.mrb[0].mxu0 %v2854
      %v2951 = vpop.f32.mrb[0].mxu0
      %v2952 = vadd.f32 0.0, %v2951
      %v2953 = vpop.f32.mrb[0].mxu0
      %2954 = vmatprep.mubr.f32.mxu0 0.0
      %2955 = vmatmul.mubr.f32.gmra.mrb[0].mxu0 %v2857
      %v2956 = vpop.f32.mrb[0].mxu0
      %v2957 = vadd.f32 0.0, %v2956
      %v2958 = vpop.f32.mrb[0].mxu0
      %2959 = vmatprep.mubr.f32.mxu0 0.0
      %2960 = vmatmul.mubr.f32.gmra.mrb[0].mxu0 %v2860
      %v2961 = vpop.f32.mrb[0].mxu0
      %v2962 = vadd.f32 0.0, %v2961
      %v2963 = vpop.f32.mrb[0].mxu0
      %2964 = vmatprep.mubr.f32.mxu0 0.0
      %2965 = vmatmul.mubr.f32.gmra.mrb[0].mxu0 %v2863
      %v2966 = vpop.f32.mrb[0].mxu0
      %v2967 = vadd.f32 0.0, %v2966
      %v2968 = vpop.f32.mrb[0].mxu0
      %2969 = vdwg.mxu0
      %v2970 = vadd.f32 %v2812, %v2932
      %v2971 = vadd.f32 %v2813, %v2937
      %v2972 = vadd.f32 %v2814, %v2942
      %v2973 = vadd.f32 %v2815, %v2947
      %v2974 = vadd.f32 %v2816, %v2952
      %v2975 = vadd.f32 %v2817, %v2957
      %v2976 = vadd.f32 %v2818, %v2962
      %v2977 = vadd.f32 %v2819, %v2967
      %s2978 = scalar_lea.vmem %s5, 384
      %v2979 = vld [vmem:[%s2978] sm:$0xff]
      %v2980 = vld [vmem:[%s2978 + $0x8] sm:$0xff]
      %v2981 = vld [vmem:[%s2978 + $0x10] sm:$0xff]
      %v2982 = vld [vmem:[%s2978 + $0x18] sm:$0xff]
      %v2983 = vld [vmem:[%s2978 + $0x20] sm:$0xff]
      %v2984 = vld [vmem:[%s2978 + $0x28] sm:$0xff]
      %v2985 = vld [vmem:[%s2978 + $0x30] sm:$0xff]
      %v2986 = vld [vmem:[%s2978 + $0x38] sm:$0xff]
      %2987 = vrot.lane.b32.xlu0 %v2032, 32
      %v2988 = vpop.permute.xlu0 %2987
      %2989 = vrot.lane.b32.xlu0 %v2038, 32
      %v2990 = vpop.permute.xlu0 %2989
      %2991 = vrot.lane.b32.xlu0 %v2044, 32
      %v2992 = vpop.permute.xlu0 %2991
      %2993 = vrot.lane.b32.xlu0 %v2050, 32
      %v2994 = vpop.permute.xlu0 %2993
      %v3000 = vsel %vm2087, %v2979, 0
      %v3003 = vsel %vm2087, %v2980, 0
      %v3006 = vsel %vm2087, %v2981, 0
      %v3009 = vsel %vm2087, %v2982, 0
      %v3012 = vsel %vm2087, %v2983, 0
      %v3015 = vsel %vm2087, %v2984, 0
      %v3018 = vsel %vm2087, %v2985, 0
      %v3021 = vsel %vm2087, %v2986, 0
      %3023 = vmatprep.subr.mxu0 0.0
      %3024 = vmatpush1.msra.mxu0 %v2988
      %3025 = vmatprep.subr.mxu0 0.0
      %3026 = vmatpush1.msra.mxu0 %v2990
      %3027 = vmatprep.subr.mxu0 0.0
      %3028 = vmatpush1.msra.mxu0 %v2992
      %3029 = vmatprep.subr.mxu0 0.0
      %3030 = vmatpush1.msra.mxu0 %v2994
      %3031 = vmatprep.subr.mxu0 0.0
      %3032 = vmatpush1.msra.mxu0 0.0
      %3033 = vmatprep.subr.mxu0 0.0
      %3034 = vmatpush1.msra.mxu0 0.0
      %3035 = vmatprep.subr.mxu0 0.0
      %3036 = vmatpush1.msra.mxu0 0.0
      %3037 = vmatprep.subr.mxu0 0.0
      %3038 = vmatpush1.msra.mxu0 0.0
      %3039 = vmatprep.subr.mxu0 0.0
      %3040 = vmatpush1.msra.mxu0 0.0
      %3041 = vmatprep.subr.mxu0 0.0
      %3042 = vmatpush1.msra.mxu0 0.0
      %3043 = vmatprep.subr.mxu0 0.0
      %3044 = vmatpush1.msra.mxu0 0.0
      %3045 = vmatprep.subr.mxu0 0.0
      %3046 = vmatpush1.msra.mxu0 0.0
      %3047 = vmatprep.subr.mxu0 0.0
      %3048 = vmatpush1.msra.mxu0 0.0
      %3049 = vmatprep.subr.mxu0 0.0
      %3050 = vmatpush1.msra.mxu0 0.0
      %3051 = vmatprep.subr.mxu0 0.0
      %3052 = vmatpush1.msra.mxu0 0.0
      %3053 = vmatprep.subr.mxu0 0.0
      %3054 = vmatpush1.msra.mxu0 0.0
      %3055 = vmatprep.subr.mxu0 0.0
      %3056 = vmatpush1.msra.mxu0 0.0
      %3057 = vmatprep.subr.mxu0 0.0
      %3058 = vmatpush1.msra.mxu0 0.0
      %3059 = vmatprep.subr.mxu0 0.0
      %3060 = vmatpush1.msra.mxu0 0.0
      %3061 = vmatprep.subr.mxu0 0.0
      %3062 = vmatpush1.msra.mxu0 0.0
      %3063 = vmatprep.subr.mxu0 0.0
      %3064 = vmatpush1.msra.mxu0 0.0
      %3065 = vmatprep.subr.mxu0 0.0
      %3066 = vmatpush1.msra.mxu0 0.0
      %3067 = vmatprep.subr.mxu0 0.0
      %3068 = vmatpush1.msra.mxu0 0.0
      %3069 = vmatprep.subr.mxu0 0.0
      %3070 = vmatpush1.msra.mxu0 0.0
      %3071 = vmatprep.subr.mxu0 0.0
      %3072 = vmatpush1.msra.mxu0 0.0
      %3073 = vmatprep.subr.mxu0 0.0
      %3074 = vmatpush1.msra.mxu0 0.0
      %3075 = vmatprep.subr.mxu0 0.0
      %3076 = vmatpush1.msra.mxu0 0.0
      %3077 = vmatprep.subr.mxu0 0.0
      %3078 = vmatpush1.msra.mxu0 0.0
      %3079 = vmatprep.subr.mxu0 0.0
      %3080 = vmatpush1.msra.mxu0 0.0
      %3081 = vmatprep.subr.mxu0 0.0
      %3082 = vmatpush1.msra.mxu0 0.0
      %3083 = vmatprep.subr.mxu0 0.0
      %3084 = vmatpush1.msra.mxu0 0.0
      %3085 = vmatprep.subr.mxu0 0.0
      %3086 = vmatpush1.msra.mxu0 0.0
      %3087 = vmatprep.mubr.f32.mxu0 0.0
      %3088 = vmatmul.mubr.f32.gmra.mrb[0].mxu0 %v3000
      %v3089 = vpop.f32.mrb[0].mxu0
      %v3090 = vadd.f32 0.0, %v3089
      %v3091 = vpop.f32.mrb[0].mxu0
      %3092 = vmatprep.mubr.f32.mxu0 0.0
      %3093 = vmatmul.mubr.f32.gmra.mrb[0].mxu0 %v3003
      %v3094 = vpop.f32.mrb[0].mxu0
      %v3095 = vadd.f32 0.0, %v3094
      %v3096 = vpop.f32.mrb[0].mxu0
      %3097 = vmatprep.mubr.f32.mxu0 0.0
      %3098 = vmatmul.mubr.f32.gmra.mrb[0].mxu0 %v3006
      %v3099 = vpop.f32.mrb[0].mxu0
      %v3100 = vadd.f32 0.0, %v3099
      %v3101 = vpop.f32.mrb[0].mxu0
      %3102 = vmatprep.mubr.f32.mxu0 0.0
      %3103 = vmatmul.mubr.f32.gmra.mrb[0].mxu0 %v3009
      %v3104 = vpop.f32.mrb[0].mxu0
      %v3105 = vadd.f32 0.0, %v3104
      %v3106 = vpop.f32.mrb[0].mxu0
      %3107 = vmatprep.mubr.f32.mxu0 0.0
      %3108 = vmatmul.mubr.f32.gmra.mrb[0].mxu0 %v3012
      %v3109 = vpop.f32.mrb[0].mxu0
      %v3110 = vadd.f32 0.0, %v3109
      %v3111 = vpop.f32.mrb[0].mxu0
      %3112 = vmatprep.mubr.f32.mxu0 0.0
      %3113 = vmatmul.mubr.f32.gmra.mrb[0].mxu0 %v3015
      %v3114 = vpop.f32.mrb[0].mxu0
      %v3115 = vadd.f32 0.0, %v3114
      %v3116 = vpop.f32.mrb[0].mxu0
      %3117 = vmatprep.mubr.f32.mxu0 0.0
      %3118 = vmatmul.mubr.f32.gmra.mrb[0].mxu0 %v3018
      %v3119 = vpop.f32.mrb[0].mxu0
      %v3120 = vadd.f32 0.0, %v3119
      %v3121 = vpop.f32.mrb[0].mxu0
      %3122 = vmatprep.mubr.f32.mxu0 0.0
      %3123 = vmatmul.mubr.f32.gmra.mrb[0].mxu0 %v3021
      %v3124 = vpop.f32.mrb[0].mxu0
      %v3125 = vadd.f32 0.0, %v3124
      %v3126 = vpop.f32.mrb[0].mxu0
      %3127 = vdwg.mxu0
      %v3128 = vadd.f32 %v2970, %v3090
      %v3129 = vadd.f32 %v2971, %v3095
      %v3130 = vadd.f32 %v2972, %v3100
      %v3131 = vadd.f32 %v2973, %v3105
      %v3132 = vadd.f32 %v2974, %v3110
      %v3133 = vadd.f32 %v2975, %v3115
      %v3134 = vadd.f32 %v2976, %v3120
      %v3135 = vadd.f32 %v2977, %v3125
      %s3136 = scalar_lea.vmem %s5, 448
      %v3137 = vld [vmem:[%s3136] sm:$0xff]
      %v3138 = vld [vmem:[%s3136 + $0x8] sm:$0xff]
      %v3139 = vld [vmem:[%s3136 + $0x10] sm:$0xff]
      %v3140 = vld [vmem:[%s3136 + $0x18] sm:$0xff]
      %v3141 = vld [vmem:[%s3136 + $0x20] sm:$0xff]
      %v3142 = vld [vmem:[%s3136 + $0x28] sm:$0xff]
      %v3143 = vld [vmem:[%s3136 + $0x30] sm:$0xff]
      %v3144 = vld [vmem:[%s3136 + $0x38] sm:$0xff]
      %3145 = vrot.lane.b32.xlu0 %v2032, 16
      %v3146 = vpop.permute.xlu0 %3145
      %3147 = vrot.lane.b32.xlu0 %v2038, 16
      %v3148 = vpop.permute.xlu0 %3147
      %3149 = vrot.lane.b32.xlu0 %v2044, 16
      %v3150 = vpop.permute.xlu0 %3149
      %3151 = vrot.lane.b32.xlu0 %v2050, 16
      %v3152 = vpop.permute.xlu0 %3151
      %v3158 = vsel %vm2087, %v3137, 0
      %v3161 = vsel %vm2087, %v3138, 0
      %v3164 = vsel %vm2087, %v3139, 0
      %v3167 = vsel %vm2087, %v3140, 0
      %v3170 = vsel %vm2087, %v3141, 0
      %v3173 = vsel %vm2087, %v3142, 0
      %v3176 = vsel %vm2087, %v3143, 0
      %v3179 = vsel %vm2087, %v3144, 0
      %3181 = vmatprep.subr.mxu0 0.0
      %3182 = vmatpush1.msra.mxu0 %v3146
      %3183 = vmatprep.subr.mxu0 0.0
      %3184 = vmatpush1.msra.mxu0 %v3148
      %3185 = vmatprep.subr.mxu0 0.0
      %3186 = vmatpush1.msra.mxu0 %v3150
      %3187 = vmatprep.subr.mxu0 0.0
      %3188 = vmatpush1.msra.mxu0 %v3152
      %3189 = vmatprep.subr.mxu0 0.0
      %3190 = vmatpush1.msra.mxu0 0.0
      %3191 = vmatprep.subr.mxu0 0.0
      %3192 = vmatpush1.msra.mxu0 0.0
      %3193 = vmatprep.subr.mxu0 0.0
      %3194 = vmatpush1.msra.mxu0 0.0
      %3195 = vmatprep.subr.mxu0 0.0
      %3196 = vmatpush1.msra.mxu0 0.0
      %3197 = vmatprep.subr.mxu0 0.0
      %3198 = vmatpush1.msra.mxu0 0.0
      %3199 = vmatprep.subr.mxu0 0.0
      %3200 = vmatpush1.msra.mxu0 0.0
      %3201 = vmatprep.subr.mxu0 0.0
      %3202 = vmatpush1.msra.mxu0 0.0
      %3203 = vmatprep.subr.mxu0 0.0
      %3204 = vmatpush1.msra.mxu0 0.0
      %3205 = vmatprep.subr.mxu0 0.0
      %3206 = vmatpush1.msra.mxu0 0.0
      %3207 = vmatprep.subr.mxu0 0.0
      %3208 = vmatpush1.msra.mxu0 0.0
      %3209 = vmatprep.subr.mxu0 0.0
      %3210 = vmatpush1.msra.mxu0 0.0
      %3211 = vmatprep.subr.mxu0 0.0
      %3212 = vmatpush1.msra.mxu0 0.0
      %3213 = vmatprep.subr.mxu0 0.0
      %3214 = vmatpush1.msra.mxu0 0.0
      %3215 = vmatprep.subr.mxu0 0.0
      %3216 = vmatpush1.msra.mxu0 0.0
      %3217 = vmatprep.subr.mxu0 0.0
      %3218 = vmatpush1.msra.mxu0 0.0
      %3219 = vmatprep.subr.mxu0 0.0
      %3220 = vmatpush1.msra.mxu0 0.0
      %3221 = vmatprep.subr.mxu0 0.0
      %3222 = vmatpush1.msra.mxu0 0.0
      %3223 = vmatprep.subr.mxu0 0.0
      %3224 = vmatpush1.msra.mxu0 0.0
      %3225 = vmatprep.subr.mxu0 0.0
      %3226 = vmatpush1.msra.mxu0 0.0
      %3227 = vmatprep.subr.mxu0 0.0
      %3228 = vmatpush1.msra.mxu0 0.0
      %3229 = vmatprep.subr.mxu0 0.0
      %3230 = vmatpush1.msra.mxu0 0.0
      %3231 = vmatprep.subr.mxu0 0.0
      %3232 = vmatpush1.msra.mxu0 0.0
      %3233 = vmatprep.subr.mxu0 0.0
      %3234 = vmatpush1.msra.mxu0 0.0
      %3235 = vmatprep.subr.mxu0 0.0
      %3236 = vmatpush1.msra.mxu0 0.0
      %3237 = vmatprep.subr.mxu0 0.0
      %3238 = vmatpush1.msra.mxu0 0.0
      %3239 = vmatprep.subr.mxu0 0.0
      %3240 = vmatpush1.msra.mxu0 0.0
      %3241 = vmatprep.subr.mxu0 0.0
      %3242 = vmatpush1.msra.mxu0 0.0
      %3243 = vmatprep.subr.mxu0 0.0
      %3244 = vmatpush1.msra.mxu0 0.0
      %3245 = vmatprep.mubr.f32.mxu0 0.0
      %3246 = vmatmul.mubr.f32.gmra.mrb[0].mxu0 %v3158
      %v3247 = vpop.f32.mrb[0].mxu0
      %v3248 = vadd.f32 0.0, %v3247
      %v3249 = vpop.f32.mrb[0].mxu0
      %3250 = vmatprep.mubr.f32.mxu0 0.0
      %3251 = vmatmul.mubr.f32.gmra.mrb[0].mxu0 %v3161
      %v3252 = vpop.f32.mrb[0].mxu0
      %v3253 = vadd.f32 0.0, %v3252
      %v3254 = vpop.f32.mrb[0].mxu0
      %3255 = vmatprep.mubr.f32.mxu0 0.0
      %3256 = vmatmul.mubr.f32.gmra.mrb[0].mxu0 %v3164
      %v3257 = vpop.f32.mrb[0].mxu0
      %v3258 = vadd.f32 0.0, %v3257
      %v3259 = vpop.f32.mrb[0].mxu0
      %3260 = vmatprep.mubr.f32.mxu0 0.0
      %3261 = vmatmul.mubr.f32.gmra.mrb[0].mxu0 %v3167
      %v3262 = vpop.f32.mrb[0].mxu0
      %v3263 = vadd.f32 0.0, %v3262
      %v3264 = vpop.f32.mrb[0].mxu0
      %3265 = vmatprep.mubr.f32.mxu0 0.0
      %3266 = vmatmul.mubr.f32.gmra.mrb[0].mxu0 %v3170
      %v3267 = vpop.f32.mrb[0].mxu0
      %v3268 = vadd.f32 0.0, %v3267
      %v3269 = vpop.f32.mrb[0].mxu0
      %3270 = vmatprep.mubr.f32.mxu0 0.0
      %3271 = vmatmul.mubr.f32.gmra.mrb[0].mxu0 %v3173
      %v3272 = vpop.f32.mrb[0].mxu0
      %v3273 = vadd.f32 0.0, %v3272
      %v3274 = vpop.f32.mrb[0].mxu0
      %3275 = vmatprep.mubr.f32.mxu0 0.0
      %3276 = vmatmul.mubr.f32.gmra.mrb[0].mxu0 %v3176
      %v3277 = vpop.f32.mrb[0].mxu0
      %v3278 = vadd.f32 0.0, %v3277
      %v3279 = vpop.f32.mrb[0].mxu0
      %3280 = vmatprep.mubr.f32.mxu0 0.0
      %3281 = vmatmul.mubr.f32.gmra.mrb[0].mxu0 %v3179
      %v3282 = vpop.f32.mrb[0].mxu0
      %v3283 = vadd.f32 0.0, %v3282
      %v3284 = vpop.f32.mrb[0].mxu0
      %3285 = vdwg.mxu0
      %v3286 = vadd.f32 %v3128, %v3248
      %v3287 = vadd.f32 %v3129, %v3253
      %v3288 = vadd.f32 %v3130, %v3258
      %v3289 = vadd.f32 %v3131, %v3263
      %v3290 = vadd.f32 %v3132, %v3268
      %v3291 = vadd.f32 %v3133, %v3273
      %v3292 = vadd.f32 %v3134, %v3278
      %v3293 = vadd.f32 %v3135, %v3283
      %s3294 = scalar_lea.vmem %s5, 512
      %v3295 = vld [vmem:[%s3294] sm:$0xff]
      %v3296 = vld [vmem:[%s3294 + $0x8] sm:$0xff]
      %v3297 = vld [vmem:[%s3294 + $0x10] sm:$0xff]
      %v3298 = vld [vmem:[%s3294 + $0x18] sm:$0xff]
      %v3299 = vld [vmem:[%s3294 + $0x20] sm:$0xff]
      %v3300 = vld [vmem:[%s3294 + $0x28] sm:$0xff]
      %v3301 = vld [vmem:[%s3294 + $0x30] sm:$0xff]
      %v3302 = vld [vmem:[%s3294 + $0x38] sm:$0xff]
      %v3304 = vsel %vm2087, %v3295, 0
      %v3307 = vsel %vm2087, %v3296, 0
      %v3310 = vsel %vm2087, %v3297, 0
      %v3313 = vsel %vm2087, %v3298, 0
      %v3316 = vsel %vm2087, %v3299, 0
      %v3319 = vsel %vm2087, %v3300, 0
      %v3322 = vsel %vm2087, %v3301, 0
      %v3325 = vsel %vm2087, %v3302, 0
      %3327 = vmatprep.subr.mxu0 0.0
      %3328 = vmatpush1.msra.mxu0 %v2034
      %3329 = vmatprep.subr.mxu0 0.0
      %3330 = vmatpush1.msra.mxu0 %v2040
      %3331 = vmatprep.subr.mxu0 0.0
      %3332 = vmatpush1.msra.mxu0 %v2046
      %3333 = vmatprep.subr.mxu0 0.0
      %3334 = vmatpush1.msra.mxu0 %v2052
      %3335 = vmatprep.subr.mxu0 0.0
      %3336 = vmatpush1.msra.mxu0 0.0
      %3337 = vmatprep.subr.mxu0 0.0
      %3338 = vmatpush1.msra.mxu0 0.0
      %3339 = vmatprep.subr.mxu0 0.0
      %3340 = vmatpush1.msra.mxu0 0.0
      %3341 = vmatprep.subr.mxu0 0.0
      %3342 = vmatpush1.msra.mxu0 0.0
      %3343 = vmatprep.subr.mxu0 0.0
      %3344 = vmatpush1.msra.mxu0 0.0
      %3345 = vmatprep.subr.mxu0 0.0
      %3346 = vmatpush1.msra.mxu0 0.0
      %3347 = vmatprep.subr.mxu0 0.0
      %3348 = vmatpush1.msra.mxu0 0.0
      %3349 = vmatprep.subr.mxu0 0.0
      %3350 = vmatpush1.msra.mxu0 0.0
      %3351 = vmatprep.subr.mxu0 0.0
      %3352 = vmatpush1.msra.mxu0 0.0
      %3353 = vmatprep.subr.mxu0 0.0
      %3354 = vmatpush1.msra.mxu0 0.0
      %3355 = vmatprep.subr.mxu0 0.0
      %3356 = vmatpush1.msra.mxu0 0.0
      %3357 = vmatprep.subr.mxu0 0.0
      %3358 = vmatpush1.msra.mxu0 0.0
      %3359 = vmatprep.subr.mxu0 0.0
      %3360 = vmatpush1.msra.mxu0 0.0
      %3361 = vmatprep.subr.mxu0 0.0
      %3362 = vmatpush1.msra.mxu0 0.0
      %3363 = vmatprep.subr.mxu0 0.0
      %3364 = vmatpush1.msra.mxu0 0.0
      %3365 = vmatprep.subr.mxu0 0.0
      %3366 = vmatpush1.msra.mxu0 0.0
      %3367 = vmatprep.subr.mxu0 0.0
      %3368 = vmatpush1.msra.mxu0 0.0
      %3369 = vmatprep.subr.mxu0 0.0
      %3370 = vmatpush1.msra.mxu0 0.0
      %3371 = vmatprep.subr.mxu0 0.0
      %3372 = vmatpush1.msra.mxu0 0.0
      %3373 = vmatprep.subr.mxu0 0.0
      %3374 = vmatpush1.msra.mxu0 0.0
      %3375 = vmatprep.subr.mxu0 0.0
      %3376 = vmatpush1.msra.mxu0 0.0
      %3377 = vmatprep.subr.mxu0 0.0
      %3378 = vmatpush1.msra.mxu0 0.0
      %3379 = vmatprep.subr.mxu0 0.0
      %3380 = vmatpush1.msra.mxu0 0.0
      %3381 = vmatprep.subr.mxu0 0.0
      %3382 = vmatpush1.msra.mxu0 0.0
      %3383 = vmatprep.subr.mxu0 0.0
      %3384 = vmatpush1.msra.mxu0 0.0
      %3385 = vmatprep.subr.mxu0 0.0
      %3386 = vmatpush1.msra.mxu0 0.0
      %3387 = vmatprep.subr.mxu0 0.0
      %3388 = vmatpush1.msra.mxu0 0.0
      %3389 = vmatprep.subr.mxu0 0.0
      %3390 = vmatpush1.msra.mxu0 0.0
      %3391 = vmatprep.mubr.f32.mxu0 0.0
      %3392 = vmatmul.mubr.f32.gmra.mrb[0].mxu0 %v3304
      %v3393 = vpop.f32.mrb[0].mxu0
      %v3394 = vadd.f32 0.0, %v3393
      %v3395 = vpop.f32.mrb[0].mxu0
      %3396 = vmatprep.mubr.f32.mxu0 0.0
      %3397 = vmatmul.mubr.f32.gmra.mrb[0].mxu0 %v3307
      %v3398 = vpop.f32.mrb[0].mxu0
      %v3399 = vadd.f32 0.0, %v3398
      %v3400 = vpop.f32.mrb[0].mxu0
      %3401 = vmatprep.mubr.f32.mxu0 0.0
      %3402 = vmatmul.mubr.f32.gmra.mrb[0].mxu0 %v3310
      %v3403 = vpop.f32.mrb[0].mxu0
      %v3404 = vadd.f32 0.0, %v3403
      %v3405 = vpop.f32.mrb[0].mxu0
      %3406 = vmatprep.mubr.f32.mxu0 0.0
      %3407 = vmatmul.mubr.f32.gmra.mrb[0].mxu0 %v3313
      %v3408 = vpop.f32.mrb[0].mxu0
      %v3409 = vadd.f32 0.0, %v3408
      %v3410 = vpop.f32.mrb[0].mxu0
      %3411 = vmatprep.mubr.f32.mxu0 0.0
      %3412 = vmatmul.mubr.f32.gmra.mrb[0].mxu0 %v3316
      %v3413 = vpop.f32.mrb[0].mxu0
      %v3414 = vadd.f32 0.0, %v3413
      %v3415 = vpop.f32.mrb[0].mxu0
      %3416 = vmatprep.mubr.f32.mxu0 0.0
      %3417 = vmatmul.mubr.f32.gmra.mrb[0].mxu0 %v3319
      %v3418 = vpop.f32.mrb[0].mxu0
      %v3419 = vadd.f32 0.0, %v3418
      %v3420 = vpop.f32.mrb[0].mxu0
      %3421 = vmatprep.mubr.f32.mxu0 0.0
      %3422 = vmatmul.mubr.f32.gmra.mrb[0].mxu0 %v3322
      %v3423 = vpop.f32.mrb[0].mxu0
      %v3424 = vadd.f32 0.0, %v3423
      %v3425 = vpop.f32.mrb[0].mxu0
      %3426 = vmatprep.mubr.f32.mxu0 0.0
      %3427 = vmatmul.mubr.f32.gmra.mrb[0].mxu0 %v3325
      %v3428 = vpop.f32.mrb[0].mxu0
      %v3429 = vadd.f32 0.0, %v3428
      %v3430 = vpop.f32.mrb[0].mxu0
      %3431 = vdwg.mxu0
      %v3432 = vadd.f32 %v3286, %v3394
      %v3433 = vadd.f32 %v3287, %v3399
      %v3434 = vadd.f32 %v3288, %v3404
      %v3435 = vadd.f32 %v3289, %v3409
      %v3436 = vadd.f32 %v3290, %v3414
      %v3437 = vadd.f32 %v3291, %v3419
      %v3438 = vadd.f32 %v3292, %v3424
      %v3439 = vadd.f32 %v3293, %v3429
      %v3440 = vld [vmem:[%s8] sm:$0xff]
      %v3441 = vld [vmem:[%s8 + $0x8] sm:$0xff]
      %v3442 = vld [vmem:[%s8 + $0x10] sm:$0xff]
      %v3443 = vld [vmem:[%s8 + $0x18] sm:$0xff]
      %v3444 = vld [vmem:[%s8 + $0x20] sm:$0xff]
      %v3445 = vld [vmem:[%s8 + $0x28] sm:$0xff]
      %v3446 = vld [vmem:[%s8 + $0x30] sm:$0xff]
      %v3447 = vld [vmem:[%s8 + $0x38] sm:$0xff]
      %3449 = vset.pattern.permute.xlu0 0
      %3450 = vperm.xlu0 %3449, %v3440
      %v3451 = vpop.permute.xlu0 %3450
      %3454 = vset.pattern.permute.xlu0 0
      %3455 = vperm.xlu0 %3454, %v3441
      %v3456 = vpop.permute.xlu0 %3455
      %3459 = vset.pattern.permute.xlu0 0
      %3460 = vperm.xlu0 %3459, %v3442
      %v3461 = vpop.permute.xlu0 %3460
      %3464 = vset.pattern.permute.xlu0 0
      %3465 = vperm.xlu0 %3464, %v3443
      %v3466 = vpop.permute.xlu0 %3465
      %3469 = vset.pattern.permute.xlu0 0
      %3470 = vperm.xlu0 %3469, %v3444
      %v3471 = vpop.permute.xlu0 %3470
      %3474 = vset.pattern.permute.xlu0 0
      %3475 = vperm.xlu0 %3474, %v3445
      %v3476 = vpop.permute.xlu0 %3475
      %3479 = vset.pattern.permute.xlu0 0
      %3480 = vperm.xlu0 %3479, %v3446
      %v3481 = vpop.permute.xlu0 %3480
      %3484 = vset.pattern.permute.xlu0 0
      %3485 = vperm.xlu0 %3484, %v3447
      %v3486 = vpop.permute.xlu0 %3485
      %v3488 = vadd.f32 %v3432, %v3451
      %v3489 = vadd.f32 %v3433, %v3456
      %v3490 = vadd.f32 %v3434, %v3461
      %v3491 = vadd.f32 %v3435, %v3466
      %v3492 = vadd.f32 %v3436, %v3471
      %v3493 = vadd.f32 %v3437, %v3476
      %v3494 = vadd.f32 %v3438, %v3481
      %v3495 = vadd.f32 %v3439, %v3486
      %v3496 = vmax.f32 %v3488, 0.0
      %v3497 = vmax.f32 %v3489, 0.0
      %v3498 = vmax.f32 %v3490, 0.0
      %v3499 = vmax.f32 %v3491, 0.0
      %v3500 = vmax.f32 %v3492, 0.0
      %v3501 = vmax.f32 %v3493, 0.0
      %v3502 = vmax.f32 %v3494, 0.0
      %v3503 = vmax.f32 %v3495, 0.0
      %3504 = vst.msk [vmem:[%s411] sm:$0xff] %vm939, %v3496
      %3505 = vst.msk [vmem:[%s411 + $0x8] sm:$0xff] %vm939, %v3497
      %3506 = vst.msk [vmem:[%s411 + $0x10] sm:$0xff] %vm939, %v3498
      %3507 = vst.msk [vmem:[%s411 + $0x18] sm:$0xff] %vm939, %v3499
      %3508 = vst.msk [vmem:[%s411 + $0x20] sm:$0xff] %vm939, %v3500
      %3509 = vst.msk [vmem:[%s411 + $0x28] sm:$0xff] %vm939, %v3501
      %3510 = vst.msk [vmem:[%s411 + $0x30] sm:$0xff] %vm939, %v3502
      %3511 = vst.msk [vmem:[%s411 + $0x38] sm:$0xff] %vm939, %v3503
      %p3512 = scmp.lt.s32.totalorder %s23, 1
      %s3513 = scalar_select %p3512, %s23, 1
      %s3514 = smul.addr %s3513, 4
      %s3515 = smul.addr %s3514, 8
      %s3516 = scalar_lea.vmem %s9, %s3515
      %p3517 = scmp.lt.s32.totalorder %s23, 1
      %s3518 = scalar_select %p3517, %s23, 1
      %s3519 = smul.addr %s3518, 4
      %s3520 = smul.addr %s3519, 8
      %s3521 = scalar_lea.vmem %s10, %s3520
      %p3522 = scmp.lt.s32.totalorder %s23, 1
      %s3523 = scalar_select %p3522, %s23, 1
      %s3524 = smul.addr %s3523, 8
      %s3525 = smul.addr %s3524, 8
      %s3526 = scalar_lea.vmem %s11, %s3525
      // Predicated region
      $region57: #{tiny_backbone_forward.1} parent=55 // pred_check
        %p3527 = pneg %p235
      $region58: #{tiny_backbone_forward.1} parent=55 // pred_check_branch
        %3529 = sbr.rel (%p3527) target = $region60
      $region59: #{tiny_backbone_forward.1} parent=55 // pred_region
        _
      $region60: #{tiny_backbone_forward.1} parent=55 // pred_fallthru
        _
      // Predicated region
      $region61: #{tiny_backbone_forward.1} parent=55 // pred_check
        %p3530 = pneg %p261
      $region62: #{tiny_backbone_forward.1} parent=55 // pred_check_branch
        %3532 = sbr.rel (%p3530) target = $region64
      $region63: #{tiny_backbone_forward.1} parent=55 // pred_region
        _
      $region64: #{tiny_backbone_forward.1} parent=55 // pred_fallthru
        _
      // Predicated region
      $region65: #{tiny_backbone_forward.1} parent=55 // pred_check
        %p3533 = pneg %p287
      $region66: #{tiny_backbone_forward.1} parent=55 // pred_check_branch
        %3535 = sbr.rel (%p3533) target = $region68
      $region67: #{tiny_backbone_forward.1} parent=55 // pred_region
        _
      $region68: #{tiny_backbone_forward.1} parent=55 // pred_fallthru
        _
    $region56: #{tiny_backbone_forward.1} parent=5 // pred_fallthru
      _
    %p3536 = scmp.le.s32.totalorder 2, %s18
    // Predicated region
    $region69: #{tiny_backbone_forward.1} parent=5 // pred_check
      %p3537 = pneg %p3536
    $region70: #{tiny_backbone_forward.1} parent=5 // pred_check_branch
      %3539 = sbr.rel (%p3537) target = $region72
    $region71: #{tiny_backbone_forward.1} parent=5 // pred_region
      %s3540 = ssub.s32 %s18, 2
      // Predicated region
      $region73: #{tiny_backbone_forward.1} parent=71 // pred_check
        %p3541 = pneg %p241
      $region74: #{tiny_backbone_forward.1} parent=71 // pred_check_branch
        %3543 = sbr.rel (%p3541) target = $region76
      $region75: #{tiny_backbone_forward.1} parent=71 // pred_region
        %p3544 = scmp.lt.s32.totalorder %s24, 1
        %s3545 = scalar_select %p3544, %s24, 1
        %s3546 = smul.addr %s3545, 4
        %s3547 = smul.addr %s3546, 8
        %s3548 = scalar_lea.vmem %s9, %s3547
      $region76: #{tiny_backbone_forward.1} parent=71 // pred_fallthru
        _
      // Predicated region
      $region77: #{tiny_backbone_forward.1} parent=71 // pred_check
        %p3549 = pneg %p267
      $region78: #{tiny_backbone_forward.1} parent=71 // pred_check_branch
        %3551 = sbr.rel (%p3549) target = $region80
      $region79: #{tiny_backbone_forward.1} parent=71 // pred_region
        %p3552 = scmp.lt.s32.totalorder %s24, 1
        %s3553 = scalar_select %p3552, %s24, 1
        %s3554 = smul.addr %s3553, 4
        %s3555 = smul.addr %s3554, 8
        %s3556 = scalar_lea.vmem %s10, %s3555
      $region80: #{tiny_backbone_forward.1} parent=71 // pred_fallthru
        _
      // Predicated region
      $region81: #{tiny_backbone_forward.1} parent=71 // pred_check
        %p3557 = pneg %p293
      $region82: #{tiny_backbone_forward.1} parent=71 // pred_check_branch
        %3559 = sbr.rel (%p3557) target = $region84
      $region83: #{tiny_backbone_forward.1} parent=71 // pred_region
        %p3560 = scmp.lt.s32.totalorder %s24, 1
        %s3561 = scalar_select %p3560, %s24, 1
        %s3562 = smul.addr %s3561, 8
        %s3563 = smul.addr %s3562, 8
        %s3564 = scalar_lea.vmem %s11, %s3563
      $region84: #{tiny_backbone_forward.1} parent=71 // pred_fallthru
        _
    $region72: #{tiny_backbone_forward.1} parent=5 // pred_fallthru
      _
  $region6: #{tiny_backbone_forward.1} parent=0 // loop_footer
    %s22 = sadd.s32 1, %s18
  $region7: #{tiny_backbone_forward.1} parent=0 // loop_footer_branch
    %17 = sbr.rel target = $region3
  $region8: #{tiny_backbone_forward.1} parent=0 // loop_exit
    _

</llo_original>
